<compile_context>
chip_gen: v5e
topology: v5e:2x2
jax: 0.10.0
libtpu: 0.0.40
codegen_flags: <defaults>
</compile_context>

<pallas_src>
import math

import jax
import jax.numpy as jnp
from jax import lax
from jax.experimental import pallas as pl
from jax.experimental.pallas import tpu as pltpu

# ---- config (synthetic, matching the module's shape conventions) ----
D = 64            # number of categorical variables
NUM_CLASSES = 17  # classes per variable
L = 8             # config.latent_dim
M = 32            # config.cell_dim
EPS = 1e-12
NEG_SLOPE = 0.01  # nn.LeakyReLU default

C_PAD = 24               # classes padded up to a multiple of 8 (sublane tile)
NEG_MASK = -1e30         # bias for padded class rows -> exp() underflows to 0
LOG_EPS = math.log(EPS)  # clamp(p, EPS, .) in log space


def _round_up(n, m):
    return ((n + m - 1) // m) * m


def _cdiv(a, b):
    return (a + b - 1) // b


def _hint_multiple(idx, m):
    """pl.multiple_of hint, tolerant of already-concrete Python ints."""
    if isinstance(idx, int):
        return idx
    return pl.multiple_of(idx, m)


def _pick_b_tile(B):
    """Batch tile: sublane-aligned for tiny B, lane-dense with >=2 grid steps
    (v7x megacore) for larger B, growing to 1024 wide for very large B."""
    bpad8 = _round_up(max(B, 1), 8)
    if bpad8 <= 128:
        return bpad8
    if bpad8 <= 2048:
        return _round_up(_cdiv(bpad8, 2), 128)
    return 1024


def _pick_chunk_d(b_tile):
    """Heads per inner-loop chunk so one [chunk*C_PAD, b_tile] f32 logits block
    stays ~<= 48 vregs (in registers, no VMEM round-trips)."""
    budget = 48 * 1024                         # elements (~48 f32 vregs)
    cap = max(1, budget // (C_PAD * b_tile))
    chunk = 1
    while chunk * 2 <= min(cap, D) and D % (chunk * 2) == 0:
        chunk *= 2
    return chunk


def make_decoder_kernel(chunk_d):
    n_chunks = D // chunk_d
    rows = chunk_d * C_PAD  # rows of the packed head weight per chunk

    def decoder_kernel(x3_ref, zT_ref, w1t_ref, b1t_ref, w2t_ref, b2t_ref,
                       w3p_ref, b3p_ref, out_ref):
        """One batch tile; batch lives on the lane axis.

        x3_ref : [D, 1, Bt] int32  class labels (pre-transposed in the wrapper)
        zT_ref : [L, Bt]    f32
        w1t_ref: [M, L]     b1t_ref: [M, 1]
        w2t_ref: [M, M]     b2t_ref: [M, 1]
        w3p_ref: [D*C_PAD, M]   b3p_ref: [D*C_PAD, 1]  (pad classes: w=0, b=-1e30)
        out_ref: [1, Bt]    f32  log_p for this batch tile
        """
        bt = zT_ref.shape[1]

        # --- MLP trunk: Linear -> LeakyReLU -> Linear -> LeakyReLU (f32) ---
        h = jnp.dot(w1t_ref[...], zT_ref[...],
                    preferred_element_type=jnp.float32) + b1t_ref[...]
        h = jnp.where(h > 0, h, NEG_SLOPE * h)
        h = jnp.dot(w2t_ref[...], h,
                    preferred_element_type=jnp.float32) + b2t_ref[...]
        h = jnp.where(h > 0, h, NEG_SLOPE * h)                    # [M, Bt]

        # --- heads, chunk_d at a time; per-chunk logits stay in registers ---
        def body(ci, acc):
            r0 = _hint_multiple(ci * rows, rows)        # row into packed W3
            d0 = _hint_multiple(ci * chunk_d, chunk_d)  # head index
            logits = jnp.dot(w3p_ref[pl.ds(r0, rows), :], h,
                             preferred_element_type=jnp.float32)
            logits = logits + b3p_ref[pl.ds(r0, rows), :]         # [rows, Bt]
            # Row-preserving split of the sublane axis (C_PAD multiple of 8).
            logits = logits.reshape(chunk_d, C_PAD, bt)           # [ch,C_PAD,Bt]

            # masked log-softmax pieces (padded class rows ~ -1e30)
            mx = jnp.max(logits, axis=1, keepdims=True)           # [ch,1,Bt]
            s = logits - mx
            lse = jnp.log(jnp.sum(jnp.exp(s), axis=1, keepdims=True))

            # select the observed class BEFORE normalizing (one where+sum),
            # then clamp only the tiny [ch,1,Bt] result.
            cls = lax.broadcasted_iota(jnp.int32, (chunk_d, C_PAD, bt), 1)
            x_c = x3_ref[pl.ds(d0, chunk_d), :, :]                # [ch,1,Bt]
            sel = jnp.sum(jnp.where(cls == x_c, s, 0.0),
                          axis=1, keepdims=True)                  # [ch,1,Bt]
            per_var = jnp.clip(sel - lse, LOG_EPS, 0.0)           # clamp(p,EPS,1-EPS)
            return acc + jnp.sum(per_var, axis=0)                 # [1, Bt]

        acc = lax.fori_loop(0, n_chunks, body,
                            jnp.zeros((1, bt), jnp.float32), unroll=True)
        out_ref[...] = acc

    return decoder_kernel


def decoder_forward(x, z, params):
    """x: [B, D] int32, z: [B, L] f32 -> log_p: [B] f32."""
    B = z.shape[0]
    B_TILE = _pick_b_tile(B)
    Bpad = _round_up(B, B_TILE)
    grid = (Bpad // B_TILE,)
    chunk_d = _pick_chunk_d(B_TILE)

    if Bpad != B:
        z = jnp.pad(z, ((0, Bpad - B), (0, 0)))
        x = jnp.pad(x, ((0, Bpad - B), (0, 0)))

    # Batch-on-lanes presentation; x pre-reshaped so the kernel never relayouts.
    zT = z.astype(jnp.float32).T                  # [L, Bpad]
    x3 = x.astype(jnp.int32).T[:, None, :]        # [D, 1, Bpad]

    # Weight packing (one-time, outside the kernel).
    w1t = params["w1"].T                          # [M, L]
    b1t = params["b1"].reshape(-1, 1)             # [M, 1]
    w2t = params["w2"].T                          # [M, M]
    b2t = params["b2"].reshape(-1, 1)             # [M, 1]
    w3 = params["w3"]                             # [D, M, C]
    C = w3.shape[-1]
    w3p = jnp.pad(w3, ((0, 0), (0, 0), (0, C_PAD - C)))           # [D, M, C_PAD]
    w3pack = jnp.transpose(w3p, (0, 2, 1)).reshape(D * C_PAD, M)  # [(d,c), M]
    b3p = jnp.pad(params["b3"], ((0, 0), (0, C_PAD - C)),
                  constant_values=NEG_MASK)                       # [D, C_PAD]
    b3pack = b3p.reshape(D * C_PAD, 1)

    out = pl.pallas_call(
        make_decoder_kernel(chunk_d),
        out_shape=jax.ShapeDtypeStruct((1, Bpad), jnp.float32),
        grid=grid,
        in_specs=[
            pl.BlockSpec((D, 1, B_TILE), lambda i: (0, 0, i)),   # x3
            pl.BlockSpec((L, B_TILE), lambda i: (0, i)),         # zT
            pl.BlockSpec((M, L), lambda i: (0, 0)),              # w1t (resident)
            pl.BlockSpec((M, 1), lambda i: (0, 0)),              # b1t
            pl.BlockSpec((M, M), lambda i: (0, 0)),              # w2t
            pl.BlockSpec((M, 1), lambda i: (0, 0)),              # b2t
            pl.BlockSpec((D * C_PAD, M), lambda i: (0, 0)),      # w3pack
            pl.BlockSpec((D * C_PAD, 1), lambda i: (0, 0)),      # b3pack
        ],
        out_specs=pl.BlockSpec((1, B_TILE), lambda i: (0, i)),
        compiler_params=pltpu.CompilerParams(
            dimension_semantics=("parallel",)),
    )(x3, zT, w1t, b1t, w2t, b2t, w3pack, b3pack)
    return out[0, :B]


def decoder_forward_ref(x, z, params):
    """Pure-JAX reference mirroring the PyTorch semantics exactly."""
    h = z @ params["w1"] + params["b1"]
    h = jnp.where(h > 0, h, NEG_SLOPE * h)
    h = h @ params["w2"] + params["b2"]
    h = jnp.where(h > 0, h, NEG_SLOPE * h)
    logits = jnp.einsum("bm,dmc->bdc", h, params["w3"]) + params["b3"][None]
    p = jax.nn.softmax(logits, axis=-1)
    p = jnp.clip(p, EPS, 1.0 - EPS)
    onehot = jax.nn.one_hot(x, NUM_CLASSES, dtype=jnp.float32)
    return jnp.sum(onehot * jnp.log(p), axis=(-1, -2))


def init_params(key):
    ks = jax.random.split(key, 6)
    return {
        "w1": jax.random.normal(ks[0], (L, M), jnp.float32) * 0.3,
        "b1": jax.random.normal(ks[1], (1, M), jnp.float32) * 0.1,
        "w2": jax.random.normal(ks[2], (M, M), jnp.float32) * 0.3,
        "b2": jax.random.normal(ks[3], (1, M), jnp.float32) * 0.1,
        "w3": jax.random.normal(ks[4], (D, M, NUM_CLASSES), jnp.float32) * 0.3,
        "b3": jax.random.normal(ks[5], (D, NUM_CLASSES), jnp.float32) * 0.1,
    }


if __name__ == "__main__":
    key = jax.random.PRNGKey(0)
    kp, kx, kz, kx2, kz2 = jax.random.split(key, 5)
    params = init_params(kp)

    # Small case (B=2): single grid step, batch padded to 8, chunk_d = D.
    B = 2
    x = jax.random.randint(kx, (B, D), 0, NUM_CLASSES, dtype=jnp.int32)
    z = jax.random.normal(kz, (B, L), jnp.float32)
    log_p = decoder_forward(x, z, params)
    jax.block_until_ready(log_p)
    ref = decoder_forward_ref(x, z, params)
    assert log_p.shape == (B,)
    assert jnp.allclose(log_p, ref, rtol=1e-3, atol=1e-3), (log_p, ref)

    # Larger case (B=200): exercises the batch grid (2 parallel steps of 128).
    B2 = 200
    x2 = jax.random.randint(kx2, (B2, D), 0, NUM_CLASSES, dtype=jnp.int32)
    z2 = jax.random.normal(kz2, (B2, L), jnp.float32)
    log_p2 = decoder_forward(x2, z2, params)
    jax.block_until_ready(log_p2)
    ref2 = decoder_forward_ref(x2, z2, params)
    assert log_p2.shape == (B2,)
    assert jnp.allclose(log_p2, ref2, rtol=1e-3, atol=1e-3), (log_p2, ref2)

    print("KERNEL_OK")
</pallas_src>

<mosaic_0001>
module attributes {stable_mosaic.version = 11 : i64} {
  func.func @decoder_kernel(%arg0: i32, %arg1: memref<64x1x8xi32, #tpu.memory_space<vmem>>, %arg2: memref<8x8xf32, #tpu.memory_space<vmem>>, %arg3: memref<32x8xf32, #tpu.memory_space<vmem>>, %arg4: memref<32x1xf32, #tpu.memory_space<vmem>>, %arg5: memref<32x32xf32, #tpu.memory_space<vmem>>, %arg6: memref<32x1xf32, #tpu.memory_space<vmem>>, %arg7: memref<1536x32xf32, #tpu.memory_space<vmem>>, %arg8: memref<1536x1xf32, #tpu.memory_space<vmem>>, %arg9: memref<1x8xf32, #tpu.memory_space<vmem>>) attributes {dimension_semantics = [#tpu.dimension_semantics<parallel>], iteration_bounds = array<i64: 1>, scalar_prefetch = 0 : i64, scratch_operands = 0 : i64, tpu.core_type = #tpu.core_type<tc>, window_params = [{transform_indices = @transform_0, window_bounds = array<i64: 64, 1, 8>}, {transform_indices = @transform_1, window_bounds = array<i64: 8, 8>}, {pipeline_mode = #tpu.pipeline_mode<synchronous>, transform_indices = @transform_2, window_bounds = array<i64: 32, 8>}, {pipeline_mode = #tpu.pipeline_mode<synchronous>, transform_indices = @transform_3, window_bounds = array<i64: 32, 1>}, {pipeline_mode = #tpu.pipeline_mode<synchronous>, transform_indices = @transform_4, window_bounds = array<i64: 32, 32>}, {pipeline_mode = #tpu.pipeline_mode<synchronous>, transform_indices = @transform_5, window_bounds = array<i64: 32, 1>}, {pipeline_mode = #tpu.pipeline_mode<synchronous>, transform_indices = @transform_6, window_bounds = array<i64: 1536, 32>}, {pipeline_mode = #tpu.pipeline_mode<synchronous>, transform_indices = @transform_7, window_bounds = array<i64: 1536, 1>}, {transform_indices = @transform_8, window_bounds = array<i64: 1, 8>}]} {
    %c0 = arith.constant 0 : index
    %c0_0 = arith.constant 0 : index
    %0 = vector.load %arg3[%c0, %c0_0] : memref<32x8xf32, #tpu.memory_space<vmem>>, vector<32x8xf32>
    %c0_1 = arith.constant 0 : index
    %c0_2 = arith.constant 0 : index
    %1 = vector.load %arg2[%c0_1, %c0_2] : memref<8x8xf32, #tpu.memory_space<vmem>>, vector<8x8xf32>
    %cst = arith.constant dense<0.000000e+00> : vector<32x8xf32>
    %2 = tpu.matmul %0, %1, %cst {dimension_numbers = #tpu.dot_dimension_numbers<[1], [0], [0], [1], [0, 0, 1, 1], [], []>} : vector<32x8xf32>, vector<8x8xf32>, vector<32x8xf32> -> vector<32x8xf32>
    %c0_3 = arith.constant 0 : index
    %c0_4 = arith.constant 0 : index
    %3 = vector.load %arg4[%c0_3, %c0_4] : memref<32x1xf32, #tpu.memory_space<vmem>>, vector<32x1xf32>
    %4 = vector.broadcast %3 : vector<32x1xf32> to vector<32x8xf32>
    %5 = arith.addf %2, %4 : vector<32x8xf32>
    %cst_5 = arith.constant 0.000000e+00 : f32
    %6 = vector.broadcast %cst_5 : f32 to vector<32x8xf32>
    %7 = arith.cmpf ogt, %5, %6 : vector<32x8xf32>
    %cst_6 = arith.constant 0.00999999977 : f32
    %8 = vector.broadcast %cst_6 : f32 to vector<32x8xf32>
    %9 = arith.mulf %8, %5 : vector<32x8xf32>
    %10 = arith.select %7, %5, %9 : vector<32x8xi1>, vector<32x8xf32>
    %c0_7 = arith.constant 0 : index
    %c0_8 = arith.constant 0 : index
    %11 = vector.load %arg5[%c0_7, %c0_8] : memref<32x32xf32, #tpu.memory_space<vmem>>, vector<32x32xf32>
    %cst_9 = arith.constant dense<0.000000e+00> : vector<32x8xf32>
    %12 = tpu.matmul %11, %10, %cst_9 {dimension_numbers = #tpu.dot_dimension_numbers<[1], [0], [0], [1], [0, 0, 1, 1], [], []>} : vector<32x32xf32>, vector<32x8xf32>, vector<32x8xf32> -> vector<32x8xf32>
    %c0_10 = arith.constant 0 : index
    %c0_11 = arith.constant 0 : index
    %13 = vector.load %arg6[%c0_10, %c0_11] : memref<32x1xf32, #tpu.memory_space<vmem>>, vector<32x1xf32>
    %14 = vector.broadcast %13 : vector<32x1xf32> to vector<32x8xf32>
    %15 = arith.addf %12, %14 : vector<32x8xf32>
    %cst_12 = arith.constant 0.000000e+00 : f32
    %16 = vector.broadcast %cst_12 : f32 to vector<32x8xf32>
    %17 = arith.cmpf ogt, %15, %16 : vector<32x8xf32>
    %cst_13 = arith.constant 0.00999999977 : f32
    %18 = vector.broadcast %cst_13 : f32 to vector<32x8xf32>
    %19 = arith.mulf %18, %15 : vector<32x8xf32>
    %20 = arith.select %17, %15, %19 : vector<32x8xi1>, vector<32x8xf32>
    %cst_14 = arith.constant 0.000000e+00 : f32
    %21 = vector.broadcast %cst_14 : f32 to vector<1x8xf32>
    %c0_i32 = arith.constant 0 : i32
    %c1536_i32 = arith.constant 1536 : i32
    %22 = arith.muli %c0_i32, %c1536_i32 : i32
    %23 = tpu.assume_multiple %22, 1536 : i32
    %c64_i32 = arith.constant 64 : i32
    %24 = arith.muli %c0_i32, %c64_i32 : i32
    %25 = tpu.assume_multiple %24, 64 : i32
    %26 = arith.index_cast %23 : i32 to index
    %c0_15 = arith.constant 0 : index
    %27 = vector.load %arg7[%26, %c0_15] : memref<1536x32xf32, #tpu.memory_space<vmem>>, vector<1536x32xf32>
    %cst_16 = arith.constant dense<0.000000e+00> : vector<1536x8xf32>
    %28 = tpu.matmul %27, %20, %cst_16 {dimension_numbers = #tpu.dot_dimension_numbers<[1], [0], [0], [1], [0, 0, 1, 1], [], []>} : vector<1536x32xf32>, vector<32x8xf32>, vector<1536x8xf32> -> vector<1536x8xf32>
    %29 = arith.index_cast %23 : i32 to index
    %c0_17 = arith.constant 0 : index
    %30 = vector.load %arg8[%29, %c0_17] : memref<1536x1xf32, #tpu.memory_space<vmem>>, vector<1536x1xf32>
    %31 = vector.broadcast %30 : vector<1536x1xf32> to vector<1536x8xf32>
    %32 = arith.addf %28, %31 : vector<1536x8xf32>
    %33 = vector.shape_cast %32 : vector<1536x8xf32> to vector<64x24x8xf32>
    %cst_18 = arith.constant dense<0xFF800000> : vector<64x8xf32>
    %34 = vector.multi_reduction <maximumf>, %33, %cst_18 [1] : vector<64x24x8xf32> to vector<64x8xf32>
    %35 = vector.shape_cast %34 : vector<64x8xf32> to vector<64x1x8xf32>
    %36 = vector.broadcast %35 : vector<64x1x8xf32> to vector<64x24x8xf32>
    %37 = arith.subf %33, %36 : vector<64x24x8xf32>
    %38 = math.exp %37 : vector<64x24x8xf32>
    %cst_19 = arith.constant dense<0.000000e+00> : vector<64x8xf32>
    %39 = vector.multi_reduction <add>, %38, %cst_19 [1] : vector<64x24x8xf32> to vector<64x8xf32>
    %40 = vector.shape_cast %39 : vector<64x8xf32> to vector<64x1x8xf32>
    %41 = math.log %40 : vector<64x1x8xf32>
    %42 = tpu.iota {dimensions = array<i32: 1>} : vector<64x24x8xi32>
    %43 = arith.index_cast %25 : i32 to index
    %c0_20 = arith.constant 0 : index
    %c0_21 = arith.constant 0 : index
    %44 = vector.load %arg1[%43, %c0_20, %c0_21] : memref<64x1x8xi32, #tpu.memory_space<vmem>>, vector<64x1x8xi32>
    %45 = vector.broadcast %44 : vector<64x1x8xi32> to vector<64x24x8xi32>
    %46 = arith.cmpi eq, %42, %45 : vector<64x24x8xi32>
    %cst_22 = arith.constant 0.000000e+00 : f32
    %47 = vector.broadcast %cst_22 : f32 to vector<64x24x8xf32>
    %48 = arith.select %46, %37, %47 : vector<64x24x8xi1>, vector<64x24x8xf32>
    %cst_23 = arith.constant dense<0.000000e+00> : vector<64x8xf32>
    %49 = vector.multi_reduction <add>, %48, %cst_23 [1] : vector<64x24x8xf32> to vector<64x8xf32>
    %50 = vector.shape_cast %49 : vector<64x8xf32> to vector<64x1x8xf32>
    %51 = arith.subf %50, %41 : vector<64x1x8xf32>
    %cst_24 = arith.constant -27.6310215 : f32
    %cst_25 = arith.constant 0.000000e+00 : f32
    %52 = vector.broadcast %cst_24 : f32 to vector<64x1x8xf32>
    %53 = arith.maximumf %52, %51 : vector<64x1x8xf32>
    %54 = vector.broadcast %cst_25 : f32 to vector<64x1x8xf32>
    %55 = arith.minimumf %54, %53 : vector<64x1x8xf32>
    %cst_26 = arith.constant dense<0.000000e+00> : vector<1x8xf32>
    %56 = vector.multi_reduction <add>, %55, %cst_26 [0] : vector<64x1x8xf32> to vector<1x8xf32>
    %57 = arith.addf %21, %56 : vector<1x8xf32>
    %c1_i32 = arith.constant 1 : i32
    %c0_27 = arith.constant 0 : index
    %c0_28 = arith.constant 0 : index
    %58 = vector.load %arg9[%c0_27, %c0_28] : memref<1x8xf32, #tpu.memory_space<vmem>>, vector<1x8xf32>
    tpu.vector_store %arg9[%c0_27, %c0_28], %57 {strides = array<i32>} : memref<1x8xf32, #tpu.memory_space<vmem>>, vector<1x8xf32>,
    return
  }
  func.func @transform_0(%arg0: i32) -> (i32, i32, i32) {
    %c0_i32 = arith.constant 0 : i32
    %c0_i32_0 = arith.constant 0 : i32
    %c0_i32_1 = arith.constant 0 : i32
    return %c0_i32, %c0_i32_0, %arg0 : i32, i32, i32
  }
  func.func @transform_1(%arg0: i32) -> (i32, i32) {
    %c0_i32 = arith.constant 0 : i32
    %c0_i32_0 = arith.constant 0 : i32
    return %c0_i32, %arg0 : i32, i32
  }
  func.func @transform_2(%arg0: i32) -> (i32, i32) {
    %c0_i32 = arith.constant 0 : i32
    %c0_i32_0 = arith.constant 0 : i32
    %c0_i32_1 = arith.constant 0 : i32
    return %c0_i32, %c0_i32_0 : i32, i32
  }
  func.func @transform_3(%arg0: i32) -> (i32, i32) {
    %c0_i32 = arith.constant 0 : i32
    %c0_i32_0 = arith.constant 0 : i32
    %c0_i32_1 = arith.constant 0 : i32
    return %c0_i32, %c0_i32_0 : i32, i32
  }
  func.func @transform_4(%arg0: i32) -> (i32, i32) {
    %c0_i32 = arith.constant 0 : i32
    %c0_i32_0 = arith.constant 0 : i32
    %c0_i32_1 = arith.constant 0 : i32
    return %c0_i32, %c0_i32_0 : i32, i32
  }
  func.func @transform_5(%arg0: i32) -> (i32, i32) {
    %c0_i32 = arith.constant 0 : i32
    %c0_i32_0 = arith.constant 0 : i32
    %c0_i32_1 = arith.constant 0 : i32
    return %c0_i32, %c0_i32_0 : i32, i32
  }
  func.func @transform_6(%arg0: i32) -> (i32, i32) {
    %c0_i32 = arith.constant 0 : i32
    %c0_i32_0 = arith.constant 0 : i32
    %c0_i32_1 = arith.constant 0 : i32
    return %c0_i32, %c0_i32_0 : i32, i32
  }
  func.func @transform_7(%arg0: i32) -> (i32, i32) {
    %c0_i32 = arith.constant 0 : i32
    %c0_i32_0 = arith.constant 0 : i32
    %c0_i32_1 = arith.constant 0 : i32
    return %c0_i32, %c0_i32_0 : i32, i32
  }
  func.func @transform_8(%arg0: i32) -> (i32, i32) {
    %c0_i32 = arith.constant 0 : i32
    %c0_i32_0 = arith.constant 0 : i32
    return %c0_i32, %arg0 : i32, i32
  }
}

</mosaic_0001>

<llo_original>
// kernel: tpu_custom_call.1
$region0: #{tpu_custom_call.1}
  #allocation0 [shape = 'u32[]', space=smem, size = 0x4, offset = 0x4, fixed_abs, tag = 'smem constant byte address 0x4 - core index']
  #allocation1 [shape = 'u32[72,128]{1,0:T(1,128)}', space=vmem, size = 0x9000, scoped, tag = 'internal scratch']
  %s0 = inlined_call_operand.vmem [shape: s32[64,1,8], index: 0, kind: input, shape index: {}]
  %s1 = inlined_call_operand.vmem [shape: f32[8,8], index: 1, kind: input, shape index: {}]
  %s2 = inlined_call_operand.vmem [shape: f32[32,8], index: 2, kind: input, shape index: {}]
  %s3 = inlined_call_operand.vmem [shape: f32[32,1], index: 3, kind: input, shape index: {}]
  %s4 = inlined_call_operand.vmem [shape: f32[32,32], index: 4, kind: input, shape index: {}]
  %s5 = inlined_call_operand.vmem [shape: f32[32,1], index: 5, kind: input, shape index: {}]
  %s6 = inlined_call_operand.vmem [shape: f32[1536,32], index: 6, kind: input, shape index: {}]
  %s7 = inlined_call_operand.vmem [shape: f32[1536,1], index: 7, kind: input, shape index: {}]
  %s8 = inlined_call_operand.hbm [shape: f32[1,8], index: 8, kind: output, shape index: {}]
  %s9 = sld [smem:[#allocation0]]
  $region42: #{tpu_custom_call.1} parent=0
    _
  %s11 = ssub.s32 1, %s9
  %s12 = scalar_select 0, %s11, %s9
  $region1: #{tpu_custom_call.1} parent=0
    #allocation2 [shape = 'u8[512]{0}', space=vmem, size = 0x400, scoped, tag = 'output window, operand 0, single buffered']
    #allocation3 [shape = 's32[1]{0}', space=sflag, size = 0x4, scoped, tag = 'scoped memory for tpu_custom_call.1']
    %13 = vsyncpa [#allocation3], 0
    // Predicated region
    $region2: #{tpu_custom_call.1} parent=1 // pred_check
      _
    $region3: #{tpu_custom_call.1} parent=1 // pred_check_branch
      %15 = sbr.rel (0) target = $region5
    $region4: #{tpu_custom_call.1} parent=1 // pred_region
      _
    $region5: #{tpu_custom_call.1} parent=1 // pred_fallthru
      _
    // Predicated region
    $region6: #{tpu_custom_call.1} parent=1 // pred_check
      _
    $region7: #{tpu_custom_call.1} parent=1 // pred_check_branch
      %17 = sbr.rel (0) target = $region9
    $region8: #{tpu_custom_call.1} parent=1 // pred_region
      _
    $region9: #{tpu_custom_call.1} parent=1 // pred_fallthru
      _
    // Predicated region
    $region10: #{tpu_custom_call.1} parent=1 // pred_check
      _
    $region11: #{tpu_custom_call.1} parent=1 // pred_check_branch
      %19 = sbr.rel (0) target = $region13
    $region12: #{tpu_custom_call.1} parent=1 // pred_region
      _
    $region13: #{tpu_custom_call.1} parent=1 // pred_fallthru
      _
    // Predicated region
    $region14: #{tpu_custom_call.1} parent=1 // pred_check
      _
    $region15: #{tpu_custom_call.1} parent=1 // pred_check_branch
      %21 = sbr.rel (0) target = $region17
    $region16: #{tpu_custom_call.1} parent=1 // pred_region
      _
    $region17: #{tpu_custom_call.1} parent=1 // pred_fallthru
      _
    // Predicated region
    $region18: #{tpu_custom_call.1} parent=1 // pred_check
      _
    $region19: #{tpu_custom_call.1} parent=1 // pred_check_branch
      %23 = sbr.rel (0) target = $region21
    $region20: #{tpu_custom_call.1} parent=1 // pred_region
      _
    $region21: #{tpu_custom_call.1} parent=1 // pred_fallthru
      _
    // Predicated region
    $region22: #{tpu_custom_call.1} parent=1 // pred_check
      _
    $region23: #{tpu_custom_call.1} parent=1 // pred_check_branch
      %25 = sbr.rel (0) target = $region25
    $region24: #{tpu_custom_call.1} parent=1 // pred_region
      _
    $region25: #{tpu_custom_call.1} parent=1 // pred_fallthru
      _
    // Predicated region
    $region26: #{tpu_custom_call.1} parent=1 // pred_check
      _
    $region27: #{tpu_custom_call.1} parent=1 // pred_check_branch
      %27 = sbr.rel (0) target = $region29
    $region28: #{tpu_custom_call.1} parent=1 // pred_region
      _
    $region29: #{tpu_custom_call.1} parent=1 // pred_fallthru
      _
    // Predicated region
    $region30: #{tpu_custom_call.1} parent=1 // pred_check
      _
    $region31: #{tpu_custom_call.1} parent=1 // pred_check_branch
      %29 = sbr.rel (0) target = $region33
    $region32: #{tpu_custom_call.1} parent=1 // pred_region
      _
    $region33: #{tpu_custom_call.1} parent=1 // pred_fallthru
      _
    %v30 = vld [vmem:[%s2] sm:$0xff]
    %v31 = vld [vmem:[%s2 + $0x8] sm:$0xff]
    %v32 = vld [vmem:[%s2 + $0x10] sm:$0xff]
    %v33 = vld [vmem:[%s2 + $0x18] sm:$0xff]
    %v34 = vld [vmem:[%s1] sm:$0xff]
    %v35 = vld [vmem:[%s3] sm:$0xff]
    %v36 = vld [vmem:[%s3 + $0x8] sm:$0xff]
    %v37 = vld [vmem:[%s3 + $0x10] sm:$0xff]
    %v38 = vld [vmem:[%s3 + $0x18] sm:$0xff]
    %40 = vset.pattern.permute.xlu0 0
    %41 = vperm.xlu0 %40, %v35
    %v42 = vpop.permute.xlu0 %41
    %45 = vset.pattern.permute.xlu0 0
    %46 = vperm.xlu0 %45, %v36
    %v47 = vpop.permute.xlu0 %46
    %50 = vset.pattern.permute.xlu0 0
    %51 = vperm.xlu0 %50, %v37
    %v52 = vpop.permute.xlu0 %51
    %55 = vset.pattern.permute.xlu0 0
    %56 = vperm.xlu0 %55, %v38
    %v57 = vpop.permute.xlu0 %56
    %vm59 = vcmask 64512
    %v61 = vsel %vm59, %v30, 0
    %v64 = vsel %vm59, %v31, 0
    %v67 = vsel %vm59, %v32, 0
    %v70 = vsel %vm59, %v33, 0
    %72 = vmatpush.msra.mxu0 0.0
    %73 = vmatpush.msra.mxu0 0.0
    %74 = vmatpush.msra.mxu0 0.0
    %75 = vmatpush.msra.mxu0 0.0
    %76 = vmatpush.msra.mxu0 0.0
    %77 = vmatpush.msra.mxu0 0.0
    %78 = vmatpush.msra.mxu0 0.0
    %79 = vmatpush.msra.mxu0 0.0
    %80 = vmatpush.msra.mxu0 0.0
    %81 = vmatpush.msra.mxu0 0.0
    %82 = vmatpush.msra.mxu0 0.0
    %83 = vmatpush.msra.mxu0 0.0
    %84 = vmatpush.msra.mxu0 0.0
    %85 = vmatpush.msra.mxu0 0.0
    %86 = vmatpush.msra.mxu0 0.0
    %87 = vmatpush.msra.mxu0 %v34
    %88 = vmatmul.f32.gmra.mxu0 %v61
    %v89 = vpop.f32.mrf.mxu0
    %v90 = vadd.f32 %v42, %v89
    %91 = vmatmul.f32.gmra.mxu0 %v64
    %v92 = vpop.f32.mrf.mxu0
    %v93 = vadd.f32 %v47, %v92
    %94 = vmatmul.f32.gmra.mxu0 %v67
    %v95 = vpop.f32.mrf.mxu0
    %v96 = vadd.f32 %v52, %v95
    %97 = vmatmul.f32.gmra.mxu0 %v70
    %v98 = vpop.f32.mrf.mxu0
    %v99 = vadd.f32 %v57, %v98
    %100 = vdwg.mxu0
    %vm101 = vcmp.gt.f32.partialorder %v90, 0.0
    %vm102 = vcmp.gt.f32.partialorder %v93, 0.0
    %vm103 = vcmp.gt.f32.partialorder %v96, 0.0
    %vm104 = vcmp.gt.f32.partialorder %v99, 0.0
    %v105 = vmul.f32 %v90, 0.01
    %v106 = vmul.f32 %v93, 0.01
    %v107 = vmul.f32 %v96, 0.01
    %v108 = vmul.f32 %v99, 0.01
    %v109 = vsel %vm101, %v90, %v105
    %v110 = vsel %vm102, %v93, %v106
    %v111 = vsel %vm103, %v96, %v107
    %v112 = vsel %vm104, %v99, %v108
    %v113 = vld [vmem:[%s4] sm:$0xff]
    %v114 = vld [vmem:[%s4 + $0x8] sm:$0xff]
    %v115 = vld [vmem:[%s4 + $0x10] sm:$0xff]
    %v116 = vld [vmem:[%s4 + $0x18] sm:$0xff]
    %v117 = vld [vmem:[%s5] sm:$0xff]
    %v118 = vld [vmem:[%s5 + $0x8] sm:$0xff]
    %v119 = vld [vmem:[%s5 + $0x10] sm:$0xff]
    %v120 = vld [vmem:[%s5 + $0x18] sm:$0xff]
    %122 = vset.pattern.permute.xlu0 0
    %123 = vperm.xlu0 %122, %v117
    %v124 = vpop.permute.xlu0 %123
    %127 = vset.pattern.permute.xlu0 0
    %128 = vperm.xlu0 %127, %v118
    %v129 = vpop.permute.xlu0 %128
    %132 = vset.pattern.permute.xlu0 0
    %133 = vperm.xlu0 %132, %v119
    %v134 = vpop.permute.xlu0 %133
    %137 = vset.pattern.permute.xlu0 0
    %138 = vperm.xlu0 %137, %v120
    %v139 = vpop.permute.xlu0 %138
    %vm141 = vcmask 261120
    %v143 = vsel %vm141, %v113, 0
    %v146 = vsel %vm141, %v114, 0
    %v149 = vsel %vm141, %v115, 0
    %v152 = vsel %vm141, %v116, 0
    %154 = vmatpush.msra.mxu0 0.0
    %155 = vmatpush.msra.mxu0 0.0
    %156 = vmatpush.msra.mxu0 0.0
    %157 = vmatpush.msra.mxu0 0.0
    %158 = vmatpush.msra.mxu0 0.0
    %159 = vmatpush.msra.mxu0 0.0
    %160 = vmatpush.msra.mxu0 0.0
    %161 = vmatpush.msra.mxu0 0.0
    %162 = vmatpush.msra.mxu0 0.0
    %163 = vmatpush.msra.mxu0 0.0
    %164 = vmatpush.msra.mxu0 0.0
    %165 = vmatpush.msra.mxu0 0.0
    %166 = vmatpush.msra.mxu0 %v112
    %167 = vmatpush.msra.mxu0 %v111
    %168 = vmatpush.msra.mxu0 %v110
    %169 = vmatpush.msra.mxu0 %v109
    %170 = vmatmul.f32.gmra.mxu0 %v143
    %v171 = vpop.f32.mrf.mxu0
    %v172 = vadd.f32 %v124, %v171
    %173 = vmatmul.f32.gmra.mxu0 %v146
    %v174 = vpop.f32.mrf.mxu0
    %v175 = vadd.f32 %v129, %v174
    %176 = vmatmul.f32.gmra.mxu0 %v149
    %v177 = vpop.f32.mrf.mxu0
    %v178 = vadd.f32 %v134, %v177
    %179 = vmatmul.f32.gmra.mxu0 %v152
    %v180 = vpop.f32.mrf.mxu0
    %v181 = vadd.f32 %v139, %v180
    %182 = vdwg.mxu0
    %vm183 = vcmp.gt.f32.partialorder %v172, 0.0
    %vm184 = vcmp.gt.f32.partialorder %v175, 0.0
    %vm185 = vcmp.gt.f32.partialorder %v178, 0.0
    %vm186 = vcmp.gt.f32.partialorder %v181, 0.0
    %v187 = vmul.f32 %v172, 0.01
    %v188 = vmul.f32 %v175, 0.01
    %v189 = vmul.f32 %v178, 0.01
    %v190 = vmul.f32 %v181, 0.01
    %v191 = vsel %vm183, %v172, %v187
    %v192 = vsel %vm184, %v175, %v188
    %v193 = vsel %vm185, %v178, %v189
    %v194 = vsel %vm186, %v181, %v190
    %v195 = vld [vmem:[%s6] sm:$0xff]
    %v196 = vld [vmem:[%s6 + $0x8] sm:$0xff]
    %v197 = vld [vmem:[%s6 + $0x10] sm:$0xff]
    %v198 = vld [vmem:[%s6 + $0x18] sm:$0xff]
    %v199 = vld [vmem:[%s6 + $0x20] sm:$0xff]
    %v200 = vld [vmem:[%s6 + $0x28] sm:$0xff]
    %v201 = vld [vmem:[%s6 + $0x30] sm:$0xff]
    %v202 = vld [vmem:[%s6 + $0x38] sm:$0xff]
    %v203 = vld [vmem:[%s6 + $0x40] sm:$0xff]
    %v204 = vld [vmem:[%s6 + $0x48] sm:$0xff]
    %v205 = vld [vmem:[%s6 + $0x50] sm:$0xff]
    %v206 = vld [vmem:[%s6 + $0x58] sm:$0xff]
    %v207 = vld [vmem:[%s6 + $0x60] sm:$0xff]
    %v208 = vld [vmem:[%s6 + $0x68] sm:$0xff]
    %v209 = vld [vmem:[%s6 + $0x70] sm:$0xff]
    %v210 = vld [vmem:[%s6 + $0x78] sm:$0xff]
    %v211 = vld [vmem:[%s6 + $0x80] sm:$0xff]
    %v212 = vld [vmem:[%s6 + $0x88] sm:$0xff]
    %v213 = vld [vmem:[%s6 + $0x90] sm:$0xff]
    %v214 = vld [vmem:[%s6 + $0x98] sm:$0xff]
    %v215 = vld [vmem:[%s6 + $0xa0] sm:$0xff]
    %v216 = vld [vmem:[%s6 + $0xa8] sm:$0xff]
    %v217 = vld [vmem:[%s6 + $0xb0] sm:$0xff]
    %v218 = vld [vmem:[%s6 + $0xb8] sm:$0xff]
    %v219 = vld [vmem:[%s6 + $0xc0] sm:$0xff]
    %v220 = vld [vmem:[%s6 + $0xc8] sm:$0xff]
    %v221 = vld [vmem:[%s6 + $0xd0] sm:$0xff]
    %v222 = vld [vmem:[%s6 + $0xd8] sm:$0xff]
    %v223 = vld [vmem:[%s6 + $0xe0] sm:$0xff]
    %v224 = vld [vmem:[%s6 + $0xe8] sm:$0xff]
    %v225 = vld [vmem:[%s6 + $0xf0] sm:$0xff]
    %v226 = vld [vmem:[%s6 + $0xf8] sm:$0xff]
    %v227 = vld [vmem:[%s6 + $0x100] sm:$0xff]
    %v228 = vld [vmem:[%s6 + $0x108] sm:$0xff]
    %v229 = vld [vmem:[%s6 + $0x110] sm:$0xff]
    %v230 = vld [vmem:[%s6 + $0x118] sm:$0xff]
    %v231 = vld [vmem:[%s6 + $0x120] sm:$0xff]
    %v232 = vld [vmem:[%s6 + $0x128] sm:$0xff]
    %v233 = vld [vmem:[%s6 + $0x130] sm:$0xff]
    %v234 = vld [vmem:[%s6 + $0x138] sm:$0xff]
    %v235 = vld [vmem:[%s6 + $0x140] sm:$0xff]
    %v236 = vld [vmem:[%s6 + $0x148] sm:$0xff]
    %v237 = vld [vmem:[%s6 + $0x150] sm:$0xff]
    %v238 = vld [vmem:[%s6 + $0x158] sm:$0xff]
    %v239 = vld [vmem:[%s6 + $0x160] sm:$0xff]
    %v240 = vld [vmem:[%s6 + $0x168] sm:$0xff]
    %v241 = vld [vmem:[%s6 + $0x170] sm:$0xff]
    %v242 = vld [vmem:[%s6 + $0x178] sm:$0xff]
    %v243 = vld [vmem:[%s6 + $0x180] sm:$0xff]
    %v244 = vld [vmem:[%s6 + $0x188] sm:$0xff]
    %v245 = vld [vmem:[%s6 + $0x190] sm:$0xff]
    %v246 = vld [vmem:[%s6 + $0x198] sm:$0xff]
    %v247 = vld [vmem:[%s6 + $0x1a0] sm:$0xff]
    %v248 = vld [vmem:[%s6 + $0x1a8] sm:$0xff]
    %v249 = vld [vmem:[%s6 + $0x1b0] sm:$0xff]
    %v250 = vld [vmem:[%s6 + $0x1b8] sm:$0xff]
    %v251 = vld [vmem:[%s6 + $0x1c0] sm:$0xff]
    %v252 = vld [vmem:[%s6 + $0x1c8] sm:$0xff]
    %v253 = vld [vmem:[%s6 + $0x1d0] sm:$0xff]
    %v254 = vld [vmem:[%s6 + $0x1d8] sm:$0xff]
    %v255 = vld [vmem:[%s6 + $0x1e0] sm:$0xff]
    %v256 = vld [vmem:[%s6 + $0x1e8] sm:$0xff]
    %v257 = vld [vmem:[%s6 + $0x1f0] sm:$0xff]
    %v258 = vld [vmem:[%s6 + $0x1f8] sm:$0xff]
    %v259 = vld [vmem:[%s6 + $0x200] sm:$0xff]
    %v260 = vld [vmem:[%s6 + $0x208] sm:$0xff]
    %v261 = vld [vmem:[%s6 + $0x210] sm:$0xff]
    %v262 = vld [vmem:[%s6 + $0x218] sm:$0xff]
    %v263 = vld [vmem:[%s6 + $0x220] sm:$0xff]
    %v264 = vld [vmem:[%s6 + $0x228] sm:$0xff]
    %v265 = vld [vmem:[%s6 + $0x230] sm:$0xff]
    %v266 = vld [vmem:[%s6 + $0x238] sm:$0xff]
    %v267 = vld [vmem:[%s6 + $0x240] sm:$0xff]
    %v268 = vld [vmem:[%s6 + $0x248] sm:$0xff]
    %v269 = vld [vmem:[%s6 + $0x250] sm:$0xff]
    %v270 = vld [vmem:[%s6 + $0x258] sm:$0xff]
    %v271 = vld [vmem:[%s6 + $0x260] sm:$0xff]
    %v272 = vld [vmem:[%s6 + $0x268] sm:$0xff]
    %v273 = vld [vmem:[%s6 + $0x270] sm:$0xff]
    %v274 = vld [vmem:[%s6 + $0x278] sm:$0xff]
    %v275 = vld [vmem:[%s6 + $0x280] sm:$0xff]
    %v276 = vld [vmem:[%s6 + $0x288] sm:$0xff]
    %v277 = vld [vmem:[%s6 + $0x290] sm:$0xff]
    %v278 = vld [vmem:[%s6 + $0x298] sm:$0xff]
    %v279 = vld [vmem:[%s6 + $0x2a0] sm:$0xff]
    %v280 = vld [vmem:[%s6 + $0x2a8] sm:$0xff]
    %v281 = vld [vmem:[%s6 + $0x2b0] sm:$0xff]
    %v282 = vld [vmem:[%s6 + $0x2b8] sm:$0xff]
    %v283 = vld [vmem:[%s6 + $0x2c0] sm:$0xff]
    %v284 = vld [vmem:[%s6 + $0x2c8] sm:$0xff]
    %v285 = vld [vmem:[%s6 + $0x2d0] sm:$0xff]
    %v286 = vld [vmem:[%s6 + $0x2d8] sm:$0xff]
    %v287 = vld [vmem:[%s6 + $0x2e0] sm:$0xff]
    %v288 = vld [vmem:[%s6 + $0x2e8] sm:$0xff]
    %v289 = vld [vmem:[%s6 + $0x2f0] sm:$0xff]
    %v290 = vld [vmem:[%s6 + $0x2f8] sm:$0xff]
    %v291 = vld [vmem:[%s6 + $0x300] sm:$0xff]
    %v292 = vld [vmem:[%s6 + $0x308] sm:$0xff]
    %v293 = vld [vmem:[%s6 + $0x310] sm:$0xff]
    %v294 = vld [vmem:[%s6 + $0x318] sm:$0xff]
    %v295 = vld [vmem:[%s6 + $0x320] sm:$0xff]
    %v296 = vld [vmem:[%s6 + $0x328] sm:$0xff]
    %v297 = vld [vmem:[%s6 + $0x330] sm:$0xff]
    %v298 = vld [vmem:[%s6 + $0x338] sm:$0xff]
    %v299 = vld [vmem:[%s6 + $0x340] sm:$0xff]
    %v300 = vld [vmem:[%s6 + $0x348] sm:$0xff]
    %v301 = vld [vmem:[%s6 + $0x350] sm:$0xff]
    %v302 = vld [vmem:[%s6 + $0x358] sm:$0xff]
    %v303 = vld [vmem:[%s6 + $0x360] sm:$0xff]
    %v304 = vld [vmem:[%s6 + $0x368] sm:$0xff]
    %v305 = vld [vmem:[%s6 + $0x370] sm:$0xff]
    %v306 = vld [vmem:[%s6 + $0x378] sm:$0xff]
    %v307 = vld [vmem:[%s6 + $0x380] sm:$0xff]
    %v308 = vld [vmem:[%s6 + $0x388] sm:$0xff]
    %v309 = vld [vmem:[%s6 + $0x390] sm:$0xff]
    %v310 = vld [vmem:[%s6 + $0x398] sm:$0xff]
    %v311 = vld [vmem:[%s6 + $0x3a0] sm:$0xff]
    %v312 = vld [vmem:[%s6 + $0x3a8] sm:$0xff]
    %v313 = vld [vmem:[%s6 + $0x3b0] sm:$0xff]
    %v314 = vld [vmem:[%s6 + $0x3b8] sm:$0xff]
    %v315 = vld [vmem:[%s6 + $0x3c0] sm:$0xff]
    %v316 = vld [vmem:[%s6 + $0x3c8] sm:$0xff]
    %v317 = vld [vmem:[%s6 + $0x3d0] sm:$0xff]
    %v318 = vld [vmem:[%s6 + $0x3d8] sm:$0xff]
    %v319 = vld [vmem:[%s6 + $0x3e0] sm:$0xff]
    %v320 = vld [vmem:[%s6 + $0x3e8] sm:$0xff]
    %v321 = vld [vmem:[%s6 + $0x3f0] sm:$0xff]
    %v322 = vld [vmem:[%s6 + $0x3f8] sm:$0xff]
    %v323 = vld [vmem:[%s6 + $0x400] sm:$0xff]
    %v324 = vld [vmem:[%s6 + $0x408] sm:$0xff]
    %v325 = vld [vmem:[%s6 + $0x410] sm:$0xff]
    %v326 = vld [vmem:[%s6 + $0x418] sm:$0xff]
    %v327 = vld [vmem:[%s6 + $0x420] sm:$0xff]
    %v328 = vld [vmem:[%s6 + $0x428] sm:$0xff]
    %v329 = vld [vmem:[%s6 + $0x430] sm:$0xff]
    %v330 = vld [vmem:[%s6 + $0x438] sm:$0xff]
    %v331 = vld [vmem:[%s6 + $0x440] sm:$0xff]
    %v332 = vld [vmem:[%s6 + $0x448] sm:$0xff]
    %v333 = vld [vmem:[%s6 + $0x450] sm:$0xff]
    %v334 = vld [vmem:[%s6 + $0x458] sm:$0xff]
    %v335 = vld [vmem:[%s6 + $0x460] sm:$0xff]
    %v336 = vld [vmem:[%s6 + $0x468] sm:$0xff]
    %v337 = vld [vmem:[%s6 + $0x470] sm:$0xff]
    %v338 = vld [vmem:[%s6 + $0x478] sm:$0xff]
    %v339 = vld [vmem:[%s6 + $0x480] sm:$0xff]
    %v340 = vld [vmem:[%s6 + $0x488] sm:$0xff]
    %v341 = vld [vmem:[%s6 + $0x490] sm:$0xff]
    %v342 = vld [vmem:[%s6 + $0x498] sm:$0xff]
    %v343 = vld [vmem:[%s6 + $0x4a0] sm:$0xff]
    %v344 = vld [vmem:[%s6 + $0x4a8] sm:$0xff]
    %v345 = vld [vmem:[%s6 + $0x4b0] sm:$0xff]
    %v346 = vld [vmem:[%s6 + $0x4b8] sm:$0xff]
    %v347 = vld [vmem:[%s6 + $0x4c0] sm:$0xff]
    %v348 = vld [vmem:[%s6 + $0x4c8] sm:$0xff]
    %v349 = vld [vmem:[%s6 + $0x4d0] sm:$0xff]
    %v350 = vld [vmem:[%s6 + $0x4d8] sm:$0xff]
    %v351 = vld [vmem:[%s6 + $0x4e0] sm:$0xff]
    %v352 = vld [vmem:[%s6 + $0x4e8] sm:$0xff]
    %v353 = vld [vmem:[%s6 + $0x4f0] sm:$0xff]
    %v354 = vld [vmem:[%s6 + $0x4f8] sm:$0xff]
    %v355 = vld [vmem:[%s6 + $0x500] sm:$0xff]
    %v356 = vld [vmem:[%s6 + $0x508] sm:$0xff]
    %v357 = vld [vmem:[%s6 + $0x510] sm:$0xff]
    %v358 = vld [vmem:[%s6 + $0x518] sm:$0xff]
    %v359 = vld [vmem:[%s6 + $0x520] sm:$0xff]
    %v360 = vld [vmem:[%s6 + $0x528] sm:$0xff]
    %v361 = vld [vmem:[%s6 + $0x530] sm:$0xff]
    %v362 = vld [vmem:[%s6 + $0x538] sm:$0xff]
    %v363 = vld [vmem:[%s6 + $0x540] sm:$0xff]
    %v364 = vld [vmem:[%s6 + $0x548] sm:$0xff]
    %v365 = vld [vmem:[%s6 + $0x550] sm:$0xff]
    %v366 = vld [vmem:[%s6 + $0x558] sm:$0xff]
    %v367 = vld [vmem:[%s6 + $0x560] sm:$0xff]
    %v368 = vld [vmem:[%s6 + $0x568] sm:$0xff]
    %v369 = vld [vmem:[%s6 + $0x570] sm:$0xff]
    %v370 = vld [vmem:[%s6 + $0x578] sm:$0xff]
    %v371 = vld [vmem:[%s6 + $0x580] sm:$0xff]
    %v372 = vld [vmem:[%s6 + $0x588] sm:$0xff]
    %v373 = vld [vmem:[%s6 + $0x590] sm:$0xff]
    %v374 = vld [vmem:[%s6 + $0x598] sm:$0xff]
    %v375 = vld [vmem:[%s6 + $0x5a0] sm:$0xff]
    %v376 = vld [vmem:[%s6 + $0x5a8] sm:$0xff]
    %v377 = vld [vmem:[%s6 + $0x5b0] sm:$0xff]
    %v378 = vld [vmem:[%s6 + $0x5b8] sm:$0xff]
    %v379 = vld [vmem:[%s6 + $0x5c0] sm:$0xff]
    %v380 = vld [vmem:[%s6 + $0x5c8] sm:$0xff]
    %v381 = vld [vmem:[%s6 + $0x5d0] sm:$0xff]
    %v382 = vld [vmem:[%s6 + $0x5d8] sm:$0xff]
    %v383 = vld [vmem:[%s6 + $0x5e0] sm:$0xff]
    %v384 = vld [vmem:[%s6 + $0x5e8] sm:$0xff]
    %v385 = vld [vmem:[%s6 + $0x5f0] sm:$0xff]
    %v386 = vld [vmem:[%s6 + $0x5f8] sm:$0xff]
    %v387 = vld [vmem:[%s7] sm:$0xff]
    %v388 = vld [vmem:[%s7 + $0x8] sm:$0xff]
    %v389 = vld [vmem:[%s7 + $0x10] sm:$0xff]
    %v390 = vld [vmem:[%s7 + $0x18] sm:$0xff]
    %v391 = vld [vmem:[%s7 + $0x20] sm:$0xff]
    %v392 = vld [vmem:[%s7 + $0x28] sm:$0xff]
    %v393 = vld [vmem:[%s7 + $0x30] sm:$0xff]
    %v394 = vld [vmem:[%s7 + $0x38] sm:$0xff]
    %v395 = vld [vmem:[%s7 + $0x40] sm:$0xff]
    %v396 = vld [vmem:[%s7 + $0x48] sm:$0xff]
    %v397 = vld [vmem:[%s7 + $0x50] sm:$0xff]
    %v398 = vld [vmem:[%s7 + $0x58] sm:$0xff]
    %v399 = vld [vmem:[%s7 + $0x60] sm:$0xff]
    %v400 = vld [vmem:[%s7 + $0x68] sm:$0xff]
    %v401 = vld [vmem:[%s7 + $0x70] sm:$0xff]
    %v402 = vld [vmem:[%s7 + $0x78] sm:$0xff]
    %v403 = vld [vmem:[%s7 + $0x80] sm:$0xff]
    %v404 = vld [vmem:[%s7 + $0x88] sm:$0xff]
    %v405 = vld [vmem:[%s7 + $0x90] sm:$0xff]
    %v406 = vld [vmem:[%s7 + $0x98] sm:$0xff]
    %v407 = vld [vmem:[%s7 + $0xa0] sm:$0xff]
    %v408 = vld [vmem:[%s7 + $0xa8] sm:$0xff]
    %v409 = vld [vmem:[%s7 + $0xb0] sm:$0xff]
    %v410 = vld [vmem:[%s7 + $0xb8] sm:$0xff]
    %v411 = vld [vmem:[%s7 + $0xc0] sm:$0xff]
    %v412 = vld [vmem:[%s7 + $0xc8] sm:$0xff]
    %v413 = vld [vmem:[%s7 + $0xd0] sm:$0xff]
    %v414 = vld [vmem:[%s7 + $0xd8] sm:$0xff]
    %v415 = vld [vmem:[%s7 + $0xe0] sm:$0xff]
    %v416 = vld [vmem:[%s7 + $0xe8] sm:$0xff]
    %v417 = vld [vmem:[%s7 + $0xf0] sm:$0xff]
    %v418 = vld [vmem:[%s7 + $0xf8] sm:$0xff]
    %v419 = vld [vmem:[%s7 + $0x100] sm:$0xff]
    %v420 = vld [vmem:[%s7 + $0x108] sm:$0xff]
    %v421 = vld [vmem:[%s7 + $0x110] sm:$0xff]
    %v422 = vld [vmem:[%s7 + $0x118] sm:$0xff]
    %v423 = vld [vmem:[%s7 + $0x120] sm:$0xff]
    %v424 = vld [vmem:[%s7 + $0x128] sm:$0xff]
    %v425 = vld [vmem:[%s7 + $0x130] sm:$0xff]
    %v426 = vld [vmem:[%s7 + $0x138] sm:$0xff]
    %v427 = vld [vmem:[%s7 + $0x140] sm:$0xff]
    %v428 = vld [vmem:[%s7 + $0x148] sm:$0xff]
    %v429 = vld [vmem:[%s7 + $0x150] sm:$0xff]
    %v430 = vld [vmem:[%s7 + $0x158] sm:$0xff]
    %v431 = vld [vmem:[%s7 + $0x160] sm:$0xff]
    %v432 = vld [vmem:[%s7 + $0x168] sm:$0xff]
    %v433 = vld [vmem:[%s7 + $0x170] sm:$0xff]
    %v434 = vld [vmem:[%s7 + $0x178] sm:$0xff]
    %v435 = vld [vmem:[%s7 + $0x180] sm:$0xff]
    %v436 = vld [vmem:[%s7 + $0x188] sm:$0xff]
    %v437 = vld [vmem:[%s7 + $0x190] sm:$0xff]
    %v438 = vld [vmem:[%s7 + $0x198] sm:$0xff]
    %v439 = vld [vmem:[%s7 + $0x1a0] sm:$0xff]
    %v440 = vld [vmem:[%s7 + $0x1a8] sm:$0xff]
    %v441 = vld [vmem:[%s7 + $0x1b0] sm:$0xff]
    %v442 = vld [vmem:[%s7 + $0x1b8] sm:$0xff]
    %v443 = vld [vmem:[%s7 + $0x1c0] sm:$0xff]
    %v444 = vld [vmem:[%s7 + $0x1c8] sm:$0xff]
    %v445 = vld [vmem:[%s7 + $0x1d0] sm:$0xff]
    %v446 = vld [vmem:[%s7 + $0x1d8] sm:$0xff]
    %v447 = vld [vmem:[%s7 + $0x1e0] sm:$0xff]
    %v448 = vld [vmem:[%s7 + $0x1e8] sm:$0xff]
    %v449 = vld [vmem:[%s7 + $0x1f0] sm:$0xff]
    %v450 = vld [vmem:[%s7 + $0x1f8] sm:$0xff]
    %v451 = vld [vmem:[%s7 + $0x200] sm:$0xff]
    %v452 = vld [vmem:[%s7 + $0x208] sm:$0xff]
    %v453 = vld [vmem:[%s7 + $0x210] sm:$0xff]
    %v454 = vld [vmem:[%s7 + $0x218] sm:$0xff]
    %v455 = vld [vmem:[%s7 + $0x220] sm:$0xff]
    %v456 = vld [vmem:[%s7 + $0x228] sm:$0xff]
    %v457 = vld [vmem:[%s7 + $0x230] sm:$0xff]
    %v458 = vld [vmem:[%s7 + $0x238] sm:$0xff]
    %v459 = vld [vmem:[%s7 + $0x240] sm:$0xff]
    %v460 = vld [vmem:[%s7 + $0x248] sm:$0xff]
    %v461 = vld [vmem:[%s7 + $0x250] sm:$0xff]
    %v462 = vld [vmem:[%s7 + $0x258] sm:$0xff]
    %v463 = vld [vmem:[%s7 + $0x260] sm:$0xff]
    %v464 = vld [vmem:[%s7 + $0x268] sm:$0xff]
    %v465 = vld [vmem:[%s7 + $0x270] sm:$0xff]
    %v466 = vld [vmem:[%s7 + $0x278] sm:$0xff]
    %v467 = vld [vmem:[%s7 + $0x280] sm:$0xff]
    %v468 = vld [vmem:[%s7 + $0x288] sm:$0xff]
    %v469 = vld [vmem:[%s7 + $0x290] sm:$0xff]
    %v470 = vld [vmem:[%s7 + $0x298] sm:$0xff]
    %v471 = vld [vmem:[%s7 + $0x2a0] sm:$0xff]
    %v472 = vld [vmem:[%s7 + $0x2a8] sm:$0xff]
    %v473 = vld [vmem:[%s7 + $0x2b0] sm:$0xff]
    %v474 = vld [vmem:[%s7 + $0x2b8] sm:$0xff]
    %v475 = vld [vmem:[%s7 + $0x2c0] sm:$0xff]
    %v476 = vld [vmem:[%s7 + $0x2c8] sm:$0xff]
    %v477 = vld [vmem:[%s7 + $0x2d0] sm:$0xff]
    %v478 = vld [vmem:[%s7 + $0x2d8] sm:$0xff]
    %v479 = vld [vmem:[%s7 + $0x2e0] sm:$0xff]
    %v480 = vld [vmem:[%s7 + $0x2e8] sm:$0xff]
    %v481 = vld [vmem:[%s7 + $0x2f0] sm:$0xff]
    %v482 = vld [vmem:[%s7 + $0x2f8] sm:$0xff]
    %v483 = vld [vmem:[%s7 + $0x300] sm:$0xff]
    %v484 = vld [vmem:[%s7 + $0x308] sm:$0xff]
    %v485 = vld [vmem:[%s7 + $0x310] sm:$0xff]
    %v486 = vld [vmem:[%s7 + $0x318] sm:$0xff]
    %v487 = vld [vmem:[%s7 + $0x320] sm:$0xff]
    %v488 = vld [vmem:[%s7 + $0x328] sm:$0xff]
    %v489 = vld [vmem:[%s7 + $0x330] sm:$0xff]
    %v490 = vld [vmem:[%s7 + $0x338] sm:$0xff]
    %v491 = vld [vmem:[%s7 + $0x340] sm:$0xff]
    %v492 = vld [vmem:[%s7 + $0x348] sm:$0xff]
    %v493 = vld [vmem:[%s7 + $0x350] sm:$0xff]
    %v494 = vld [vmem:[%s7 + $0x358] sm:$0xff]
    %v495 = vld [vmem:[%s7 + $0x360] sm:$0xff]
    %v496 = vld [vmem:[%s7 + $0x368] sm:$0xff]
    %v497 = vld [vmem:[%s7 + $0x370] sm:$0xff]
    %v498 = vld [vmem:[%s7 + $0x378] sm:$0xff]
    %v499 = vld [vmem:[%s7 + $0x380] sm:$0xff]
    %v500 = vld [vmem:[%s7 + $0x388] sm:$0xff]
    %v501 = vld [vmem:[%s7 + $0x390] sm:$0xff]
    %v502 = vld [vmem:[%s7 + $0x398] sm:$0xff]
    %v503 = vld [vmem:[%s7 + $0x3a0] sm:$0xff]
    %v504 = vld [vmem:[%s7 + $0x3a8] sm:$0xff]
    %v505 = vld [vmem:[%s7 + $0x3b0] sm:$0xff]
    %v506 = vld [vmem:[%s7 + $0x3b8] sm:$0xff]
    %v507 = vld [vmem:[%s7 + $0x3c0] sm:$0xff]
    %v508 = vld [vmem:[%s7 + $0x3c8] sm:$0xff]
    %v509 = vld [vmem:[%s7 + $0x3d0] sm:$0xff]
    %v510 = vld [vmem:[%s7 + $0x3d8] sm:$0xff]
    %v511 = vld [vmem:[%s7 + $0x3e0] sm:$0xff]
    %v512 = vld [vmem:[%s7 + $0x3e8] sm:$0xff]
    %v513 = vld [vmem:[%s7 + $0x3f0] sm:$0xff]
    %v514 = vld [vmem:[%s7 + $0x3f8] sm:$0xff]
    %v515 = vld [vmem:[%s7 + $0x400] sm:$0xff]
    %v516 = vld [vmem:[%s7 + $0x408] sm:$0xff]
    %v517 = vld [vmem:[%s7 + $0x410] sm:$0xff]
    %v518 = vld [vmem:[%s7 + $0x418] sm:$0xff]
    %v519 = vld [vmem:[%s7 + $0x420] sm:$0xff]
    %v520 = vld [vmem:[%s7 + $0x428] sm:$0xff]
    %v521 = vld [vmem:[%s7 + $0x430] sm:$0xff]
    %v522 = vld [vmem:[%s7 + $0x438] sm:$0xff]
    %v523 = vld [vmem:[%s7 + $0x440] sm:$0xff]
    %v524 = vld [vmem:[%s7 + $0x448] sm:$0xff]
    %v525 = vld [vmem:[%s7 + $0x450] sm:$0xff]
    %v526 = vld [vmem:[%s7 + $0x458] sm:$0xff]
    %v527 = vld [vmem:[%s7 + $0x460] sm:$0xff]
    %v528 = vld [vmem:[%s7 + $0x468] sm:$0xff]
    %v529 = vld [vmem:[%s7 + $0x470] sm:$0xff]
    %v530 = vld [vmem:[%s7 + $0x478] sm:$0xff]
    %v531 = vld [vmem:[%s7 + $0x480] sm:$0xff]
    %v532 = vld [vmem:[%s7 + $0x488] sm:$0xff]
    %v533 = vld [vmem:[%s7 + $0x490] sm:$0xff]
    %v534 = vld [vmem:[%s7 + $0x498] sm:$0xff]
    %v535 = vld [vmem:[%s7 + $0x4a0] sm:$0xff]
    %v536 = vld [vmem:[%s7 + $0x4a8] sm:$0xff]
    %v537 = vld [vmem:[%s7 + $0x4b0] sm:$0xff]
    %v538 = vld [vmem:[%s7 + $0x4b8] sm:$0xff]
    %v539 = vld [vmem:[%s7 + $0x4c0] sm:$0xff]
    %v540 = vld [vmem:[%s7 + $0x4c8] sm:$0xff]
    %v541 = vld [vmem:[%s7 + $0x4d0] sm:$0xff]
    %v542 = vld [vmem:[%s7 + $0x4d8] sm:$0xff]
    %v543 = vld [vmem:[%s7 + $0x4e0] sm:$0xff]
    %v544 = vld [vmem:[%s7 + $0x4e8] sm:$0xff]
    %v545 = vld [vmem:[%s7 + $0x4f0] sm:$0xff]
    %v546 = vld [vmem:[%s7 + $0x4f8] sm:$0xff]
    %v547 = vld [vmem:[%s7 + $0x500] sm:$0xff]
    %v548 = vld [vmem:[%s7 + $0x508] sm:$0xff]
    %v549 = vld [vmem:[%s7 + $0x510] sm:$0xff]
    %v550 = vld [vmem:[%s7 + $0x518] sm:$0xff]
    %v551 = vld [vmem:[%s7 + $0x520] sm:$0xff]
    %v552 = vld [vmem:[%s7 + $0x528] sm:$0xff]
    %v553 = vld [vmem:[%s7 + $0x530] sm:$0xff]
    %v554 = vld [vmem:[%s7 + $0x538] sm:$0xff]
    %v555 = vld [vmem:[%s7 + $0x540] sm:$0xff]
    %v556 = vld [vmem:[%s7 + $0x548] sm:$0xff]
    %v557 = vld [vmem:[%s7 + $0x550] sm:$0xff]
    %v558 = vld [vmem:[%s7 + $0x558] sm:$0xff]
    %v559 = vld [vmem:[%s7 + $0x560] sm:$0xff]
    %v560 = vld [vmem:[%s7 + $0x568] sm:$0xff]
    %v561 = vld [vmem:[%s7 + $0x570] sm:$0xff]
    %v562 = vld [vmem:[%s7 + $0x578] sm:$0xff]
    %v563 = vld [vmem:[%s7 + $0x580] sm:$0xff]
    %v564 = vld [vmem:[%s7 + $0x588] sm:$0xff]
    %v565 = vld [vmem:[%s7 + $0x590] sm:$0xff]
    %v566 = vld [vmem:[%s7 + $0x598] sm:$0xff]
    %v567 = vld [vmem:[%s7 + $0x5a0] sm:$0xff]
    %v568 = vld [vmem:[%s7 + $0x5a8] sm:$0xff]
    %v569 = vld [vmem:[%s7 + $0x5b0] sm:$0xff]
    %v570 = vld [vmem:[%s7 + $0x5b8] sm:$0xff]
    %v571 = vld [vmem:[%s7 + $0x5c0] sm:$0xff]
    %v572 = vld [vmem:[%s7 + $0x5c8] sm:$0xff]
    %v573 = vld [vmem:[%s7 + $0x5d0] sm:$0xff]
    %v574 = vld [vmem:[%s7 + $0x5d8] sm:$0xff]
    %v575 = vld [vmem:[%s7 + $0x5e0] sm:$0xff]
    %v576 = vld [vmem:[%s7 + $0x5e8] sm:$0xff]
    %v577 = vld [vmem:[%s7 + $0x5f0] sm:$0xff]
    %v578 = vld [vmem:[%s7 + $0x5f8] sm:$0xff]
    %580 = vset.pattern.permute.xlu0 0
    %581 = vperm.xlu0 %580, %v387
    %v582 = vpop.permute.xlu0 %581
    %585 = vset.pattern.permute.xlu0 0
    %586 = vperm.xlu0 %585, %v388
    %v587 = vpop.permute.xlu0 %586
    %590 = vset.pattern.permute.xlu0 0
    %591 = vperm.xlu0 %590, %v389
    %v592 = vpop.permute.xlu0 %591
    %595 = vset.pattern.permute.xlu0 0
    %596 = vperm.xlu0 %595, %v390
    %v597 = vpop.permute.xlu0 %596
    %600 = vset.pattern.permute.xlu0 0
    %601 = vperm.xlu0 %600, %v391
    %v602 = vpop.permute.xlu0 %601
    %605 = vset.pattern.permute.xlu0 0
    %606 = vperm.xlu0 %605, %v392
    %v607 = vpop.permute.xlu0 %606
    %610 = vset.pattern.permute.xlu0 0
    %611 = vperm.xlu0 %610, %v393
    %v612 = vpop.permute.xlu0 %611
    %615 = vset.pattern.permute.xlu0 0
    %616 = vperm.xlu0 %615, %v394
    %v617 = vpop.permute.xlu0 %616
    %620 = vset.pattern.permute.xlu0 0
    %621 = vperm.xlu0 %620, %v395
    %v622 = vpop.permute.xlu0 %621
    %625 = vset.pattern.permute.xlu0 0
    %626 = vperm.xlu0 %625, %v396
    %v627 = vpop.permute.xlu0 %626
    %630 = vset.pattern.permute.xlu0 0
    %631 = vperm.xlu0 %630, %v397
    %v632 = vpop.permute.xlu0 %631
    %635 = vset.pattern.permute.xlu0 0
    %636 = vperm.xlu0 %635, %v398
    %v637 = vpop.permute.xlu0 %636
    %640 = vset.pattern.permute.xlu0 0
    %641 = vperm.xlu0 %640, %v399
    %v642 = vpop.permute.xlu0 %641
    %645 = vset.pattern.permute.xlu0 0
    %646 = vperm.xlu0 %645, %v400
    %v647 = vpop.permute.xlu0 %646
    %650 = vset.pattern.permute.xlu0 0
    %651 = vperm.xlu0 %650, %v401
    %v652 = vpop.permute.xlu0 %651
    %655 = vset.pattern.permute.xlu0 0
    %656 = vperm.xlu0 %655, %v402
    %v657 = vpop.permute.xlu0 %656
    %660 = vset.pattern.permute.xlu0 0
    %661 = vperm.xlu0 %660, %v403
    %v662 = vpop.permute.xlu0 %661
    %665 = vset.pattern.permute.xlu0 0
    %666 = vperm.xlu0 %665, %v404
    %v667 = vpop.permute.xlu0 %666
    %670 = vset.pattern.permute.xlu0 0
    %671 = vperm.xlu0 %670, %v405
    %v672 = vpop.permute.xlu0 %671
    %675 = vset.pattern.permute.xlu0 0
    %676 = vperm.xlu0 %675, %v406
    %v677 = vpop.permute.xlu0 %676
    %680 = vset.pattern.permute.xlu0 0
    %681 = vperm.xlu0 %680, %v407
    %v682 = vpop.permute.xlu0 %681
    %685 = vset.pattern.permute.xlu0 0
    %686 = vperm.xlu0 %685, %v408
    %v687 = vpop.permute.xlu0 %686
    %690 = vset.pattern.permute.xlu0 0
    %691 = vperm.xlu0 %690, %v409
    %v692 = vpop.permute.xlu0 %691
    %695 = vset.pattern.permute.xlu0 0
    %696 = vperm.xlu0 %695, %v410
    %v697 = vpop.permute.xlu0 %696
    %700 = vset.pattern.permute.xlu0 0
    %701 = vperm.xlu0 %700, %v411
    %v702 = vpop.permute.xlu0 %701
    %705 = vset.pattern.permute.xlu0 0
    %706 = vperm.xlu0 %705, %v412
    %v707 = vpop.permute.xlu0 %706
    %710 = vset.pattern.permute.xlu0 0
    %711 = vperm.xlu0 %710, %v413
    %v712 = vpop.permute.xlu0 %711
    %715 = vset.pattern.permute.xlu0 0
    %716 = vperm.xlu0 %715, %v414
    %v717 = vpop.permute.xlu0 %716
    %720 = vset.pattern.permute.xlu0 0
    %721 = vperm.xlu0 %720, %v415
    %v722 = vpop.permute.xlu0 %721
    %725 = vset.pattern.permute.xlu0 0
    %726 = vperm.xlu0 %725, %v416
    %v727 = vpop.permute.xlu0 %726
    %730 = vset.pattern.permute.xlu0 0
    %731 = vperm.xlu0 %730, %v417
    %v732 = vpop.permute.xlu0 %731
    %735 = vset.pattern.permute.xlu0 0
    %736 = vperm.xlu0 %735, %v418
    %v737 = vpop.permute.xlu0 %736
    %740 = vset.pattern.permute.xlu0 0
    %741 = vperm.xlu0 %740, %v419
    %v742 = vpop.permute.xlu0 %741
    %745 = vset.pattern.permute.xlu0 0
    %746 = vperm.xlu0 %745, %v420
    %v747 = vpop.permute.xlu0 %746
    %750 = vset.pattern.permute.xlu0 0
    %751 = vperm.xlu0 %750, %v421
    %v752 = vpop.permute.xlu0 %751
    %755 = vset.pattern.permute.xlu0 0
    %756 = vperm.xlu0 %755, %v422
    %v757 = vpop.permute.xlu0 %756
    %760 = vset.pattern.permute.xlu0 0
    %761 = vperm.xlu0 %760, %v423
    %v762 = vpop.permute.xlu0 %761
    %765 = vset.pattern.permute.xlu0 0
    %766 = vperm.xlu0 %765, %v424
    %v767 = vpop.permute.xlu0 %766
    %770 = vset.pattern.permute.xlu0 0
    %771 = vperm.xlu0 %770, %v425
    %v772 = vpop.permute.xlu0 %771
    %775 = vset.pattern.permute.xlu0 0
    %776 = vperm.xlu0 %775, %v426
    %v777 = vpop.permute.xlu0 %776
    %780 = vset.pattern.permute.xlu0 0
    %781 = vperm.xlu0 %780, %v427
    %v782 = vpop.permute.xlu0 %781
    %785 = vset.pattern.permute.xlu0 0
    %786 = vperm.xlu0 %785, %v428
    %v787 = vpop.permute.xlu0 %786
    %790 = vset.pattern.permute.xlu0 0
    %791 = vperm.xlu0 %790, %v429
    %v792 = vpop.permute.xlu0 %791
    %795 = vset.pattern.permute.xlu0 0
    %796 = vperm.xlu0 %795, %v430
    %v797 = vpop.permute.xlu0 %796
    %800 = vset.pattern.permute.xlu0 0
    %801 = vperm.xlu0 %800, %v431
    %v802 = vpop.permute.xlu0 %801
    %805 = vset.pattern.permute.xlu0 0
    %806 = vperm.xlu0 %805, %v432
    %v807 = vpop.permute.xlu0 %806
    %810 = vset.pattern.permute.xlu0 0
    %811 = vperm.xlu0 %810, %v433
    %v812 = vpop.permute.xlu0 %811
    %815 = vset.pattern.permute.xlu0 0
    %816 = vperm.xlu0 %815, %v434
    %v817 = vpop.permute.xlu0 %816
    %820 = vset.pattern.permute.xlu0 0
    %821 = vperm.xlu0 %820, %v435
    %v822 = vpop.permute.xlu0 %821
    %825 = vset.pattern.permute.xlu0 0
    %826 = vperm.xlu0 %825, %v436
    %v827 = vpop.permute.xlu0 %826
    %830 = vset.pattern.permute.xlu0 0
    %831 = vperm.xlu0 %830, %v437
    %v832 = vpop.permute.xlu0 %831
    %835 = vset.pattern.permute.xlu0 0
    %836 = vperm.xlu0 %835, %v438
    %v837 = vpop.permute.xlu0 %836
    %840 = vset.pattern.permute.xlu0 0
    %841 = vperm.xlu0 %840, %v439
    %v842 = vpop.permute.xlu0 %841
    %845 = vset.pattern.permute.xlu0 0
    %846 = vperm.xlu0 %845, %v440
    %v847 = vpop.permute.xlu0 %846
    %850 = vset.pattern.permute.xlu0 0
    %851 = vperm.xlu0 %850, %v441
    %v852 = vpop.permute.xlu0 %851
    %855 = vset.pattern.permute.xlu0 0
    %856 = vperm.xlu0 %855, %v442
    %v857 = vpop.permute.xlu0 %856
    %860 = vset.pattern.permute.xlu0 0
    %861 = vperm.xlu0 %860, %v443
    %v862 = vpop.permute.xlu0 %861
    %865 = vset.pattern.permute.xlu0 0
    %866 = vperm.xlu0 %865, %v444
    %v867 = vpop.permute.xlu0 %866
    %870 = vset.pattern.permute.xlu0 0
    %871 = vperm.xlu0 %870, %v445
    %v872 = vpop.permute.xlu0 %871
    %875 = vset.pattern.permute.xlu0 0
    %876 = vperm.xlu0 %875, %v446
    %v877 = vpop.permute.xlu0 %876
    %880 = vset.pattern.permute.xlu0 0
    %881 = vperm.xlu0 %880, %v447
    %v882 = vpop.permute.xlu0 %881
    %885 = vset.pattern.permute.xlu0 0
    %886 = vperm.xlu0 %885, %v448
    %v887 = vpop.permute.xlu0 %886
    %890 = vset.pattern.permute.xlu0 0
    %891 = vperm.xlu0 %890, %v449
    %v892 = vpop.permute.xlu0 %891
    %895 = vset.pattern.permute.xlu0 0
    %896 = vperm.xlu0 %895, %v450
    %v897 = vpop.permute.xlu0 %896
    %900 = vset.pattern.permute.xlu0 0
    %901 = vperm.xlu0 %900, %v451
    %v902 = vpop.permute.xlu0 %901
    %905 = vset.pattern.permute.xlu0 0
    %906 = vperm.xlu0 %905, %v452
    %v907 = vpop.permute.xlu0 %906
    %910 = vset.pattern.permute.xlu0 0
    %911 = vperm.xlu0 %910, %v453
    %v912 = vpop.permute.xlu0 %911
    %915 = vset.pattern.permute.xlu0 0
    %916 = vperm.xlu0 %915, %v454
    %v917 = vpop.permute.xlu0 %916
    %920 = vset.pattern.permute.xlu0 0
    %921 = vperm.xlu0 %920, %v455
    %v922 = vpop.permute.xlu0 %921
    %925 = vset.pattern.permute.xlu0 0
    %926 = vperm.xlu0 %925, %v456
    %v927 = vpop.permute.xlu0 %926
    %930 = vset.pattern.permute.xlu0 0
    %931 = vperm.xlu0 %930, %v457
    %v932 = vpop.permute.xlu0 %931
    %935 = vset.pattern.permute.xlu0 0
    %936 = vperm.xlu0 %935, %v458
    %v937 = vpop.permute.xlu0 %936
    %940 = vset.pattern.permute.xlu0 0
    %941 = vperm.xlu0 %940, %v459
    %v942 = vpop.permute.xlu0 %941
    %945 = vset.pattern.permute.xlu0 0
    %946 = vperm.xlu0 %945, %v460
    %v947 = vpop.permute.xlu0 %946
    %950 = vset.pattern.permute.xlu0 0
    %951 = vperm.xlu0 %950, %v461
    %v952 = vpop.permute.xlu0 %951
    %955 = vset.pattern.permute.xlu0 0
    %956 = vperm.xlu0 %955, %v462
    %v957 = vpop.permute.xlu0 %956
    %960 = vset.pattern.permute.xlu0 0
    %961 = vperm.xlu0 %960, %v463
    %v962 = vpop.permute.xlu0 %961
    %965 = vset.pattern.permute.xlu0 0
    %966 = vperm.xlu0 %965, %v464
    %v967 = vpop.permute.xlu0 %966
    %970 = vset.pattern.permute.xlu0 0
    %971 = vperm.xlu0 %970, %v465
    %v972 = vpop.permute.xlu0 %971
    %975 = vset.pattern.permute.xlu0 0
    %976 = vperm.xlu0 %975, %v466
    %v977 = vpop.permute.xlu0 %976
    %980 = vset.pattern.permute.xlu0 0
    %981 = vperm.xlu0 %980, %v467
    %v982 = vpop.permute.xlu0 %981
    %985 = vset.pattern.permute.xlu0 0
    %986 = vperm.xlu0 %985, %v468
    %v987 = vpop.permute.xlu0 %986
    %990 = vset.pattern.permute.xlu0 0
    %991 = vperm.xlu0 %990, %v469
    %v992 = vpop.permute.xlu0 %991
    %995 = vset.pattern.permute.xlu0 0
    %996 = vperm.xlu0 %995, %v470
    %v997 = vpop.permute.xlu0 %996
    %1000 = vset.pattern.permute.xlu0 0
    %1001 = vperm.xlu0 %1000, %v471
    %v1002 = vpop.permute.xlu0 %1001
    %1005 = vset.pattern.permute.xlu0 0
    %1006 = vperm.xlu0 %1005, %v472
    %v1007 = vpop.permute.xlu0 %1006
    %1010 = vset.pattern.permute.xlu0 0
    %1011 = vperm.xlu0 %1010, %v473
    %v1012 = vpop.permute.xlu0 %1011
    %1015 = vset.pattern.permute.xlu0 0
    %1016 = vperm.xlu0 %1015, %v474
    %v1017 = vpop.permute.xlu0 %1016
    %1020 = vset.pattern.permute.xlu0 0
    %1021 = vperm.xlu0 %1020, %v475
    %v1022 = vpop.permute.xlu0 %1021
    %1025 = vset.pattern.permute.xlu0 0
    %1026 = vperm.xlu0 %1025, %v476
    %v1027 = vpop.permute.xlu0 %1026
    %1030 = vset.pattern.permute.xlu0 0
    %1031 = vperm.xlu0 %1030, %v477
    %v1032 = vpop.permute.xlu0 %1031
    %1035 = vset.pattern.permute.xlu0 0
    %1036 = vperm.xlu0 %1035, %v478
    %v1037 = vpop.permute.xlu0 %1036
    %1040 = vset.pattern.permute.xlu0 0
    %1041 = vperm.xlu0 %1040, %v479
    %v1042 = vpop.permute.xlu0 %1041
    %1045 = vset.pattern.permute.xlu0 0
    %1046 = vperm.xlu0 %1045, %v480
    %v1047 = vpop.permute.xlu0 %1046
    %1050 = vset.pattern.permute.xlu0 0
    %1051 = vperm.xlu0 %1050, %v481
    %v1052 = vpop.permute.xlu0 %1051
    %1055 = vset.pattern.permute.xlu0 0
    %1056 = vperm.xlu0 %1055, %v482
    %v1057 = vpop.permute.xlu0 %1056
    %1060 = vset.pattern.permute.xlu0 0
    %1061 = vperm.xlu0 %1060, %v483
    %v1062 = vpop.permute.xlu0 %1061
    %1065 = vset.pattern.permute.xlu0 0
    %1066 = vperm.xlu0 %1065, %v484
    %v1067 = vpop.permute.xlu0 %1066
    %1070 = vset.pattern.permute.xlu0 0
    %1071 = vperm.xlu0 %1070, %v485
    %v1072 = vpop.permute.xlu0 %1071
    %1075 = vset.pattern.permute.xlu0 0
    %1076 = vperm.xlu0 %1075, %v486
    %v1077 = vpop.permute.xlu0 %1076
    %1080 = vset.pattern.permute.xlu0 0
    %1081 = vperm.xlu0 %1080, %v487
    %v1082 = vpop.permute.xlu0 %1081
    %1085 = vset.pattern.permute.xlu0 0
    %1086 = vperm.xlu0 %1085, %v488
    %v1087 = vpop.permute.xlu0 %1086
    %1090 = vset.pattern.permute.xlu0 0
    %1091 = vperm.xlu0 %1090, %v489
    %v1092 = vpop.permute.xlu0 %1091
    %1095 = vset.pattern.permute.xlu0 0
    %1096 = vperm.xlu0 %1095, %v490
    %v1097 = vpop.permute.xlu0 %1096
    %1100 = vset.pattern.permute.xlu0 0
    %1101 = vperm.xlu0 %1100, %v491
    %v1102 = vpop.permute.xlu0 %1101
    %1105 = vset.pattern.permute.xlu0 0
    %1106 = vperm.xlu0 %1105, %v492
    %v1107 = vpop.permute.xlu0 %1106
    %1110 = vset.pattern.permute.xlu0 0
    %1111 = vperm.xlu0 %1110, %v493
    %v1112 = vpop.permute.xlu0 %1111
    %1115 = vset.pattern.permute.xlu0 0
    %1116 = vperm.xlu0 %1115, %v494
    %v1117 = vpop.permute.xlu0 %1116
    %1120 = vset.pattern.permute.xlu0 0
    %1121 = vperm.xlu0 %1120, %v495
    %v1122 = vpop.permute.xlu0 %1121
    %1125 = vset.pattern.permute.xlu0 0
    %1126 = vperm.xlu0 %1125, %v496
    %v1127 = vpop.permute.xlu0 %1126
    %1130 = vset.pattern.permute.xlu0 0
    %1131 = vperm.xlu0 %1130, %v497
    %v1132 = vpop.permute.xlu0 %1131
    %1135 = vset.pattern.permute.xlu0 0
    %1136 = vperm.xlu0 %1135, %v498
    %v1137 = vpop.permute.xlu0 %1136
    %1140 = vset.pattern.permute.xlu0 0
    %1141 = vperm.xlu0 %1140, %v499
    %v1142 = vpop.permute.xlu0 %1141
    %1145 = vset.pattern.permute.xlu0 0
    %1146 = vperm.xlu0 %1145, %v500
    %v1147 = vpop.permute.xlu0 %1146
    %1150 = vset.pattern.permute.xlu0 0
    %1151 = vperm.xlu0 %1150, %v501
    %v1152 = vpop.permute.xlu0 %1151
    %1155 = vset.pattern.permute.xlu0 0
    %1156 = vperm.xlu0 %1155, %v502
    %v1157 = vpop.permute.xlu0 %1156
    %1160 = vset.pattern.permute.xlu0 0
    %1161 = vperm.xlu0 %1160, %v503
    %v1162 = vpop.permute.xlu0 %1161
    %1165 = vset.pattern.permute.xlu0 0
    %1166 = vperm.xlu0 %1165, %v504
    %v1167 = vpop.permute.xlu0 %1166
    %1170 = vset.pattern.permute.xlu0 0
    %1171 = vperm.xlu0 %1170, %v505
    %v1172 = vpop.permute.xlu0 %1171
    %1175 = vset.pattern.permute.xlu0 0
    %1176 = vperm.xlu0 %1175, %v506
    %v1177 = vpop.permute.xlu0 %1176
    %1180 = vset.pattern.permute.xlu0 0
    %1181 = vperm.xlu0 %1180, %v507
    %v1182 = vpop.permute.xlu0 %1181
    %1185 = vset.pattern.permute.xlu0 0
    %1186 = vperm.xlu0 %1185, %v508
    %v1187 = vpop.permute.xlu0 %1186
    %1190 = vset.pattern.permute.xlu0 0
    %1191 = vperm.xlu0 %1190, %v509
    %v1192 = vpop.permute.xlu0 %1191
    %1195 = vset.pattern.permute.xlu0 0
    %1196 = vperm.xlu0 %1195, %v510
    %v1197 = vpop.permute.xlu0 %1196
    %1200 = vset.pattern.permute.xlu0 0
    %1201 = vperm.xlu0 %1200, %v511
    %v1202 = vpop.permute.xlu0 %1201
    %1205 = vset.pattern.permute.xlu0 0
    %1206 = vperm.xlu0 %1205, %v512
    %v1207 = vpop.permute.xlu0 %1206
    %1210 = vset.pattern.permute.xlu0 0
    %1211 = vperm.xlu0 %1210, %v513
    %v1212 = vpop.permute.xlu0 %1211
    %1215 = vset.pattern.permute.xlu0 0
    %1216 = vperm.xlu0 %1215, %v514
    %v1217 = vpop.permute.xlu0 %1216
    %1220 = vset.pattern.permute.xlu0 0
    %1221 = vperm.xlu0 %1220, %v515
    %v1222 = vpop.permute.xlu0 %1221
    %1225 = vset.pattern.permute.xlu0 0
    %1226 = vperm.xlu0 %1225, %v516
    %v1227 = vpop.permute.xlu0 %1226
    %1230 = vset.pattern.permute.xlu0 0
    %1231 = vperm.xlu0 %1230, %v517
    %v1232 = vpop.permute.xlu0 %1231
    %1235 = vset.pattern.permute.xlu0 0
    %1236 = vperm.xlu0 %1235, %v518
    %v1237 = vpop.permute.xlu0 %1236
    %1240 = vset.pattern.permute.xlu0 0
    %1241 = vperm.xlu0 %1240, %v519
    %v1242 = vpop.permute.xlu0 %1241
    %1245 = vset.pattern.permute.xlu0 0
    %1246 = vperm.xlu0 %1245, %v520
    %v1247 = vpop.permute.xlu0 %1246
    %1250 = vset.pattern.permute.xlu0 0
    %1251 = vperm.xlu0 %1250, %v521
    %v1252 = vpop.permute.xlu0 %1251
    %1255 = vset.pattern.permute.xlu0 0
    %1256 = vperm.xlu0 %1255, %v522
    %v1257 = vpop.permute.xlu0 %1256
    %1260 = vset.pattern.permute.xlu0 0
    %1261 = vperm.xlu0 %1260, %v523
    %v1262 = vpop.permute.xlu0 %1261
    %1265 = vset.pattern.permute.xlu0 0
    %1266 = vperm.xlu0 %1265, %v524
    %v1267 = vpop.permute.xlu0 %1266
    %1270 = vset.pattern.permute.xlu0 0
    %1271 = vperm.xlu0 %1270, %v525
    %v1272 = vpop.permute.xlu0 %1271
    %1275 = vset.pattern.permute.xlu0 0
    %1276 = vperm.xlu0 %1275, %v526
    %v1277 = vpop.permute.xlu0 %1276
    %1280 = vset.pattern.permute.xlu0 0
    %1281 = vperm.xlu0 %1280, %v527
    %v1282 = vpop.permute.xlu0 %1281
    %1285 = vset.pattern.permute.xlu0 0
    %1286 = vperm.xlu0 %1285, %v528
    %v1287 = vpop.permute.xlu0 %1286
    %1290 = vset.pattern.permute.xlu0 0
    %1291 = vperm.xlu0 %1290, %v529
    %v1292 = vpop.permute.xlu0 %1291
    %1295 = vset.pattern.permute.xlu0 0
    %1296 = vperm.xlu0 %1295, %v530
    %v1297 = vpop.permute.xlu0 %1296
    %1300 = vset.pattern.permute.xlu0 0
    %1301 = vperm.xlu0 %1300, %v531
    %v1302 = vpop.permute.xlu0 %1301
    %1305 = vset.pattern.permute.xlu0 0
    %1306 = vperm.xlu0 %1305, %v532
    %v1307 = vpop.permute.xlu0 %1306
    %1310 = vset.pattern.permute.xlu0 0
    %1311 = vperm.xlu0 %1310, %v533
    %v1312 = vpop.permute.xlu0 %1311
    %1315 = vset.pattern.permute.xlu0 0
    %1316 = vperm.xlu0 %1315, %v534
    %v1317 = vpop.permute.xlu0 %1316
    %1320 = vset.pattern.permute.xlu0 0
    %1321 = vperm.xlu0 %1320, %v535
    %v1322 = vpop.permute.xlu0 %1321
    %1325 = vset.pattern.permute.xlu0 0
    %1326 = vperm.xlu0 %1325, %v536
    %v1327 = vpop.permute.xlu0 %1326
    %1330 = vset.pattern.permute.xlu0 0
    %1331 = vperm.xlu0 %1330, %v537
    %v1332 = vpop.permute.xlu0 %1331
    %1335 = vset.pattern.permute.xlu0 0
    %1336 = vperm.xlu0 %1335, %v538
    %v1337 = vpop.permute.xlu0 %1336
    %1340 = vset.pattern.permute.xlu0 0
    %1341 = vperm.xlu0 %1340, %v539
    %v1342 = vpop.permute.xlu0 %1341
    %1345 = vset.pattern.permute.xlu0 0
    %1346 = vperm.xlu0 %1345, %v540
    %v1347 = vpop.permute.xlu0 %1346
    %1350 = vset.pattern.permute.xlu0 0
    %1351 = vperm.xlu0 %1350, %v541
    %v1352 = vpop.permute.xlu0 %1351
    %1355 = vset.pattern.permute.xlu0 0
    %1356 = vperm.xlu0 %1355, %v542
    %v1357 = vpop.permute.xlu0 %1356
    %1360 = vset.pattern.permute.xlu0 0
    %1361 = vperm.xlu0 %1360, %v543
    %v1362 = vpop.permute.xlu0 %1361
    %1365 = vset.pattern.permute.xlu0 0
    %1366 = vperm.xlu0 %1365, %v544
    %v1367 = vpop.permute.xlu0 %1366
    %1370 = vset.pattern.permute.xlu0 0
    %1371 = vperm.xlu0 %1370, %v545
    %v1372 = vpop.permute.xlu0 %1371
    %1375 = vset.pattern.permute.xlu0 0
    %1376 = vperm.xlu0 %1375, %v546
    %v1377 = vpop.permute.xlu0 %1376
    %1380 = vset.pattern.permute.xlu0 0
    %1381 = vperm.xlu0 %1380, %v547
    %v1382 = vpop.permute.xlu0 %1381
    %1385 = vset.pattern.permute.xlu0 0
    %1386 = vperm.xlu0 %1385, %v548
    %v1387 = vpop.permute.xlu0 %1386
    %1390 = vset.pattern.permute.xlu0 0
    %1391 = vperm.xlu0 %1390, %v549
    %v1392 = vpop.permute.xlu0 %1391
    %1395 = vset.pattern.permute.xlu0 0
    %1396 = vperm.xlu0 %1395, %v550
    %v1397 = vpop.permute.xlu0 %1396
    %1400 = vset.pattern.permute.xlu0 0
    %1401 = vperm.xlu0 %1400, %v551
    %v1402 = vpop.permute.xlu0 %1401
    %1405 = vset.pattern.permute.xlu0 0
    %1406 = vperm.xlu0 %1405, %v552
    %v1407 = vpop.permute.xlu0 %1406
    %1410 = vset.pattern.permute.xlu0 0
    %1411 = vperm.xlu0 %1410, %v553
    %v1412 = vpop.permute.xlu0 %1411
    %1415 = vset.pattern.permute.xlu0 0
    %1416 = vperm.xlu0 %1415, %v554
    %v1417 = vpop.permute.xlu0 %1416
    %1420 = vset.pattern.permute.xlu0 0
    %1421 = vperm.xlu0 %1420, %v555
    %v1422 = vpop.permute.xlu0 %1421
    %1425 = vset.pattern.permute.xlu0 0
    %1426 = vperm.xlu0 %1425, %v556
    %v1427 = vpop.permute.xlu0 %1426
    %1430 = vset.pattern.permute.xlu0 0
    %1431 = vperm.xlu0 %1430, %v557
    %v1432 = vpop.permute.xlu0 %1431
    %1435 = vset.pattern.permute.xlu0 0
    %1436 = vperm.xlu0 %1435, %v558
    %v1437 = vpop.permute.xlu0 %1436
    %1440 = vset.pattern.permute.xlu0 0
    %1441 = vperm.xlu0 %1440, %v559
    %v1442 = vpop.permute.xlu0 %1441
    %1445 = vset.pattern.permute.xlu0 0
    %1446 = vperm.xlu0 %1445, %v560
    %v1447 = vpop.permute.xlu0 %1446
    %1450 = vset.pattern.permute.xlu0 0
    %1451 = vperm.xlu0 %1450, %v561
    %v1452 = vpop.permute.xlu0 %1451
    %1455 = vset.pattern.permute.xlu0 0
    %1456 = vperm.xlu0 %1455, %v562
    %v1457 = vpop.permute.xlu0 %1456
    %1460 = vset.pattern.permute.xlu0 0
    %1461 = vperm.xlu0 %1460, %v563
    %v1462 = vpop.permute.xlu0 %1461
    %1465 = vset.pattern.permute.xlu0 0
    %1466 = vperm.xlu0 %1465, %v564
    %v1467 = vpop.permute.xlu0 %1466
    %1470 = vset.pattern.permute.xlu0 0
    %1471 = vperm.xlu0 %1470, %v565
    %v1472 = vpop.permute.xlu0 %1471
    %1475 = vset.pattern.permute.xlu0 0
    %1476 = vperm.xlu0 %1475, %v566
    %v1477 = vpop.permute.xlu0 %1476
    %1480 = vset.pattern.permute.xlu0 0
    %1481 = vperm.xlu0 %1480, %v567
    %v1482 = vpop.permute.xlu0 %1481
    %1485 = vset.pattern.permute.xlu0 0
    %1486 = vperm.xlu0 %1485, %v568
    %v1487 = vpop.permute.xlu0 %1486
    %1490 = vset.pattern.permute.xlu0 0
    %1491 = vperm.xlu0 %1490, %v569
    %v1492 = vpop.permute.xlu0 %1491
    %1495 = vset.pattern.permute.xlu0 0
    %1496 = vperm.xlu0 %1495, %v570
    %v1497 = vpop.permute.xlu0 %1496
    %1500 = vset.pattern.permute.xlu0 0
    %1501 = vperm.xlu0 %1500, %v571
    %v1502 = vpop.permute.xlu0 %1501
    %1505 = vset.pattern.permute.xlu0 0
    %1506 = vperm.xlu0 %1505, %v572
    %v1507 = vpop.permute.xlu0 %1506
    %1510 = vset.pattern.permute.xlu0 0
    %1511 = vperm.xlu0 %1510, %v573
    %v1512 = vpop.permute.xlu0 %1511
    %1515 = vset.pattern.permute.xlu0 0
    %1516 = vperm.xlu0 %1515, %v574
    %v1517 = vpop.permute.xlu0 %1516
    %1520 = vset.pattern.permute.xlu0 0
    %1521 = vperm.xlu0 %1520, %v575
    %v1522 = vpop.permute.xlu0 %1521
    %1525 = vset.pattern.permute.xlu0 0
    %1526 = vperm.xlu0 %1525, %v576
    %v1527 = vpop.permute.xlu0 %1526
    %1530 = vset.pattern.permute.xlu0 0
    %1531 = vperm.xlu0 %1530, %v577
    %v1532 = vpop.permute.xlu0 %1531
    %1535 = vset.pattern.permute.xlu0 0
    %1536 = vperm.xlu0 %1535, %v578
    %v1537 = vpop.permute.xlu0 %1536
    %v1540 = vsel %vm141, %v195, 0
    %v1543 = vsel %vm141, %v196, 0
    %v1546 = vsel %vm141, %v197, 0
    %v1549 = vsel %vm141, %v198, 0
    %v1552 = vsel %vm141, %v199, 0
    %v1555 = vsel %vm141, %v200, 0
    %v1558 = vsel %vm141, %v201, 0
    %v1561 = vsel %vm141, %v202, 0
    %v1564 = vsel %vm141, %v203, 0
    %v1567 = vsel %vm141, %v204, 0
    %v1570 = vsel %vm141, %v205, 0
    %v1573 = vsel %vm141, %v206, 0
    %v1576 = vsel %vm141, %v207, 0
    %v1579 = vsel %vm141, %v208, 0
    %v1582 = vsel %vm141, %v209, 0
    %v1585 = vsel %vm141, %v210, 0
    %v1588 = vsel %vm141, %v211, 0
    %v1591 = vsel %vm141, %v212, 0
    %v1594 = vsel %vm141, %v213, 0
    %v1597 = vsel %vm141, %v214, 0
    %v1600 = vsel %vm141, %v215, 0
    %v1603 = vsel %vm141, %v216, 0
    %v1606 = vsel %vm141, %v217, 0
    %v1609 = vsel %vm141, %v218, 0
    %v1612 = vsel %vm141, %v219, 0
    %v1615 = vsel %vm141, %v220, 0
    %v1618 = vsel %vm141, %v221, 0
    %v1621 = vsel %vm141, %v222, 0
    %v1624 = vsel %vm141, %v223, 0
    %v1627 = vsel %vm141, %v224, 0
    %v1630 = vsel %vm141, %v225, 0
    %v1633 = vsel %vm141, %v226, 0
    %v1636 = vsel %vm141, %v227, 0
    %v1639 = vsel %vm141, %v228, 0
    %v1642 = vsel %vm141, %v229, 0
    %v1645 = vsel %vm141, %v230, 0
    %v1648 = vsel %vm141, %v231, 0
    %v1651 = vsel %vm141, %v232, 0
    %v1654 = vsel %vm141, %v233, 0
    %v1657 = vsel %vm141, %v234, 0
    %v1660 = vsel %vm141, %v235, 0
    %v1663 = vsel %vm141, %v236, 0
    %v1666 = vsel %vm141, %v237, 0
    %v1669 = vsel %vm141, %v238, 0
    %v1672 = vsel %vm141, %v239, 0
    %v1675 = vsel %vm141, %v240, 0
    %v1678 = vsel %vm141, %v241, 0
    %v1681 = vsel %vm141, %v242, 0
    %v1684 = vsel %vm141, %v243, 0
    %v1687 = vsel %vm141, %v244, 0
    %v1690 = vsel %vm141, %v245, 0
    %v1693 = vsel %vm141, %v246, 0
    %v1696 = vsel %vm141, %v247, 0
    %v1699 = vsel %vm141, %v248, 0
    %v1702 = vsel %vm141, %v249, 0
    %v1705 = vsel %vm141, %v250, 0
    %v1708 = vsel %vm141, %v251, 0
    %v1711 = vsel %vm141, %v252, 0
    %v1714 = vsel %vm141, %v253, 0
    %v1717 = vsel %vm141, %v254, 0
    %v1720 = vsel %vm141, %v255, 0
    %v1723 = vsel %vm141, %v256, 0
    %v1726 = vsel %vm141, %v257, 0
    %v1729 = vsel %vm141, %v258, 0
    %v1732 = vsel %vm141, %v259, 0
    %v1735 = vsel %vm141, %v260, 0
    %v1738 = vsel %vm141, %v261, 0
    %v1741 = vsel %vm141, %v262, 0
    %v1744 = vsel %vm141, %v263, 0
    %v1747 = vsel %vm141, %v264, 0
    %v1750 = vsel %vm141, %v265, 0
    %v1753 = vsel %vm141, %v266, 0
    %v1756 = vsel %vm141, %v267, 0
    %v1759 = vsel %vm141, %v268, 0
    %v1762 = vsel %vm141, %v269, 0
    %v1765 = vsel %vm141, %v270, 0
    %v1768 = vsel %vm141, %v271, 0
    %v1771 = vsel %vm141, %v272, 0
    %v1774 = vsel %vm141, %v273, 0
    %v1777 = vsel %vm141, %v274, 0
    %v1780 = vsel %vm141, %v275, 0
    %v1783 = vsel %vm141, %v276, 0
    %v1786 = vsel %vm141, %v277, 0
    %v1789 = vsel %vm141, %v278, 0
    %v1792 = vsel %vm141, %v279, 0
    %v1795 = vsel %vm141, %v280, 0
    %v1798 = vsel %vm141, %v281, 0
    %v1801 = vsel %vm141, %v282, 0
    %v1804 = vsel %vm141, %v283, 0
    %v1807 = vsel %vm141, %v284, 0
    %v1810 = vsel %vm141, %v285, 0
    %v1813 = vsel %vm141, %v286, 0
    %v1816 = vsel %vm141, %v287, 0
    %v1819 = vsel %vm141, %v288, 0
    %v1822 = vsel %vm141, %v289, 0
    %v1825 = vsel %vm141, %v290, 0
    %v1828 = vsel %vm141, %v291, 0
    %v1831 = vsel %vm141, %v292, 0
    %v1834 = vsel %vm141, %v293, 0
    %v1837 = vsel %vm141, %v294, 0
    %v1840 = vsel %vm141, %v295, 0
    %v1843 = vsel %vm141, %v296, 0
    %v1846 = vsel %vm141, %v297, 0
    %v1849 = vsel %vm141, %v298, 0
    %v1852 = vsel %vm141, %v299, 0
    %v1855 = vsel %vm141, %v300, 0
    %v1858 = vsel %vm141, %v301, 0
    %v1861 = vsel %vm141, %v302, 0
    %v1864 = vsel %vm141, %v303, 0
    %v1867 = vsel %vm141, %v304, 0
    %v1870 = vsel %vm141, %v305, 0
    %v1873 = vsel %vm141, %v306, 0
    %v1876 = vsel %vm141, %v307, 0
    %v1879 = vsel %vm141, %v308, 0
    %v1882 = vsel %vm141, %v309, 0
    %v1885 = vsel %vm141, %v310, 0
    %v1888 = vsel %vm141, %v311, 0
    %v1891 = vsel %vm141, %v312, 0
    %v1894 = vsel %vm141, %v313, 0
    %v1897 = vsel %vm141, %v314, 0
    %v1900 = vsel %vm141, %v315, 0
    %v1903 = vsel %vm141, %v316, 0
    %v1906 = vsel %vm141, %v317, 0
    %v1909 = vsel %vm141, %v318, 0
    %v1912 = vsel %vm141, %v319, 0
    %v1915 = vsel %vm141, %v320, 0
    %v1918 = vsel %vm141, %v321, 0
    %v1921 = vsel %vm141, %v322, 0
    %v1924 = vsel %vm141, %v323, 0
    %v1927 = vsel %vm141, %v324, 0
    %v1930 = vsel %vm141, %v325, 0
    %v1933 = vsel %vm141, %v326, 0
    %v1936 = vsel %vm141, %v327, 0
    %v1939 = vsel %vm141, %v328, 0
    %v1942 = vsel %vm141, %v329, 0
    %v1945 = vsel %vm141, %v330, 0
    %v1948 = vsel %vm141, %v331, 0
    %v1951 = vsel %vm141, %v332, 0
    %v1954 = vsel %vm141, %v333, 0
    %v1957 = vsel %vm141, %v334, 0
    %v1960 = vsel %vm141, %v335, 0
    %v1963 = vsel %vm141, %v336, 0
    %v1966 = vsel %vm141, %v337, 0
    %v1969 = vsel %vm141, %v338, 0
    %v1972 = vsel %vm141, %v339, 0
    %v1975 = vsel %vm141, %v340, 0
    %v1978 = vsel %vm141, %v341, 0
    %v1981 = vsel %vm141, %v342, 0
    %v1984 = vsel %vm141, %v343, 0
    %v1987 = vsel %vm141, %v344, 0
    %v1990 = vsel %vm141, %v345, 0
    %v1993 = vsel %vm141, %v346, 0
    %v1996 = vsel %vm141, %v347, 0
    %v1999 = vsel %vm141, %v348, 0
    %v2002 = vsel %vm141, %v349, 0
    %v2005 = vsel %vm141, %v350, 0
    %v2008 = vsel %vm141, %v351, 0
    %v2011 = vsel %vm141, %v352, 0
    %v2014 = vsel %vm141, %v353, 0
    %v2017 = vsel %vm141, %v354, 0
    %v2020 = vsel %vm141, %v355, 0
    %v2023 = vsel %vm141, %v356, 0
    %v2026 = vsel %vm141, %v357, 0
    %v2029 = vsel %vm141, %v358, 0
    %v2032 = vsel %vm141, %v359, 0
    %v2035 = vsel %vm141, %v360, 0
    %v2038 = vsel %vm141, %v361, 0
    %v2041 = vsel %vm141, %v362, 0
    %v2044 = vsel %vm141, %v363, 0
    %v2047 = vsel %vm141, %v364, 0
    %v2050 = vsel %vm141, %v365, 0
    %v2053 = vsel %vm141, %v366, 0
    %v2056 = vsel %vm141, %v367, 0
    %v2059 = vsel %vm141, %v368, 0
    %v2062 = vsel %vm141, %v369, 0
    %v2065 = vsel %vm141, %v370, 0
    %v2068 = vsel %vm141, %v371, 0
    %v2071 = vsel %vm141, %v372, 0
    %v2074 = vsel %vm141, %v373, 0
    %v2077 = vsel %vm141, %v374, 0
    %v2080 = vsel %vm141, %v375, 0
    %v2083 = vsel %vm141, %v376, 0
    %v2086 = vsel %vm141, %v377, 0
    %v2089 = vsel %vm141, %v378, 0
    %v2092 = vsel %vm141, %v379, 0
    %v2095 = vsel %vm141, %v380, 0
    %v2098 = vsel %vm141, %v381, 0
    %v2101 = vsel %vm141, %v382, 0
    %v2104 = vsel %vm141, %v383, 0
    %v2107 = vsel %vm141, %v384, 0
    %v2110 = vsel %vm141, %v385, 0
    %v2113 = vsel %vm141, %v386, 0
    %2115 = vmatpush.msra.mxu0 0.0
    %2116 = vmatpush.msra.mxu0 0.0
    %2117 = vmatpush.msra.mxu0 0.0
    %2118 = vmatpush.msra.mxu0 0.0
    %2119 = vmatpush.msra.mxu0 0.0
    %2120 = vmatpush.msra.mxu0 0.0
    %2121 = vmatpush.msra.mxu0 0.0
    %2122 = vmatpush.msra.mxu0 0.0
    %2123 = vmatpush.msra.mxu0 0.0
    %2124 = vmatpush.msra.mxu0 0.0
    %2125 = vmatpush.msra.mxu0 0.0
    %2126 = vmatpush.msra.mxu0 0.0
    %2127 = vmatpush.msra.mxu0 %v194
    %2128 = vmatpush.msra.mxu0 %v193
    %2129 = vmatpush.msra.mxu0 %v192
    %2130 = vmatpush.msra.mxu0 %v191
    %2131 = vmatmul.f32.gmra.mxu0 %v1540
    %v2132 = vpop.f32.mrf.mxu0
    %v2133 = vadd.f32 %v582, %v2132
    %2134 = vmatmul.f32.gmra.mxu0 %v1543
    %v2135 = vpop.f32.mrf.mxu0
    %v2136 = vadd.f32 %v587, %v2135
    %2137 = vmatmul.f32.gmra.mxu0 %v1546
    %v2138 = vpop.f32.mrf.mxu0
    %v2139 = vadd.f32 %v592, %v2138
    %2140 = vmatmul.f32.gmra.mxu0 %v1549
    %v2141 = vpop.f32.mrf.mxu0
    %v2142 = vadd.f32 %v597, %v2141
    %2143 = vmatmul.f32.gmra.mxu0 %v1552
    %v2144 = vpop.f32.mrf.mxu0
    %v2145 = vadd.f32 %v602, %v2144
    %2146 = vmatmul.f32.gmra.mxu0 %v1555
    %v2147 = vpop.f32.mrf.mxu0
    %v2148 = vadd.f32 %v607, %v2147
    %2149 = vmatmul.f32.gmra.mxu0 %v1558
    %v2150 = vpop.f32.mrf.mxu0
    %v2151 = vadd.f32 %v612, %v2150
    %2152 = vmatmul.f32.gmra.mxu0 %v1561
    %v2153 = vpop.f32.mrf.mxu0
    %v2154 = vadd.f32 %v617, %v2153
    %2155 = vmatmul.f32.gmra.mxu0 %v1564
    %v2156 = vpop.f32.mrf.mxu0
    %v2157 = vadd.f32 %v622, %v2156
    %2158 = vmatmul.f32.gmra.mxu0 %v1567
    %v2159 = vpop.f32.mrf.mxu0
    %v2160 = vadd.f32 %v627, %v2159
    %2161 = vmatmul.f32.gmra.mxu0 %v1570
    %v2162 = vpop.f32.mrf.mxu0
    %v2163 = vadd.f32 %v632, %v2162
    %2164 = vmatmul.f32.gmra.mxu0 %v1573
    %v2165 = vpop.f32.mrf.mxu0
    %v2166 = vadd.f32 %v637, %v2165
    %2167 = vmatmul.f32.gmra.mxu0 %v1576
    %v2168 = vpop.f32.mrf.mxu0
    %v2169 = vadd.f32 %v642, %v2168
    %2170 = vmatmul.f32.gmra.mxu0 %v1579
    %v2171 = vpop.f32.mrf.mxu0
    %v2172 = vadd.f32 %v647, %v2171
    %2173 = vmatmul.f32.gmra.mxu0 %v1582
    %v2174 = vpop.f32.mrf.mxu0
    %v2175 = vadd.f32 %v652, %v2174
    %2176 = vmatmul.f32.gmra.mxu0 %v1585
    %v2177 = vpop.f32.mrf.mxu0
    %v2178 = vadd.f32 %v657, %v2177
    %2179 = vmatmul.f32.gmra.mxu0 %v1588
    %v2180 = vpop.f32.mrf.mxu0
    %v2181 = vadd.f32 %v662, %v2180
    %2182 = vmatmul.f32.gmra.mxu0 %v1591
    %v2183 = vpop.f32.mrf.mxu0
    %v2184 = vadd.f32 %v667, %v2183
    %2185 = vmatmul.f32.gmra.mxu0 %v1594
    %v2186 = vpop.f32.mrf.mxu0
    %v2187 = vadd.f32 %v672, %v2186
    %2188 = vmatmul.f32.gmra.mxu0 %v1597
    %v2189 = vpop.f32.mrf.mxu0
    %v2190 = vadd.f32 %v677, %v2189
    %2191 = vmatmul.f32.gmra.mxu0 %v1600
    %v2192 = vpop.f32.mrf.mxu0
    %v2193 = vadd.f32 %v682, %v2192
    %2194 = vmatmul.f32.gmra.mxu0 %v1603
    %v2195 = vpop.f32.mrf.mxu0
    %v2196 = vadd.f32 %v687, %v2195
    %2197 = vmatmul.f32.gmra.mxu0 %v1606
    %v2198 = vpop.f32.mrf.mxu0
    %v2199 = vadd.f32 %v692, %v2198
    %2200 = vmatmul.f32.gmra.mxu0 %v1609
    %v2201 = vpop.f32.mrf.mxu0
    %v2202 = vadd.f32 %v697, %v2201
    %2203 = vmatmul.f32.gmra.mxu0 %v1612
    %v2204 = vpop.f32.mrf.mxu0
    %v2205 = vadd.f32 %v702, %v2204
    %2206 = vmatmul.f32.gmra.mxu0 %v1615
    %v2207 = vpop.f32.mrf.mxu0
    %v2208 = vadd.f32 %v707, %v2207
    %2209 = vmatmul.f32.gmra.mxu0 %v1618
    %v2210 = vpop.f32.mrf.mxu0
    %v2211 = vadd.f32 %v712, %v2210
    %2212 = vmatmul.f32.gmra.mxu0 %v1621
    %v2213 = vpop.f32.mrf.mxu0
    %v2214 = vadd.f32 %v717, %v2213
    %2215 = vmatmul.f32.gmra.mxu0 %v1624
    %v2216 = vpop.f32.mrf.mxu0
    %v2217 = vadd.f32 %v722, %v2216
    %2218 = vmatmul.f32.gmra.mxu0 %v1627
    %v2219 = vpop.f32.mrf.mxu0
    %v2220 = vadd.f32 %v727, %v2219
    %2221 = vmatmul.f32.gmra.mxu0 %v1630
    %v2222 = vpop.f32.mrf.mxu0
    %v2223 = vadd.f32 %v732, %v2222
    %2224 = vmatmul.f32.gmra.mxu0 %v1633
    %v2225 = vpop.f32.mrf.mxu0
    %v2226 = vadd.f32 %v737, %v2225
    %2227 = vmatmul.f32.gmra.mxu0 %v1636
    %v2228 = vpop.f32.mrf.mxu0
    %v2229 = vadd.f32 %v742, %v2228
    %2230 = vmatmul.f32.gmra.mxu0 %v1639
    %v2231 = vpop.f32.mrf.mxu0
    %v2232 = vadd.f32 %v747, %v2231
    %2233 = vmatmul.f32.gmra.mxu0 %v1642
    %v2234 = vpop.f32.mrf.mxu0
    %v2235 = vadd.f32 %v752, %v2234
    %2236 = vmatmul.f32.gmra.mxu0 %v1645
    %v2237 = vpop.f32.mrf.mxu0
    %v2238 = vadd.f32 %v757, %v2237
    %2239 = vmatmul.f32.gmra.mxu0 %v1648
    %v2240 = vpop.f32.mrf.mxu0
    %v2241 = vadd.f32 %v762, %v2240
    %2242 = vmatmul.f32.gmra.mxu0 %v1651
    %v2243 = vpop.f32.mrf.mxu0
    %v2244 = vadd.f32 %v767, %v2243
    %2245 = vmatmul.f32.gmra.mxu0 %v1654
    %v2246 = vpop.f32.mrf.mxu0
    %v2247 = vadd.f32 %v772, %v2246
    %2248 = vmatmul.f32.gmra.mxu0 %v1657
    %v2249 = vpop.f32.mrf.mxu0
    %v2250 = vadd.f32 %v777, %v2249
    %2251 = vmatmul.f32.gmra.mxu0 %v1660
    %v2252 = vpop.f32.mrf.mxu0
    %v2253 = vadd.f32 %v782, %v2252
    %2254 = vmatmul.f32.gmra.mxu0 %v1663
    %v2255 = vpop.f32.mrf.mxu0
    %v2256 = vadd.f32 %v787, %v2255
    %2257 = vmatmul.f32.gmra.mxu0 %v1666
    %v2258 = vpop.f32.mrf.mxu0
    %v2259 = vadd.f32 %v792, %v2258
    %2260 = vmatmul.f32.gmra.mxu0 %v1669
    %v2261 = vpop.f32.mrf.mxu0
    %v2262 = vadd.f32 %v797, %v2261
    %2263 = vmatmul.f32.gmra.mxu0 %v1672
    %v2264 = vpop.f32.mrf.mxu0
    %v2265 = vadd.f32 %v802, %v2264
    %2266 = vmatmul.f32.gmra.mxu0 %v1675
    %v2267 = vpop.f32.mrf.mxu0
    %v2268 = vadd.f32 %v807, %v2267
    %2269 = vmatmul.f32.gmra.mxu0 %v1678
    %v2270 = vpop.f32.mrf.mxu0
    %v2271 = vadd.f32 %v812, %v2270
    %2272 = vmatmul.f32.gmra.mxu0 %v1681
    %v2273 = vpop.f32.mrf.mxu0
    %v2274 = vadd.f32 %v817, %v2273
    %2275 = vmatmul.f32.gmra.mxu0 %v1684
    %v2276 = vpop.f32.mrf.mxu0
    %v2277 = vadd.f32 %v822, %v2276
    %2278 = vmatmul.f32.gmra.mxu0 %v1687
    %v2279 = vpop.f32.mrf.mxu0
    %v2280 = vadd.f32 %v827, %v2279
    %2281 = vmatmul.f32.gmra.mxu0 %v1690
    %v2282 = vpop.f32.mrf.mxu0
    %v2283 = vadd.f32 %v832, %v2282
    %2284 = vmatmul.f32.gmra.mxu0 %v1693
    %v2285 = vpop.f32.mrf.mxu0
    %v2286 = vadd.f32 %v837, %v2285
    %2287 = vmatmul.f32.gmra.mxu0 %v1696
    %v2288 = vpop.f32.mrf.mxu0
    %v2289 = vadd.f32 %v842, %v2288
    %2290 = vmatmul.f32.gmra.mxu0 %v1699
    %v2291 = vpop.f32.mrf.mxu0
    %v2292 = vadd.f32 %v847, %v2291
    %2293 = vmatmul.f32.gmra.mxu0 %v1702
    %v2294 = vpop.f32.mrf.mxu0
    %v2295 = vadd.f32 %v852, %v2294
    %2296 = vmatmul.f32.gmra.mxu0 %v1705
    %v2297 = vpop.f32.mrf.mxu0
    %v2298 = vadd.f32 %v857, %v2297
    %2299 = vmatmul.f32.gmra.mxu0 %v1708
    %v2300 = vpop.f32.mrf.mxu0
    %v2301 = vadd.f32 %v862, %v2300
    %2302 = vmatmul.f32.gmra.mxu0 %v1711
    %v2303 = vpop.f32.mrf.mxu0
    %v2304 = vadd.f32 %v867, %v2303
    %2305 = vmatmul.f32.gmra.mxu0 %v1714
    %v2306 = vpop.f32.mrf.mxu0
    %v2307 = vadd.f32 %v872, %v2306
    %2308 = vmatmul.f32.gmra.mxu0 %v1717
    %v2309 = vpop.f32.mrf.mxu0
    %v2310 = vadd.f32 %v877, %v2309
    %2311 = vmatmul.f32.gmra.mxu0 %v1720
    %v2312 = vpop.f32.mrf.mxu0
    %v2313 = vadd.f32 %v882, %v2312
    %2314 = vmatmul.f32.gmra.mxu0 %v1723
    %v2315 = vpop.f32.mrf.mxu0
    %v2316 = vadd.f32 %v887, %v2315
    %2317 = vmatmul.f32.gmra.mxu0 %v1726
    %v2318 = vpop.f32.mrf.mxu0
    %v2319 = vadd.f32 %v892, %v2318
    %2320 = vmatmul.f32.gmra.mxu0 %v1729
    %v2321 = vpop.f32.mrf.mxu0
    %v2322 = vadd.f32 %v897, %v2321
    %2323 = vmatmul.f32.gmra.mxu0 %v1732
    %v2324 = vpop.f32.mrf.mxu0
    %v2325 = vadd.f32 %v902, %v2324
    %2326 = vmatmul.f32.gmra.mxu0 %v1735
    %v2327 = vpop.f32.mrf.mxu0
    %v2328 = vadd.f32 %v907, %v2327
    %2329 = vmatmul.f32.gmra.mxu0 %v1738
    %v2330 = vpop.f32.mrf.mxu0
    %v2331 = vadd.f32 %v912, %v2330
    %2332 = vmatmul.f32.gmra.mxu0 %v1741
    %v2333 = vpop.f32.mrf.mxu0
    %v2334 = vadd.f32 %v917, %v2333
    %2335 = vmatmul.f32.gmra.mxu0 %v1744
    %v2336 = vpop.f32.mrf.mxu0
    %v2337 = vadd.f32 %v922, %v2336
    %2338 = vmatmul.f32.gmra.mxu0 %v1747
    %v2339 = vpop.f32.mrf.mxu0
    %v2340 = vadd.f32 %v927, %v2339
    %2341 = vmatmul.f32.gmra.mxu0 %v1750
    %v2342 = vpop.f32.mrf.mxu0
    %v2343 = vadd.f32 %v932, %v2342
    %2344 = vmatmul.f32.gmra.mxu0 %v1753
    %v2345 = vpop.f32.mrf.mxu0
    %v2346 = vadd.f32 %v937, %v2345
    %2347 = vmatmul.f32.gmra.mxu0 %v1756
    %v2348 = vpop.f32.mrf.mxu0
    %v2349 = vadd.f32 %v942, %v2348
    %2350 = vmatmul.f32.gmra.mxu0 %v1759
    %v2351 = vpop.f32.mrf.mxu0
    %v2352 = vadd.f32 %v947, %v2351
    %2353 = vmatmul.f32.gmra.mxu0 %v1762
    %v2354 = vpop.f32.mrf.mxu0
    %v2355 = vadd.f32 %v952, %v2354
    %2356 = vmatmul.f32.gmra.mxu0 %v1765
    %v2357 = vpop.f32.mrf.mxu0
    %v2358 = vadd.f32 %v957, %v2357
    %2359 = vmatmul.f32.gmra.mxu0 %v1768
    %v2360 = vpop.f32.mrf.mxu0
    %v2361 = vadd.f32 %v962, %v2360
    %2362 = vmatmul.f32.gmra.mxu0 %v1771
    %v2363 = vpop.f32.mrf.mxu0
    %v2364 = vadd.f32 %v967, %v2363
    %2365 = vmatmul.f32.gmra.mxu0 %v1774
    %v2366 = vpop.f32.mrf.mxu0
    %v2367 = vadd.f32 %v972, %v2366
    %2368 = vmatmul.f32.gmra.mxu0 %v1777
    %v2369 = vpop.f32.mrf.mxu0
    %v2370 = vadd.f32 %v977, %v2369
    %2371 = vmatmul.f32.gmra.mxu0 %v1780
    %v2372 = vpop.f32.mrf.mxu0
    %v2373 = vadd.f32 %v982, %v2372
    %2374 = vmatmul.f32.gmra.mxu0 %v1783
    %v2375 = vpop.f32.mrf.mxu0
    %v2376 = vadd.f32 %v987, %v2375
    %2377 = vmatmul.f32.gmra.mxu0 %v1786
    %v2378 = vpop.f32.mrf.mxu0
    %v2379 = vadd.f32 %v992, %v2378
    %2380 = vmatmul.f32.gmra.mxu0 %v1789
    %v2381 = vpop.f32.mrf.mxu0
    %v2382 = vadd.f32 %v997, %v2381
    %2383 = vmatmul.f32.gmra.mxu0 %v1792
    %v2384 = vpop.f32.mrf.mxu0
    %v2385 = vadd.f32 %v1002, %v2384
    %2386 = vmatmul.f32.gmra.mxu0 %v1795
    %v2387 = vpop.f32.mrf.mxu0
    %v2388 = vadd.f32 %v1007, %v2387
    %2389 = vmatmul.f32.gmra.mxu0 %v1798
    %v2390 = vpop.f32.mrf.mxu0
    %v2391 = vadd.f32 %v1012, %v2390
    %2392 = vmatmul.f32.gmra.mxu0 %v1801
    %v2393 = vpop.f32.mrf.mxu0
    %v2394 = vadd.f32 %v1017, %v2393
    %2395 = vmatmul.f32.gmra.mxu0 %v1804
    %v2396 = vpop.f32.mrf.mxu0
    %v2397 = vadd.f32 %v1022, %v2396
    %2398 = vmatmul.f32.gmra.mxu0 %v1807
    %v2399 = vpop.f32.mrf.mxu0
    %v2400 = vadd.f32 %v1027, %v2399
    %2401 = vmatmul.f32.gmra.mxu0 %v1810
    %v2402 = vpop.f32.mrf.mxu0
    %v2403 = vadd.f32 %v1032, %v2402
    %2404 = vmatmul.f32.gmra.mxu0 %v1813
    %v2405 = vpop.f32.mrf.mxu0
    %v2406 = vadd.f32 %v1037, %v2405
    %2407 = vmatmul.f32.gmra.mxu0 %v1816
    %v2408 = vpop.f32.mrf.mxu0
    %v2409 = vadd.f32 %v1042, %v2408
    %2410 = vmatmul.f32.gmra.mxu0 %v1819
    %v2411 = vpop.f32.mrf.mxu0
    %v2412 = vadd.f32 %v1047, %v2411
    %2413 = vmatmul.f32.gmra.mxu0 %v1822
    %v2414 = vpop.f32.mrf.mxu0
    %v2415 = vadd.f32 %v1052, %v2414
    %2416 = vmatmul.f32.gmra.mxu0 %v1825
    %v2417 = vpop.f32.mrf.mxu0
    %v2418 = vadd.f32 %v1057, %v2417
    %2419 = vmatmul.f32.gmra.mxu0 %v1828
    %v2420 = vpop.f32.mrf.mxu0
    %v2421 = vadd.f32 %v1062, %v2420
    %2422 = vmatmul.f32.gmra.mxu0 %v1831
    %v2423 = vpop.f32.mrf.mxu0
    %v2424 = vadd.f32 %v1067, %v2423
    %2425 = vmatmul.f32.gmra.mxu0 %v1834
    %v2426 = vpop.f32.mrf.mxu0
    %v2427 = vadd.f32 %v1072, %v2426
    %2428 = vmatmul.f32.gmra.mxu0 %v1837
    %v2429 = vpop.f32.mrf.mxu0
    %v2430 = vadd.f32 %v1077, %v2429
    %2431 = vmatmul.f32.gmra.mxu0 %v1840
    %v2432 = vpop.f32.mrf.mxu0
    %v2433 = vadd.f32 %v1082, %v2432
    %2434 = vmatmul.f32.gmra.mxu0 %v1843
    %v2435 = vpop.f32.mrf.mxu0
    %v2436 = vadd.f32 %v1087, %v2435
    %2437 = vmatmul.f32.gmra.mxu0 %v1846
    %v2438 = vpop.f32.mrf.mxu0
    %v2439 = vadd.f32 %v1092, %v2438
    %2440 = vmatmul.f32.gmra.mxu0 %v1849
    %v2441 = vpop.f32.mrf.mxu0
    %v2442 = vadd.f32 %v1097, %v2441
    %2443 = vmatmul.f32.gmra.mxu0 %v1852
    %v2444 = vpop.f32.mrf.mxu0
    %v2445 = vadd.f32 %v1102, %v2444
    %2446 = vmatmul.f32.gmra.mxu0 %v1855
    %v2447 = vpop.f32.mrf.mxu0
    %v2448 = vadd.f32 %v1107, %v2447
    %2449 = vmatmul.f32.gmra.mxu0 %v1858
    %v2450 = vpop.f32.mrf.mxu0
    %v2451 = vadd.f32 %v1112, %v2450
    %2452 = vmatmul.f32.gmra.mxu0 %v1861
    %v2453 = vpop.f32.mrf.mxu0
    %v2454 = vadd.f32 %v1117, %v2453
    %2455 = vmatmul.f32.gmra.mxu0 %v1864
    %v2456 = vpop.f32.mrf.mxu0
    %v2457 = vadd.f32 %v1122, %v2456
    %2458 = vmatmul.f32.gmra.mxu0 %v1867
    %v2459 = vpop.f32.mrf.mxu0
    %v2460 = vadd.f32 %v1127, %v2459
    %2461 = vmatmul.f32.gmra.mxu0 %v1870
    %v2462 = vpop.f32.mrf.mxu0
    %v2463 = vadd.f32 %v1132, %v2462
    %2464 = vmatmul.f32.gmra.mxu0 %v1873
    %v2465 = vpop.f32.mrf.mxu0
    %v2466 = vadd.f32 %v1137, %v2465
    %2467 = vmatmul.f32.gmra.mxu0 %v1876
    %v2468 = vpop.f32.mrf.mxu0
    %v2469 = vadd.f32 %v1142, %v2468
    %2470 = vmatmul.f32.gmra.mxu0 %v1879
    %v2471 = vpop.f32.mrf.mxu0
    %v2472 = vadd.f32 %v1147, %v2471
    %2473 = vmatmul.f32.gmra.mxu0 %v1882
    %v2474 = vpop.f32.mrf.mxu0
    %v2475 = vadd.f32 %v1152, %v2474
    %2476 = vmatmul.f32.gmra.mxu0 %v1885
    %v2477 = vpop.f32.mrf.mxu0
    %v2478 = vadd.f32 %v1157, %v2477
    %2479 = vmatmul.f32.gmra.mxu0 %v1888
    %v2480 = vpop.f32.mrf.mxu0
    %v2481 = vadd.f32 %v1162, %v2480
    %2482 = vmatmul.f32.gmra.mxu0 %v1891
    %v2483 = vpop.f32.mrf.mxu0
    %v2484 = vadd.f32 %v1167, %v2483
    %2485 = vmatmul.f32.gmra.mxu0 %v1894
    %v2486 = vpop.f32.mrf.mxu0
    %v2487 = vadd.f32 %v1172, %v2486
    %2488 = vmatmul.f32.gmra.mxu0 %v1897
    %v2489 = vpop.f32.mrf.mxu0
    %v2490 = vadd.f32 %v1177, %v2489
    %2491 = vmatmul.f32.gmra.mxu0 %v1900
    %v2492 = vpop.f32.mrf.mxu0
    %v2493 = vadd.f32 %v1182, %v2492
    %2494 = vmatmul.f32.gmra.mxu0 %v1903
    %v2495 = vpop.f32.mrf.mxu0
    %v2496 = vadd.f32 %v1187, %v2495
    %2497 = vmatmul.f32.gmra.mxu0 %v1906
    %v2498 = vpop.f32.mrf.mxu0
    %v2499 = vadd.f32 %v1192, %v2498
    %2500 = vmatmul.f32.gmra.mxu0 %v1909
    %v2501 = vpop.f32.mrf.mxu0
    %v2502 = vadd.f32 %v1197, %v2501
    %2503 = vmatmul.f32.gmra.mxu0 %v1912
    %v2504 = vpop.f32.mrf.mxu0
    %v2505 = vadd.f32 %v1202, %v2504
    %2506 = vmatmul.f32.gmra.mxu0 %v1915
    %v2507 = vpop.f32.mrf.mxu0
    %v2508 = vadd.f32 %v1207, %v2507
    %2509 = vmatmul.f32.gmra.mxu0 %v1918
    %v2510 = vpop.f32.mrf.mxu0
    %v2511 = vadd.f32 %v1212, %v2510
    %2512 = vmatmul.f32.gmra.mxu0 %v1921
    %v2513 = vpop.f32.mrf.mxu0
    %v2514 = vadd.f32 %v1217, %v2513
    %2515 = vmatmul.f32.gmra.mxu0 %v1924
    %v2516 = vpop.f32.mrf.mxu0
    %v2517 = vadd.f32 %v1222, %v2516
    %2518 = vmatmul.f32.gmra.mxu0 %v1927
    %v2519 = vpop.f32.mrf.mxu0
    %v2520 = vadd.f32 %v1227, %v2519
    %2521 = vmatmul.f32.gmra.mxu0 %v1930
    %v2522 = vpop.f32.mrf.mxu0
    %v2523 = vadd.f32 %v1232, %v2522
    %2524 = vmatmul.f32.gmra.mxu0 %v1933
    %v2525 = vpop.f32.mrf.mxu0
    %v2526 = vadd.f32 %v1237, %v2525
    %2527 = vmatmul.f32.gmra.mxu0 %v1936
    %v2528 = vpop.f32.mrf.mxu0
    %v2529 = vadd.f32 %v1242, %v2528
    %2530 = vmatmul.f32.gmra.mxu0 %v1939
    %v2531 = vpop.f32.mrf.mxu0
    %v2532 = vadd.f32 %v1247, %v2531
    %2533 = vmatmul.f32.gmra.mxu0 %v1942
    %v2534 = vpop.f32.mrf.mxu0
    %v2535 = vadd.f32 %v1252, %v2534
    %2536 = vmatmul.f32.gmra.mxu0 %v1945
    %v2537 = vpop.f32.mrf.mxu0
    %v2538 = vadd.f32 %v1257, %v2537
    %2539 = vmatmul.f32.gmra.mxu0 %v1948
    %v2540 = vpop.f32.mrf.mxu0
    %v2541 = vadd.f32 %v1262, %v2540
    %2542 = vmatmul.f32.gmra.mxu0 %v1951
    %v2543 = vpop.f32.mrf.mxu0
    %v2544 = vadd.f32 %v1267, %v2543
    %2545 = vmatmul.f32.gmra.mxu0 %v1954
    %v2546 = vpop.f32.mrf.mxu0
    %v2547 = vadd.f32 %v1272, %v2546
    %2548 = vmatmul.f32.gmra.mxu0 %v1957
    %v2549 = vpop.f32.mrf.mxu0
    %v2550 = vadd.f32 %v1277, %v2549
    %2551 = vmatmul.f32.gmra.mxu0 %v1960
    %v2552 = vpop.f32.mrf.mxu0
    %v2553 = vadd.f32 %v1282, %v2552
    %2554 = vmatmul.f32.gmra.mxu0 %v1963
    %v2555 = vpop.f32.mrf.mxu0
    %v2556 = vadd.f32 %v1287, %v2555
    %2557 = vmatmul.f32.gmra.mxu0 %v1966
    %v2558 = vpop.f32.mrf.mxu0
    %v2559 = vadd.f32 %v1292, %v2558
    %2560 = vmatmul.f32.gmra.mxu0 %v1969
    %v2561 = vpop.f32.mrf.mxu0
    %v2562 = vadd.f32 %v1297, %v2561
    %2563 = vmatmul.f32.gmra.mxu0 %v1972
    %v2564 = vpop.f32.mrf.mxu0
    %v2565 = vadd.f32 %v1302, %v2564
    %2566 = vmatmul.f32.gmra.mxu0 %v1975
    %v2567 = vpop.f32.mrf.mxu0
    %v2568 = vadd.f32 %v1307, %v2567
    %2569 = vmatmul.f32.gmra.mxu0 %v1978
    %v2570 = vpop.f32.mrf.mxu0
    %v2571 = vadd.f32 %v1312, %v2570
    %2572 = vmatmul.f32.gmra.mxu0 %v1981
    %v2573 = vpop.f32.mrf.mxu0
    %v2574 = vadd.f32 %v1317, %v2573
    %2575 = vmatmul.f32.gmra.mxu0 %v1984
    %v2576 = vpop.f32.mrf.mxu0
    %v2577 = vadd.f32 %v1322, %v2576
    %2578 = vmatmul.f32.gmra.mxu0 %v1987
    %v2579 = vpop.f32.mrf.mxu0
    %v2580 = vadd.f32 %v1327, %v2579
    %2581 = vmatmul.f32.gmra.mxu0 %v1990
    %v2582 = vpop.f32.mrf.mxu0
    %v2583 = vadd.f32 %v1332, %v2582
    %2584 = vmatmul.f32.gmra.mxu0 %v1993
    %v2585 = vpop.f32.mrf.mxu0
    %v2586 = vadd.f32 %v1337, %v2585
    %2587 = vmatmul.f32.gmra.mxu0 %v1996
    %v2588 = vpop.f32.mrf.mxu0
    %v2589 = vadd.f32 %v1342, %v2588
    %2590 = vmatmul.f32.gmra.mxu0 %v1999
    %v2591 = vpop.f32.mrf.mxu0
    %v2592 = vadd.f32 %v1347, %v2591
    %2593 = vmatmul.f32.gmra.mxu0 %v2002
    %v2594 = vpop.f32.mrf.mxu0
    %v2595 = vadd.f32 %v1352, %v2594
    %2596 = vmatmul.f32.gmra.mxu0 %v2005
    %v2597 = vpop.f32.mrf.mxu0
    %v2598 = vadd.f32 %v1357, %v2597
    %2599 = vmatmul.f32.gmra.mxu0 %v2008
    %v2600 = vpop.f32.mrf.mxu0
    %v2601 = vadd.f32 %v1362, %v2600
    %2602 = vmatmul.f32.gmra.mxu0 %v2011
    %v2603 = vpop.f32.mrf.mxu0
    %v2604 = vadd.f32 %v1367, %v2603
    %2605 = vmatmul.f32.gmra.mxu0 %v2014
    %v2606 = vpop.f32.mrf.mxu0
    %v2607 = vadd.f32 %v1372, %v2606
    %2608 = vmatmul.f32.gmra.mxu0 %v2017
    %v2609 = vpop.f32.mrf.mxu0
    %v2610 = vadd.f32 %v1377, %v2609
    %2611 = vmatmul.f32.gmra.mxu0 %v2020
    %v2612 = vpop.f32.mrf.mxu0
    %v2613 = vadd.f32 %v1382, %v2612
    %2614 = vmatmul.f32.gmra.mxu0 %v2023
    %v2615 = vpop.f32.mrf.mxu0
    %v2616 = vadd.f32 %v1387, %v2615
    %2617 = vmatmul.f32.gmra.mxu0 %v2026
    %v2618 = vpop.f32.mrf.mxu0
    %v2619 = vadd.f32 %v1392, %v2618
    %2620 = vmatmul.f32.gmra.mxu0 %v2029
    %v2621 = vpop.f32.mrf.mxu0
    %v2622 = vadd.f32 %v1397, %v2621
    %2623 = vmatmul.f32.gmra.mxu0 %v2032
    %v2624 = vpop.f32.mrf.mxu0
    %v2625 = vadd.f32 %v1402, %v2624
    %2626 = vmatmul.f32.gmra.mxu0 %v2035
    %v2627 = vpop.f32.mrf.mxu0
    %v2628 = vadd.f32 %v1407, %v2627
    %2629 = vmatmul.f32.gmra.mxu0 %v2038
    %v2630 = vpop.f32.mrf.mxu0
    %v2631 = vadd.f32 %v1412, %v2630
    %2632 = vmatmul.f32.gmra.mxu0 %v2041
    %v2633 = vpop.f32.mrf.mxu0
    %v2634 = vadd.f32 %v1417, %v2633
    %2635 = vmatmul.f32.gmra.mxu0 %v2044
    %v2636 = vpop.f32.mrf.mxu0
    %v2637 = vadd.f32 %v1422, %v2636
    %2638 = vmatmul.f32.gmra.mxu0 %v2047
    %v2639 = vpop.f32.mrf.mxu0
    %v2640 = vadd.f32 %v1427, %v2639
    %2641 = vmatmul.f32.gmra.mxu0 %v2050
    %v2642 = vpop.f32.mrf.mxu0
    %v2643 = vadd.f32 %v1432, %v2642
    %2644 = vmatmul.f32.gmra.mxu0 %v2053
    %v2645 = vpop.f32.mrf.mxu0
    %v2646 = vadd.f32 %v1437, %v2645
    %2647 = vmatmul.f32.gmra.mxu0 %v2056
    %v2648 = vpop.f32.mrf.mxu0
    %v2649 = vadd.f32 %v1442, %v2648
    %2650 = vmatmul.f32.gmra.mxu0 %v2059
    %v2651 = vpop.f32.mrf.mxu0
    %v2652 = vadd.f32 %v1447, %v2651
    %2653 = vmatmul.f32.gmra.mxu0 %v2062
    %v2654 = vpop.f32.mrf.mxu0
    %v2655 = vadd.f32 %v1452, %v2654
    %2656 = vmatmul.f32.gmra.mxu0 %v2065
    %v2657 = vpop.f32.mrf.mxu0
    %v2658 = vadd.f32 %v1457, %v2657
    %2659 = vmatmul.f32.gmra.mxu0 %v2068
    %v2660 = vpop.f32.mrf.mxu0
    %v2661 = vadd.f32 %v1462, %v2660
    %2662 = vmatmul.f32.gmra.mxu0 %v2071
    %v2663 = vpop.f32.mrf.mxu0
    %v2664 = vadd.f32 %v1467, %v2663
    %2665 = vmatmul.f32.gmra.mxu0 %v2074
    %v2666 = vpop.f32.mrf.mxu0
    %v2667 = vadd.f32 %v1472, %v2666
    %2668 = vmatmul.f32.gmra.mxu0 %v2077
    %v2669 = vpop.f32.mrf.mxu0
    %v2670 = vadd.f32 %v1477, %v2669
    %2671 = vmatmul.f32.gmra.mxu0 %v2080
    %v2672 = vpop.f32.mrf.mxu0
    %v2673 = vadd.f32 %v1482, %v2672
    %2674 = vmatmul.f32.gmra.mxu0 %v2083
    %v2675 = vpop.f32.mrf.mxu0
    %v2676 = vadd.f32 %v1487, %v2675
    %2677 = vmatmul.f32.gmra.mxu0 %v2086
    %v2678 = vpop.f32.mrf.mxu0
    %v2679 = vadd.f32 %v1492, %v2678
    %2680 = vmatmul.f32.gmra.mxu0 %v2089
    %v2681 = vpop.f32.mrf.mxu0
    %v2682 = vadd.f32 %v1497, %v2681
    %2683 = vmatmul.f32.gmra.mxu0 %v2092
    %v2684 = vpop.f32.mrf.mxu0
    %v2685 = vadd.f32 %v1502, %v2684
    %2686 = vmatmul.f32.gmra.mxu0 %v2095
    %v2687 = vpop.f32.mrf.mxu0
    %v2688 = vadd.f32 %v1507, %v2687
    %2689 = vmatmul.f32.gmra.mxu0 %v2098
    %v2690 = vpop.f32.mrf.mxu0
    %v2691 = vadd.f32 %v1512, %v2690
    %2692 = vmatmul.f32.gmra.mxu0 %v2101
    %v2693 = vpop.f32.mrf.mxu0
    %v2694 = vadd.f32 %v1517, %v2693
    %2695 = vmatmul.f32.gmra.mxu0 %v2104
    %v2696 = vpop.f32.mrf.mxu0
    %v2697 = vadd.f32 %v1522, %v2696
    %2698 = vmatmul.f32.gmra.mxu0 %v2107
    %v2699 = vpop.f32.mrf.mxu0
    %v2700 = vadd.f32 %v1527, %v2699
    %2701 = vmatmul.f32.gmra.mxu0 %v2110
    %v2702 = vpop.f32.mrf.mxu0
    %v2703 = vadd.f32 %v1532, %v2702
    %2704 = vmatmul.f32.gmra.mxu0 %v2113
    %v2705 = vpop.f32.mrf.mxu0
    %v2706 = vadd.f32 %v1537, %v2705
    %2707 = vdwg.mxu0
    %v2708 = vsel %vm59, %v2133, -inf
    %v2709 = vsel %vm59, %v2136, -inf
    %v2710 = vmax.f32 %v2708, %v2709
    %v2711 = vsel %vm59, %v2139, -inf
    %v2712 = vmax.f32 %v2710, %v2711
    %v2713 = vrot.slane %v2712, 4
    %v2714 = vmax.f32 %v2712, %v2713
    %v2715 = vrot.slane %v2714, 2
    %v2716 = vmax.f32 %v2714, %v2715
    %v2717 = vrot.slane %v2716, 1
    %v2718 = vmax.f32 %v2716, %v2717
    %v2719 = vsel %vm59, %v2142, -inf
    %v2720 = vsel %vm59, %v2145, -inf
    %v2721 = vmax.f32 %v2719, %v2720
    %v2722 = vsel %vm59, %v2148, -inf
    %v2723 = vmax.f32 %v2721, %v2722
    %v2724 = vrot.slane %v2723, 4
    %v2725 = vmax.f32 %v2723, %v2724
    %v2726 = vrot.slane %v2725, 2
    %v2727 = vmax.f32 %v2725, %v2726
    %v2728 = vrot.slane %v2727, 1
    %v2729 = vmax.f32 %v2727, %v2728
    %v2730 = vsel %vm59, %v2151, -inf
    %v2731 = vsel %vm59, %v2154, -inf
    %v2732 = vmax.f32 %v2730, %v2731
    %v2733 = vsel %vm59, %v2157, -inf
    %v2734 = vmax.f32 %v2732, %v2733
    %v2735 = vrot.slane %v2734, 4
    %v2736 = vmax.f32 %v2734, %v2735
    %v2737 = vrot.slane %v2736, 2
    %v2738 = vmax.f32 %v2736, %v2737
    %v2739 = vrot.slane %v2738, 1
    %v2740 = vmax.f32 %v2738, %v2739
    %v2741 = vsel %vm59, %v2160, -inf
    %v2742 = vsel %vm59, %v2163, -inf
    %v2743 = vmax.f32 %v2741, %v2742
    %v2744 = vsel %vm59, %v2166, -inf
    %v2745 = vmax.f32 %v2743, %v2744
    %v2746 = vrot.slane %v2745, 4
    %v2747 = vmax.f32 %v2745, %v2746
    %v2748 = vrot.slane %v2747, 2
    %v2749 = vmax.f32 %v2747, %v2748
    %v2750 = vrot.slane %v2749, 1
    %v2751 = vmax.f32 %v2749, %v2750
    %v2752 = vsel %vm59, %v2169, -inf
    %v2753 = vsel %vm59, %v2172, -inf
    %v2754 = vmax.f32 %v2752, %v2753
    %v2755 = vsel %vm59, %v2175, -inf
    %v2756 = vmax.f32 %v2754, %v2755
    %v2757 = vrot.slane %v2756, 4
    %v2758 = vmax.f32 %v2756, %v2757
    %v2759 = vrot.slane %v2758, 2
    %v2760 = vmax.f32 %v2758, %v2759
    %v2761 = vrot.slane %v2760, 1
    %v2762 = vmax.f32 %v2760, %v2761
    %v2763 = vsel %vm59, %v2178, -inf
    %v2764 = vsel %vm59, %v2181, -inf
    %v2765 = vmax.f32 %v2763, %v2764
    %v2766 = vsel %vm59, %v2184, -inf
    %v2767 = vmax.f32 %v2765, %v2766
    %v2768 = vrot.slane %v2767, 4
    %v2769 = vmax.f32 %v2767, %v2768
    %v2770 = vrot.slane %v2769, 2
    %v2771 = vmax.f32 %v2769, %v2770
    %v2772 = vrot.slane %v2771, 1
    %v2773 = vmax.f32 %v2771, %v2772
    %v2774 = vsel %vm59, %v2187, -inf
    %v2775 = vsel %vm59, %v2190, -inf
    %v2776 = vmax.f32 %v2774, %v2775
    %v2777 = vsel %vm59, %v2193, -inf
    %v2778 = vmax.f32 %v2776, %v2777
    %v2779 = vrot.slane %v2778, 4
    %v2780 = vmax.f32 %v2778, %v2779
    %v2781 = vrot.slane %v2780, 2
    %v2782 = vmax.f32 %v2780, %v2781
    %v2783 = vrot.slane %v2782, 1
    %v2784 = vmax.f32 %v2782, %v2783
    %v2785 = vsel %vm59, %v2196, -inf
    %v2786 = vsel %vm59, %v2199, -inf
    %v2787 = vmax.f32 %v2785, %v2786
    %v2788 = vsel %vm59, %v2202, -inf
    %v2789 = vmax.f32 %v2787, %v2788
    %v2790 = vrot.slane %v2789, 4
    %v2791 = vmax.f32 %v2789, %v2790
    %v2792 = vrot.slane %v2791, 2
    %v2793 = vmax.f32 %v2791, %v2792
    %v2794 = vrot.slane %v2793, 1
    %v2795 = vmax.f32 %v2793, %v2794
    %v2796 = vsel %vm59, %v2205, -inf
    %v2797 = vsel %vm59, %v2208, -inf
    %v2798 = vmax.f32 %v2796, %v2797
    %v2799 = vsel %vm59, %v2211, -inf
    %v2800 = vmax.f32 %v2798, %v2799
    %v2801 = vrot.slane %v2800, 4
    %v2802 = vmax.f32 %v2800, %v2801
    %v2803 = vrot.slane %v2802, 2
    %v2804 = vmax.f32 %v2802, %v2803
    %v2805 = vrot.slane %v2804, 1
    %v2806 = vmax.f32 %v2804, %v2805
    %v2807 = vsel %vm59, %v2214, -inf
    %v2808 = vsel %vm59, %v2217, -inf
    %v2809 = vmax.f32 %v2807, %v2808
    %v2810 = vsel %vm59, %v2220, -inf
    %v2811 = vmax.f32 %v2809, %v2810
    %v2812 = vrot.slane %v2811, 4
    %v2813 = vmax.f32 %v2811, %v2812
    %v2814 = vrot.slane %v2813, 2
    %v2815 = vmax.f32 %v2813, %v2814
    %v2816 = vrot.slane %v2815, 1
    %v2817 = vmax.f32 %v2815, %v2816
    %v2818 = vsel %vm59, %v2223, -inf
    %v2819 = vsel %vm59, %v2226, -inf
    %v2820 = vmax.f32 %v2818, %v2819
    %v2821 = vsel %vm59, %v2229, -inf
    %v2822 = vmax.f32 %v2820, %v2821
    %v2823 = vrot.slane %v2822, 4
    %v2824 = vmax.f32 %v2822, %v2823
    %v2825 = vrot.slane %v2824, 2
    %v2826 = vmax.f32 %v2824, %v2825
    %v2827 = vrot.slane %v2826, 1
    %v2828 = vmax.f32 %v2826, %v2827
    %v2829 = vsel %vm59, %v2232, -inf
    %v2830 = vsel %vm59, %v2235, -inf
    %v2831 = vmax.f32 %v2829, %v2830
    %v2832 = vsel %vm59, %v2238, -inf
    %v2833 = vmax.f32 %v2831, %v2832
    %v2834 = vrot.slane %v2833, 4
    %v2835 = vmax.f32 %v2833, %v2834
    %v2836 = vrot.slane %v2835, 2
    %v2837 = vmax.f32 %v2835, %v2836
    %v2838 = vrot.slane %v2837, 1
    %v2839 = vmax.f32 %v2837, %v2838
    %v2840 = vsel %vm59, %v2241, -inf
    %v2841 = vsel %vm59, %v2244, -inf
    %v2842 = vmax.f32 %v2840, %v2841
    %v2843 = vsel %vm59, %v2247, -inf
    %v2844 = vmax.f32 %v2842, %v2843
    %v2845 = vrot.slane %v2844, 4
    %v2846 = vmax.f32 %v2844, %v2845
    %v2847 = vrot.slane %v2846, 2
    %v2848 = vmax.f32 %v2846, %v2847
    %v2849 = vrot.slane %v2848, 1
    %v2850 = vmax.f32 %v2848, %v2849
    %v2851 = vsel %vm59, %v2250, -inf
    %v2852 = vsel %vm59, %v2253, -inf
    %v2853 = vmax.f32 %v2851, %v2852
    %v2854 = vsel %vm59, %v2256, -inf
    %v2855 = vmax.f32 %v2853, %v2854
    %v2856 = vrot.slane %v2855, 4
    %v2857 = vmax.f32 %v2855, %v2856
    %v2858 = vrot.slane %v2857, 2
    %v2859 = vmax.f32 %v2857, %v2858
    %v2860 = vrot.slane %v2859, 1
    %v2861 = vmax.f32 %v2859, %v2860
    %v2862 = vsel %vm59, %v2259, -inf
    %v2863 = vsel %vm59, %v2262, -inf
    %v2864 = vmax.f32 %v2862, %v2863
    %v2865 = vsel %vm59, %v2265, -inf
    %v2866 = vmax.f32 %v2864, %v2865
    %v2867 = vrot.slane %v2866, 4
    %v2868 = vmax.f32 %v2866, %v2867
    %v2869 = vrot.slane %v2868, 2
    %v2870 = vmax.f32 %v2868, %v2869
    %v2871 = vrot.slane %v2870, 1
    %v2872 = vmax.f32 %v2870, %v2871
    %v2873 = vsel %vm59, %v2268, -inf
    %v2874 = vsel %vm59, %v2271, -inf
    %v2875 = vmax.f32 %v2873, %v2874
    %v2876 = vsel %vm59, %v2274, -inf
    %v2877 = vmax.f32 %v2875, %v2876
    %v2878 = vrot.slane %v2877, 4
    %v2879 = vmax.f32 %v2877, %v2878
    %v2880 = vrot.slane %v2879, 2
    %v2881 = vmax.f32 %v2879, %v2880
    %v2882 = vrot.slane %v2881, 1
    %v2883 = vmax.f32 %v2881, %v2882
    %v2884 = vsel %vm59, %v2277, -inf
    %v2885 = vsel %vm59, %v2280, -inf
    %v2886 = vmax.f32 %v2884, %v2885
    %v2887 = vsel %vm59, %v2283, -inf
    %v2888 = vmax.f32 %v2886, %v2887
    %v2889 = vrot.slane %v2888, 4
    %v2890 = vmax.f32 %v2888, %v2889
    %v2891 = vrot.slane %v2890, 2
    %v2892 = vmax.f32 %v2890, %v2891
    %v2893 = vrot.slane %v2892, 1
    %v2894 = vmax.f32 %v2892, %v2893
    %v2895 = vsel %vm59, %v2286, -inf
    %v2896 = vsel %vm59, %v2289, -inf
    %v2897 = vmax.f32 %v2895, %v2896
    %v2898 = vsel %vm59, %v2292, -inf
    %v2899 = vmax.f32 %v2897, %v2898
    %v2900 = vrot.slane %v2899, 4
    %v2901 = vmax.f32 %v2899, %v2900
    %v2902 = vrot.slane %v2901, 2
    %v2903 = vmax.f32 %v2901, %v2902
    %v2904 = vrot.slane %v2903, 1
    %v2905 = vmax.f32 %v2903, %v2904
    %v2906 = vsel %vm59, %v2295, -inf
    %v2907 = vsel %vm59, %v2298, -inf
    %v2908 = vmax.f32 %v2906, %v2907
    %v2909 = vsel %vm59, %v2301, -inf
    %v2910 = vmax.f32 %v2908, %v2909
    %v2911 = vrot.slane %v2910, 4
    %v2912 = vmax.f32 %v2910, %v2911
    %v2913 = vrot.slane %v2912, 2
    %v2914 = vmax.f32 %v2912, %v2913
    %v2915 = vrot.slane %v2914, 1
    %v2916 = vmax.f32 %v2914, %v2915
    %v2917 = vsel %vm59, %v2304, -inf
    %v2918 = vsel %vm59, %v2307, -inf
    %v2919 = vmax.f32 %v2917, %v2918
    %v2920 = vsel %vm59, %v2310, -inf
    %v2921 = vmax.f32 %v2919, %v2920
    %v2922 = vrot.slane %v2921, 4
    %v2923 = vmax.f32 %v2921, %v2922
    %v2924 = vrot.slane %v2923, 2
    %v2925 = vmax.f32 %v2923, %v2924
    %v2926 = vrot.slane %v2925, 1
    %v2927 = vmax.f32 %v2925, %v2926
    %v2928 = vsel %vm59, %v2313, -inf
    %v2929 = vsel %vm59, %v2316, -inf
    %v2930 = vmax.f32 %v2928, %v2929
    %v2931 = vsel %vm59, %v2319, -inf
    %v2932 = vmax.f32 %v2930, %v2931
    %v2933 = vrot.slane %v2932, 4
    %v2934 = vmax.f32 %v2932, %v2933
    %v2935 = vrot.slane %v2934, 2
    %v2936 = vmax.f32 %v2934, %v2935
    %v2937 = vrot.slane %v2936, 1
    %v2938 = vmax.f32 %v2936, %v2937
    %v2939 = vsel %vm59, %v2322, -inf
    %v2940 = vsel %vm59, %v2325, -inf
    %v2941 = vmax.f32 %v2939, %v2940
    %v2942 = vsel %vm59, %v2328, -inf
    %v2943 = vmax.f32 %v2941, %v2942
    %v2944 = vrot.slane %v2943, 4
    %v2945 = vmax.f32 %v2943, %v2944
    %v2946 = vrot.slane %v2945, 2
    %v2947 = vmax.f32 %v2945, %v2946
    %v2948 = vrot.slane %v2947, 1
    %v2949 = vmax.f32 %v2947, %v2948
    %v2950 = vsel %vm59, %v2331, -inf
    %v2951 = vsel %vm59, %v2334, -inf
    %v2952 = vmax.f32 %v2950, %v2951
    %v2953 = vsel %vm59, %v2337, -inf
    %v2954 = vmax.f32 %v2952, %v2953
    %v2955 = vrot.slane %v2954, 4
    %v2956 = vmax.f32 %v2954, %v2955
    %v2957 = vrot.slane %v2956, 2
    %v2958 = vmax.f32 %v2956, %v2957
    %v2959 = vrot.slane %v2958, 1
    %v2960 = vmax.f32 %v2958, %v2959
    %v2961 = vsel %vm59, %v2340, -inf
    %v2962 = vsel %vm59, %v2343, -inf
    %v2963 = vmax.f32 %v2961, %v2962
    %v2964 = vsel %vm59, %v2346, -inf
    %v2965 = vmax.f32 %v2963, %v2964
    %v2966 = vrot.slane %v2965, 4
    %v2967 = vmax.f32 %v2965, %v2966
    %v2968 = vrot.slane %v2967, 2
    %v2969 = vmax.f32 %v2967, %v2968
    %v2970 = vrot.slane %v2969, 1
    %v2971 = vmax.f32 %v2969, %v2970
    %v2972 = vsel %vm59, %v2349, -inf
    %v2973 = vsel %vm59, %v2352, -inf
    %v2974 = vmax.f32 %v2972, %v2973
    %v2975 = vsel %vm59, %v2355, -inf
    %v2976 = vmax.f32 %v2974, %v2975
    %v2977 = vrot.slane %v2976, 4
    %v2978 = vmax.f32 %v2976, %v2977
    %v2979 = vrot.slane %v2978, 2
    %v2980 = vmax.f32 %v2978, %v2979
    %v2981 = vrot.slane %v2980, 1
    %v2982 = vmax.f32 %v2980, %v2981
    %v2983 = vsel %vm59, %v2358, -inf
    %v2984 = vsel %vm59, %v2361, -inf
    %v2985 = vmax.f32 %v2983, %v2984
    %v2986 = vsel %vm59, %v2364, -inf
    %v2987 = vmax.f32 %v2985, %v2986
    %v2988 = vrot.slane %v2987, 4
    %v2989 = vmax.f32 %v2987, %v2988
    %v2990 = vrot.slane %v2989, 2
    %v2991 = vmax.f32 %v2989, %v2990
    %v2992 = vrot.slane %v2991, 1
    %v2993 = vmax.f32 %v2991, %v2992
    %v2994 = vsel %vm59, %v2367, -inf
    %v2995 = vsel %vm59, %v2370, -inf
    %v2996 = vmax.f32 %v2994, %v2995
    %v2997 = vsel %vm59, %v2373, -inf
    %v2998 = vmax.f32 %v2996, %v2997
    %v2999 = vrot.slane %v2998, 4
    %v3000 = vmax.f32 %v2998, %v2999
    %v3001 = vrot.slane %v3000, 2
    %v3002 = vmax.f32 %v3000, %v3001
    %v3003 = vrot.slane %v3002, 1
    %v3004 = vmax.f32 %v3002, %v3003
    %v3005 = vsel %vm59, %v2376, -inf
    %v3006 = vsel %vm59, %v2379, -inf
    %v3007 = vmax.f32 %v3005, %v3006
    %v3008 = vsel %vm59, %v2382, -inf
    %v3009 = vmax.f32 %v3007, %v3008
    %v3010 = vrot.slane %v3009, 4
    %v3011 = vmax.f32 %v3009, %v3010
    %v3012 = vrot.slane %v3011, 2
    %v3013 = vmax.f32 %v3011, %v3012
    %v3014 = vrot.slane %v3013, 1
    %v3015 = vmax.f32 %v3013, %v3014
    %v3016 = vsel %vm59, %v2385, -inf
    %v3017 = vsel %vm59, %v2388, -inf
    %v3018 = vmax.f32 %v3016, %v3017
    %v3019 = vsel %vm59, %v2391, -inf
    %v3020 = vmax.f32 %v3018, %v3019
    %v3021 = vrot.slane %v3020, 4
    %v3022 = vmax.f32 %v3020, %v3021
    %v3023 = vrot.slane %v3022, 2
    %v3024 = vmax.f32 %v3022, %v3023
    %v3025 = vrot.slane %v3024, 1
    %v3026 = vmax.f32 %v3024, %v3025
    %v3027 = vsel %vm59, %v2394, -inf
    %v3028 = vsel %vm59, %v2397, -inf
    %v3029 = vmax.f32 %v3027, %v3028
    %v3030 = vsel %vm59, %v2400, -inf
    %v3031 = vmax.f32 %v3029, %v3030
    %v3032 = vrot.slane %v3031, 4
    %v3033 = vmax.f32 %v3031, %v3032
    %v3034 = vrot.slane %v3033, 2
    %v3035 = vmax.f32 %v3033, %v3034
    %v3036 = vrot.slane %v3035, 1
    %v3037 = vmax.f32 %v3035, %v3036
    %v3038 = vsel %vm59, %v2403, -inf
    %v3039 = vsel %vm59, %v2406, -inf
    %v3040 = vmax.f32 %v3038, %v3039
    %v3041 = vsel %vm59, %v2409, -inf
    %v3042 = vmax.f32 %v3040, %v3041
    %v3043 = vrot.slane %v3042, 4
    %v3044 = vmax.f32 %v3042, %v3043
    %v3045 = vrot.slane %v3044, 2
    %v3046 = vmax.f32 %v3044, %v3045
    %v3047 = vrot.slane %v3046, 1
    %v3048 = vmax.f32 %v3046, %v3047
    %v3049 = vsel %vm59, %v2412, -inf
    %v3050 = vsel %vm59, %v2415, -inf
    %v3051 = vmax.f32 %v3049, %v3050
    %v3052 = vsel %vm59, %v2418, -inf
    %v3053 = vmax.f32 %v3051, %v3052
    %v3054 = vrot.slane %v3053, 4
    %v3055 = vmax.f32 %v3053, %v3054
    %v3056 = vrot.slane %v3055, 2
    %v3057 = vmax.f32 %v3055, %v3056
    %v3058 = vrot.slane %v3057, 1
    %v3059 = vmax.f32 %v3057, %v3058
    %v3060 = vsel %vm59, %v2421, -inf
    %v3061 = vsel %vm59, %v2424, -inf
    %v3062 = vmax.f32 %v3060, %v3061
    %v3063 = vsel %vm59, %v2427, -inf
    %v3064 = vmax.f32 %v3062, %v3063
    %v3065 = vrot.slane %v3064, 4
    %v3066 = vmax.f32 %v3064, %v3065
    %v3067 = vrot.slane %v3066, 2
    %v3068 = vmax.f32 %v3066, %v3067
    %v3069 = vrot.slane %v3068, 1
    %v3070 = vmax.f32 %v3068, %v3069
    %v3071 = vsel %vm59, %v2430, -inf
    %v3072 = vsel %vm59, %v2433, -inf
    %v3073 = vmax.f32 %v3071, %v3072
    %v3074 = vsel %vm59, %v2436, -inf
    %v3075 = vmax.f32 %v3073, %v3074
    %v3076 = vrot.slane %v3075, 4
    %v3077 = vmax.f32 %v3075, %v3076
    %v3078 = vrot.slane %v3077, 2
    %v3079 = vmax.f32 %v3077, %v3078
    %v3080 = vrot.slane %v3079, 1
    %v3081 = vmax.f32 %v3079, %v3080
    %v3082 = vsel %vm59, %v2439, -inf
    %v3083 = vsel %vm59, %v2442, -inf
    %v3084 = vmax.f32 %v3082, %v3083
    %v3085 = vsel %vm59, %v2445, -inf
    %v3086 = vmax.f32 %v3084, %v3085
    %v3087 = vrot.slane %v3086, 4
    %v3088 = vmax.f32 %v3086, %v3087
    %v3089 = vrot.slane %v3088, 2
    %v3090 = vmax.f32 %v3088, %v3089
    %v3091 = vrot.slane %v3090, 1
    %v3092 = vmax.f32 %v3090, %v3091
    %v3093 = vsel %vm59, %v2448, -inf
    %v3094 = vsel %vm59, %v2451, -inf
    %v3095 = vmax.f32 %v3093, %v3094
    %v3096 = vsel %vm59, %v2454, -inf
    %v3097 = vmax.f32 %v3095, %v3096
    %v3098 = vrot.slane %v3097, 4
    %v3099 = vmax.f32 %v3097, %v3098
    %v3100 = vrot.slane %v3099, 2
    %v3101 = vmax.f32 %v3099, %v3100
    %v3102 = vrot.slane %v3101, 1
    %v3103 = vmax.f32 %v3101, %v3102
    %v3104 = vsel %vm59, %v2457, -inf
    %v3105 = vsel %vm59, %v2460, -inf
    %v3106 = vmax.f32 %v3104, %v3105
    %v3107 = vsel %vm59, %v2463, -inf
    %v3108 = vmax.f32 %v3106, %v3107
    %v3109 = vrot.slane %v3108, 4
    %v3110 = vmax.f32 %v3108, %v3109
    %v3111 = vrot.slane %v3110, 2
    %v3112 = vmax.f32 %v3110, %v3111
    %v3113 = vrot.slane %v3112, 1
    %v3114 = vmax.f32 %v3112, %v3113
    %v3115 = vsel %vm59, %v2466, -inf
    %v3116 = vsel %vm59, %v2469, -inf
    %v3117 = vmax.f32 %v3115, %v3116
    %v3118 = vsel %vm59, %v2472, -inf
    %v3119 = vmax.f32 %v3117, %v3118
    %v3120 = vrot.slane %v3119, 4
    %v3121 = vmax.f32 %v3119, %v3120
    %v3122 = vrot.slane %v3121, 2
    %v3123 = vmax.f32 %v3121, %v3122
    %v3124 = vrot.slane %v3123, 1
    %v3125 = vmax.f32 %v3123, %v3124
    %v3126 = vsel %vm59, %v2475, -inf
    %v3127 = vsel %vm59, %v2478, -inf
    %v3128 = vmax.f32 %v3126, %v3127
    %v3129 = vsel %vm59, %v2481, -inf
    %v3130 = vmax.f32 %v3128, %v3129
    %v3131 = vrot.slane %v3130, 4
    %v3132 = vmax.f32 %v3130, %v3131
    %v3133 = vrot.slane %v3132, 2
    %v3134 = vmax.f32 %v3132, %v3133
    %v3135 = vrot.slane %v3134, 1
    %v3136 = vmax.f32 %v3134, %v3135
    %v3137 = vsel %vm59, %v2484, -inf
    %v3138 = vsel %vm59, %v2487, -inf
    %v3139 = vmax.f32 %v3137, %v3138
    %v3140 = vsel %vm59, %v2490, -inf
    %v3141 = vmax.f32 %v3139, %v3140
    %v3142 = vrot.slane %v3141, 4
    %v3143 = vmax.f32 %v3141, %v3142
    %v3144 = vrot.slane %v3143, 2
    %v3145 = vmax.f32 %v3143, %v3144
    %v3146 = vrot.slane %v3145, 1
    %v3147 = vmax.f32 %v3145, %v3146
    %v3148 = vsel %vm59, %v2493, -inf
    %v3149 = vsel %vm59, %v2496, -inf
    %v3150 = vmax.f32 %v3148, %v3149
    %v3151 = vsel %vm59, %v2499, -inf
    %v3152 = vmax.f32 %v3150, %v3151
    %v3153 = vrot.slane %v3152, 4
    %v3154 = vmax.f32 %v3152, %v3153
    %v3155 = vrot.slane %v3154, 2
    %v3156 = vmax.f32 %v3154, %v3155
    %v3157 = vrot.slane %v3156, 1
    %v3158 = vmax.f32 %v3156, %v3157
    %v3159 = vsel %vm59, %v2502, -inf
    %v3160 = vsel %vm59, %v2505, -inf
    %v3161 = vmax.f32 %v3159, %v3160
    %v3162 = vsel %vm59, %v2508, -inf
    %v3163 = vmax.f32 %v3161, %v3162
    %v3164 = vrot.slane %v3163, 4
    %v3165 = vmax.f32 %v3163, %v3164
    %v3166 = vrot.slane %v3165, 2
    %v3167 = vmax.f32 %v3165, %v3166
    %v3168 = vrot.slane %v3167, 1
    %v3169 = vmax.f32 %v3167, %v3168
    %v3170 = vsel %vm59, %v2511, -inf
    %v3171 = vsel %vm59, %v2514, -inf
    %v3172 = vmax.f32 %v3170, %v3171
    %v3173 = vsel %vm59, %v2517, -inf
    %v3174 = vmax.f32 %v3172, %v3173
    %v3175 = vrot.slane %v3174, 4
    %v3176 = vmax.f32 %v3174, %v3175
    %v3177 = vrot.slane %v3176, 2
    %v3178 = vmax.f32 %v3176, %v3177
    %v3179 = vrot.slane %v3178, 1
    %v3180 = vmax.f32 %v3178, %v3179
    %v3181 = vsel %vm59, %v2520, -inf
    %v3182 = vsel %vm59, %v2523, -inf
    %v3183 = vmax.f32 %v3181, %v3182
    %v3184 = vsel %vm59, %v2526, -inf
    %v3185 = vmax.f32 %v3183, %v3184
    %v3186 = vrot.slane %v3185, 4
    %v3187 = vmax.f32 %v3185, %v3186
    %v3188 = vrot.slane %v3187, 2
    %v3189 = vmax.f32 %v3187, %v3188
    %v3190 = vrot.slane %v3189, 1
    %v3191 = vmax.f32 %v3189, %v3190
    %v3192 = vsel %vm59, %v2529, -inf
    %v3193 = vsel %vm59, %v2532, -inf
    %v3194 = vmax.f32 %v3192, %v3193
    %v3195 = vsel %vm59, %v2535, -inf
    %v3196 = vmax.f32 %v3194, %v3195
    %v3197 = vrot.slane %v3196, 4
    %v3198 = vmax.f32 %v3196, %v3197
    %v3199 = vrot.slane %v3198, 2
    %v3200 = vmax.f32 %v3198, %v3199
    %v3201 = vrot.slane %v3200, 1
    %v3202 = vmax.f32 %v3200, %v3201
    %v3203 = vsel %vm59, %v2538, -inf
    %v3204 = vsel %vm59, %v2541, -inf
    %v3205 = vmax.f32 %v3203, %v3204
    %v3206 = vsel %vm59, %v2544, -inf
    %v3207 = vmax.f32 %v3205, %v3206
    %v3208 = vrot.slane %v3207, 4
    %v3209 = vmax.f32 %v3207, %v3208
    %v3210 = vrot.slane %v3209, 2
    %v3211 = vmax.f32 %v3209, %v3210
    %v3212 = vrot.slane %v3211, 1
    %v3213 = vmax.f32 %v3211, %v3212
    %v3214 = vsel %vm59, %v2547, -inf
    %v3215 = vsel %vm59, %v2550, -inf
    %v3216 = vmax.f32 %v3214, %v3215
    %v3217 = vsel %vm59, %v2553, -inf
    %v3218 = vmax.f32 %v3216, %v3217
    %v3219 = vrot.slane %v3218, 4
    %v3220 = vmax.f32 %v3218, %v3219
    %v3221 = vrot.slane %v3220, 2
    %v3222 = vmax.f32 %v3220, %v3221
    %v3223 = vrot.slane %v3222, 1
    %v3224 = vmax.f32 %v3222, %v3223
    %v3225 = vsel %vm59, %v2556, -inf
    %v3226 = vsel %vm59, %v2559, -inf
    %v3227 = vmax.f32 %v3225, %v3226
    %v3228 = vsel %vm59, %v2562, -inf
    %v3229 = vmax.f32 %v3227, %v3228
    %v3230 = vrot.slane %v3229, 4
    %v3231 = vmax.f32 %v3229, %v3230
    %v3232 = vrot.slane %v3231, 2
    %v3233 = vmax.f32 %v3231, %v3232
    %v3234 = vrot.slane %v3233, 1
    %v3235 = vmax.f32 %v3233, %v3234
    %v3236 = vsel %vm59, %v2565, -inf
    %v3237 = vsel %vm59, %v2568, -inf
    %v3238 = vmax.f32 %v3236, %v3237
    %v3239 = vsel %vm59, %v2571, -inf
    %v3240 = vmax.f32 %v3238, %v3239
    %v3241 = vrot.slane %v3240, 4
    %v3242 = vmax.f32 %v3240, %v3241
    %v3243 = vrot.slane %v3242, 2
    %v3244 = vmax.f32 %v3242, %v3243
    %v3245 = vrot.slane %v3244, 1
    %v3246 = vmax.f32 %v3244, %v3245
    %v3247 = vsel %vm59, %v2574, -inf
    %v3248 = vsel %vm59, %v2577, -inf
    %v3249 = vmax.f32 %v3247, %v3248
    %v3250 = vsel %vm59, %v2580, -inf
    %v3251 = vmax.f32 %v3249, %v3250
    %v3252 = vrot.slane %v3251, 4
    %v3253 = vmax.f32 %v3251, %v3252
    %v3254 = vrot.slane %v3253, 2
    %v3255 = vmax.f32 %v3253, %v3254
    %v3256 = vrot.slane %v3255, 1
    %v3257 = vmax.f32 %v3255, %v3256
    %v3258 = vsel %vm59, %v2583, -inf
    %v3259 = vsel %vm59, %v2586, -inf
    %v3260 = vmax.f32 %v3258, %v3259
    %v3261 = vsel %vm59, %v2589, -inf
    %v3262 = vmax.f32 %v3260, %v3261
    %v3263 = vrot.slane %v3262, 4
    %v3264 = vmax.f32 %v3262, %v3263
    %v3265 = vrot.slane %v3264, 2
    %v3266 = vmax.f32 %v3264, %v3265
    %v3267 = vrot.slane %v3266, 1
    %v3268 = vmax.f32 %v3266, %v3267
    %v3269 = vsel %vm59, %v2592, -inf
    %v3270 = vsel %vm59, %v2595, -inf
    %v3271 = vmax.f32 %v3269, %v3270
    %v3272 = vsel %vm59, %v2598, -inf
    %v3273 = vmax.f32 %v3271, %v3272
    %v3274 = vrot.slane %v3273, 4
    %v3275 = vmax.f32 %v3273, %v3274
    %v3276 = vrot.slane %v3275, 2
    %v3277 = vmax.f32 %v3275, %v3276
    %v3278 = vrot.slane %v3277, 1
    %v3279 = vmax.f32 %v3277, %v3278
    %v3280 = vsel %vm59, %v2601, -inf
    %v3281 = vsel %vm59, %v2604, -inf
    %v3282 = vmax.f32 %v3280, %v3281
    %v3283 = vsel %vm59, %v2607, -inf
    %v3284 = vmax.f32 %v3282, %v3283
    %v3285 = vrot.slane %v3284, 4
    %v3286 = vmax.f32 %v3284, %v3285
    %v3287 = vrot.slane %v3286, 2
    %v3288 = vmax.f32 %v3286, %v3287
    %v3289 = vrot.slane %v3288, 1
    %v3290 = vmax.f32 %v3288, %v3289
    %v3291 = vsel %vm59, %v2610, -inf
    %v3292 = vsel %vm59, %v2613, -inf
    %v3293 = vmax.f32 %v3291, %v3292
    %v3294 = vsel %vm59, %v2616, -inf
    %v3295 = vmax.f32 %v3293, %v3294
    %v3296 = vrot.slane %v3295, 4
    %v3297 = vmax.f32 %v3295, %v3296
    %v3298 = vrot.slane %v3297, 2
    %v3299 = vmax.f32 %v3297, %v3298
    %v3300 = vrot.slane %v3299, 1
    %v3301 = vmax.f32 %v3299, %v3300
    %v3302 = vsel %vm59, %v2619, -inf
    %v3303 = vsel %vm59, %v2622, -inf
    %v3304 = vmax.f32 %v3302, %v3303
    %v3305 = vsel %vm59, %v2625, -inf
    %v3306 = vmax.f32 %v3304, %v3305
    %v3307 = vrot.slane %v3306, 4
    %v3308 = vmax.f32 %v3306, %v3307
    %v3309 = vrot.slane %v3308, 2
    %v3310 = vmax.f32 %v3308, %v3309
    %v3311 = vrot.slane %v3310, 1
    %v3312 = vmax.f32 %v3310, %v3311
    %v3313 = vsel %vm59, %v2628, -inf
    %v3314 = vsel %vm59, %v2631, -inf
    %v3315 = vmax.f32 %v3313, %v3314
    %v3316 = vsel %vm59, %v2634, -inf
    %v3317 = vmax.f32 %v3315, %v3316
    %v3318 = vrot.slane %v3317, 4
    %v3319 = vmax.f32 %v3317, %v3318
    %v3320 = vrot.slane %v3319, 2
    %v3321 = vmax.f32 %v3319, %v3320
    %v3322 = vrot.slane %v3321, 1
    %v3323 = vmax.f32 %v3321, %v3322
    %v3324 = vsel %vm59, %v2637, -inf
    %v3325 = vsel %vm59, %v2640, -inf
    %v3326 = vmax.f32 %v3324, %v3325
    %v3327 = vsel %vm59, %v2643, -inf
    %v3328 = vmax.f32 %v3326, %v3327
    %v3329 = vrot.slane %v3328, 4
    %v3330 = vmax.f32 %v3328, %v3329
    %v3331 = vrot.slane %v3330, 2
    %v3332 = vmax.f32 %v3330, %v3331
    %v3333 = vrot.slane %v3332, 1
    %v3334 = vmax.f32 %v3332, %v3333
    %v3335 = vsel %vm59, %v2646, -inf
    %v3336 = vsel %vm59, %v2649, -inf
    %v3337 = vmax.f32 %v3335, %v3336
    %v3338 = vsel %vm59, %v2652, -inf
    %v3339 = vmax.f32 %v3337, %v3338
    %v3340 = vrot.slane %v3339, 4
    %v3341 = vmax.f32 %v3339, %v3340
    %v3342 = vrot.slane %v3341, 2
    %v3343 = vmax.f32 %v3341, %v3342
    %v3344 = vrot.slane %v3343, 1
    %v3345 = vmax.f32 %v3343, %v3344
    %v3346 = vsel %vm59, %v2655, -inf
    %v3347 = vsel %vm59, %v2658, -inf
    %v3348 = vmax.f32 %v3346, %v3347
    %v3349 = vsel %vm59, %v2661, -inf
    %v3350 = vmax.f32 %v3348, %v3349
    %v3351 = vrot.slane %v3350, 4
    %v3352 = vmax.f32 %v3350, %v3351
    %v3353 = vrot.slane %v3352, 2
    %v3354 = vmax.f32 %v3352, %v3353
    %v3355 = vrot.slane %v3354, 1
    %v3356 = vmax.f32 %v3354, %v3355
    %v3357 = vsel %vm59, %v2664, -inf
    %v3358 = vsel %vm59, %v2667, -inf
    %v3359 = vmax.f32 %v3357, %v3358
    %v3360 = vsel %vm59, %v2670, -inf
    %v3361 = vmax.f32 %v3359, %v3360
    %v3362 = vrot.slane %v3361, 4
    %v3363 = vmax.f32 %v3361, %v3362
    %v3364 = vrot.slane %v3363, 2
    %v3365 = vmax.f32 %v3363, %v3364
    %v3366 = vrot.slane %v3365, 1
    %v3367 = vmax.f32 %v3365, %v3366
    %v3368 = vsel %vm59, %v2673, -inf
    %v3369 = vsel %vm59, %v2676, -inf
    %v3370 = vmax.f32 %v3368, %v3369
    %v3371 = vsel %vm59, %v2679, -inf
    %v3372 = vmax.f32 %v3370, %v3371
    %v3373 = vrot.slane %v3372, 4
    %v3374 = vmax.f32 %v3372, %v3373
    %v3375 = vrot.slane %v3374, 2
    %v3376 = vmax.f32 %v3374, %v3375
    %v3377 = vrot.slane %v3376, 1
    %v3378 = vmax.f32 %v3376, %v3377
    %v3379 = vsel %vm59, %v2682, -inf
    %v3380 = vsel %vm59, %v2685, -inf
    %v3381 = vmax.f32 %v3379, %v3380
    %v3382 = vsel %vm59, %v2688, -inf
    %v3383 = vmax.f32 %v3381, %v3382
    %v3384 = vrot.slane %v3383, 4
    %v3385 = vmax.f32 %v3383, %v3384
    %v3386 = vrot.slane %v3385, 2
    %v3387 = vmax.f32 %v3385, %v3386
    %v3388 = vrot.slane %v3387, 1
    %v3389 = vmax.f32 %v3387, %v3388
    %v3390 = vsel %vm59, %v2691, -inf
    %v3391 = vsel %vm59, %v2694, -inf
    %v3392 = vmax.f32 %v3390, %v3391
    %v3393 = vsel %vm59, %v2697, -inf
    %v3394 = vmax.f32 %v3392, %v3393
    %v3395 = vrot.slane %v3394, 4
    %v3396 = vmax.f32 %v3394, %v3395
    %v3397 = vrot.slane %v3396, 2
    %v3398 = vmax.f32 %v3396, %v3397
    %v3399 = vrot.slane %v3398, 1
    %v3400 = vmax.f32 %v3398, %v3399
    %v3401 = vsel %vm59, %v2700, -inf
    %v3402 = vsel %vm59, %v2703, -inf
    %v3403 = vmax.f32 %v3401, %v3402
    %v3404 = vsel %vm59, %v2706, -inf
    %v3405 = vmax.f32 %v3403, %v3404
    %v3406 = vrot.slane %v3405, 4
    %v3407 = vmax.f32 %v3405, %v3406
    %v3408 = vrot.slane %v3407, 2
    %v3409 = vmax.f32 %v3407, %v3408
    %v3410 = vrot.slane %v3409, 1
    %v3411 = vmax.f32 %v3409, %v3410
    %v3412 = vsub.f32 %v2133, %v2718
    %v3413 = vsub.f32 %v2136, %v2718
    %v3414 = vsub.f32 %v2139, %v2718
    %v3415 = vsub.f32 %v2142, %v2729
    %v3416 = vsub.f32 %v2145, %v2729
    %v3417 = vsub.f32 %v2148, %v2729
    %v3418 = vsub.f32 %v2151, %v2740
    %v3419 = vsub.f32 %v2154, %v2740
    %v3420 = vsub.f32 %v2157, %v2740
    %v3421 = vsub.f32 %v2160, %v2751
    %v3422 = vsub.f32 %v2163, %v2751
    %v3423 = vsub.f32 %v2166, %v2751
    %v3424 = vsub.f32 %v2169, %v2762
    %v3425 = vsub.f32 %v2172, %v2762
    %v3426 = vsub.f32 %v2175, %v2762
    %v3427 = vsub.f32 %v2178, %v2773
    %v3428 = vsub.f32 %v2181, %v2773
    %v3429 = vsub.f32 %v2184, %v2773
    %v3430 = vsub.f32 %v2187, %v2784
    %v3431 = vsub.f32 %v2190, %v2784
    %v3432 = vsub.f32 %v2193, %v2784
    %v3433 = vsub.f32 %v2196, %v2795
    %v3434 = vsub.f32 %v2199, %v2795
    %v3435 = vsub.f32 %v2202, %v2795
    %v3436 = vsub.f32 %v2205, %v2806
    %v3437 = vsub.f32 %v2208, %v2806
    %v3438 = vsub.f32 %v2211, %v2806
    %v3439 = vsub.f32 %v2214, %v2817
    %v3440 = vsub.f32 %v2217, %v2817
    %v3441 = vsub.f32 %v2220, %v2817
    %v3442 = vsub.f32 %v2223, %v2828
    %v3443 = vsub.f32 %v2226, %v2828
    %v3444 = vsub.f32 %v2229, %v2828
    %v3445 = vsub.f32 %v2232, %v2839
    %v3446 = vsub.f32 %v2235, %v2839
    %v3447 = vsub.f32 %v2238, %v2839
    %v3448 = vsub.f32 %v2241, %v2850
    %v3449 = vsub.f32 %v2244, %v2850
    %v3450 = vsub.f32 %v2247, %v2850
    %v3451 = vsub.f32 %v2250, %v2861
    %v3452 = vsub.f32 %v2253, %v2861
    %v3453 = vsub.f32 %v2256, %v2861
    %v3454 = vsub.f32 %v2259, %v2872
    %v3455 = vsub.f32 %v2262, %v2872
    %v3456 = vsub.f32 %v2265, %v2872
    %v3457 = vsub.f32 %v2268, %v2883
    %v3458 = vsub.f32 %v2271, %v2883
    %v3459 = vsub.f32 %v2274, %v2883
    %v3460 = vsub.f32 %v2277, %v2894
    %v3461 = vsub.f32 %v2280, %v2894
    %v3462 = vsub.f32 %v2283, %v2894
    %v3463 = vsub.f32 %v2286, %v2905
    %v3464 = vsub.f32 %v2289, %v2905
    %v3465 = vsub.f32 %v2292, %v2905
    %v3466 = vsub.f32 %v2295, %v2916
    %v3467 = vsub.f32 %v2298, %v2916
    %v3468 = vsub.f32 %v2301, %v2916
    %v3469 = vsub.f32 %v2304, %v2927
    %v3470 = vsub.f32 %v2307, %v2927
    %v3471 = vsub.f32 %v2310, %v2927
    %v3472 = vsub.f32 %v2313, %v2938
    %v3473 = vsub.f32 %v2316, %v2938
    %v3474 = vsub.f32 %v2319, %v2938
    %v3475 = vsub.f32 %v2322, %v2949
    %v3476 = vsub.f32 %v2325, %v2949
    %v3477 = vsub.f32 %v2328, %v2949
    %v3478 = vsub.f32 %v2331, %v2960
    %v3479 = vsub.f32 %v2334, %v2960
    %v3480 = vsub.f32 %v2337, %v2960
    %v3481 = vsub.f32 %v2340, %v2971
    %v3482 = vsub.f32 %v2343, %v2971
    %v3483 = vsub.f32 %v2346, %v2971
    %v3484 = vsub.f32 %v2349, %v2982
    %v3485 = vsub.f32 %v2352, %v2982
    %v3486 = vsub.f32 %v2355, %v2982
    %v3487 = vsub.f32 %v2358, %v2993
    %v3488 = vsub.f32 %v2361, %v2993
    %v3489 = vsub.f32 %v2364, %v2993
    %v3490 = vsub.f32 %v2367, %v3004
    %v3491 = vsub.f32 %v2370, %v3004
    %v3492 = vsub.f32 %v2373, %v3004
    %v3493 = vsub.f32 %v2376, %v3015
    %v3494 = vsub.f32 %v2379, %v3015
    %v3495 = vsub.f32 %v2382, %v3015
    %v3496 = vsub.f32 %v2385, %v3026
    %v3497 = vsub.f32 %v2388, %v3026
    %v3498 = vsub.f32 %v2391, %v3026
    %v3499 = vsub.f32 %v2394, %v3037
    %v3500 = vsub.f32 %v2397, %v3037
    %v3501 = vsub.f32 %v2400, %v3037
    %v3502 = vsub.f32 %v2403, %v3048
    %v3503 = vsub.f32 %v2406, %v3048
    %v3504 = vsub.f32 %v2409, %v3048
    %v3505 = vsub.f32 %v2412, %v3059
    %v3506 = vsub.f32 %v2415, %v3059
    %v3507 = vsub.f32 %v2418, %v3059
    %v3508 = vsub.f32 %v2421, %v3070
    %v3509 = vsub.f32 %v2424, %v3070
    %v3510 = vsub.f32 %v2427, %v3070
    %v3511 = vsub.f32 %v2430, %v3081
    %v3512 = vsub.f32 %v2433, %v3081
    %v3513 = vsub.f32 %v2436, %v3081
    %v3514 = vsub.f32 %v2439, %v3092
    %v3515 = vsub.f32 %v2442, %v3092
    %v3516 = vsub.f32 %v2445, %v3092
    %v3517 = vsub.f32 %v2448, %v3103
    %v3518 = vsub.f32 %v2451, %v3103
    %v3519 = vsub.f32 %v2454, %v3103
    %v3520 = vsub.f32 %v2457, %v3114
    %v3521 = vsub.f32 %v2460, %v3114
    %v3522 = vsub.f32 %v2463, %v3114
    %v3523 = vsub.f32 %v2466, %v3125
    %v3524 = vsub.f32 %v2469, %v3125
    %v3525 = vsub.f32 %v2472, %v3125
    %v3526 = vsub.f32 %v2475, %v3136
    %v3527 = vsub.f32 %v2478, %v3136
    %v3528 = vsub.f32 %v2481, %v3136
    %v3529 = vsub.f32 %v2484, %v3147
    %v3530 = vsub.f32 %v2487, %v3147
    %v3531 = vsub.f32 %v2490, %v3147
    %v3532 = vsub.f32 %v2493, %v3158
    %v3533 = vsub.f32 %v2496, %v3158
    %v3534 = vsub.f32 %v2499, %v3158
    %v3535 = vsub.f32 %v2502, %v3169
    %v3536 = vsub.f32 %v2505, %v3169
    %v3537 = vsub.f32 %v2508, %v3169
    %v3538 = vsub.f32 %v2511, %v3180
    %v3539 = vsub.f32 %v2514, %v3180
    %v3540 = vsub.f32 %v2517, %v3180
    %v3541 = vsub.f32 %v2520, %v3191
    %v3542 = vsub.f32 %v2523, %v3191
    %v3543 = vsub.f32 %v2526, %v3191
    %v3544 = vsub.f32 %v2529, %v3202
    %v3545 = vsub.f32 %v2532, %v3202
    %v3546 = vsub.f32 %v2535, %v3202
    %v3547 = vsub.f32 %v2538, %v3213
    %v3548 = vsub.f32 %v2541, %v3213
    %v3549 = vsub.f32 %v2544, %v3213
    %v3550 = vsub.f32 %v2547, %v3224
    %v3551 = vsub.f32 %v2550, %v3224
    %v3552 = vsub.f32 %v2553, %v3224
    %v3553 = vsub.f32 %v2556, %v3235
    %v3554 = vsub.f32 %v2559, %v3235
    %v3555 = vsub.f32 %v2562, %v3235
    %v3556 = vsub.f32 %v2565, %v3246
    %v3557 = vsub.f32 %v2568, %v3246
    %v3558 = vsub.f32 %v2571, %v3246
    %v3559 = vsub.f32 %v2574, %v3257
    %v3560 = vsub.f32 %v2577, %v3257
    %v3561 = vsub.f32 %v2580, %v3257
    %v3562 = vsub.f32 %v2583, %v3268
    %v3563 = vsub.f32 %v2586, %v3268
    %v3564 = vsub.f32 %v2589, %v3268
    %v3565 = vsub.f32 %v2592, %v3279
    %v3566 = vsub.f32 %v2595, %v3279
    %v3567 = vsub.f32 %v2598, %v3279
    %v3568 = vsub.f32 %v2601, %v3290
    %v3569 = vsub.f32 %v2604, %v3290
    %v3570 = vsub.f32 %v2607, %v3290
    %v3571 = vsub.f32 %v2610, %v3301
    %v3572 = vsub.f32 %v2613, %v3301
    %v3573 = vsub.f32 %v2616, %v3301
    %v3574 = vsub.f32 %v2619, %v3312
    %v3575 = vsub.f32 %v2622, %v3312
    %v3576 = vsub.f32 %v2625, %v3312
    %v3577 = vsub.f32 %v2628, %v3323
    %v3578 = vsub.f32 %v2631, %v3323
    %v3579 = vsub.f32 %v2634, %v3323
    %v3580 = vsub.f32 %v2637, %v3334
    %v3581 = vsub.f32 %v2640, %v3334
    %v3582 = vsub.f32 %v2643, %v3334
    %v3583 = vsub.f32 %v2646, %v3345
    %v3584 = vsub.f32 %v2649, %v3345
    %v3585 = vsub.f32 %v2652, %v3345
    %v3586 = vsub.f32 %v2655, %v3356
    %v3587 = vsub.f32 %v2658, %v3356
    %v3588 = vsub.f32 %v2661, %v3356
    %v3589 = vsub.f32 %v2664, %v3367
    %v3590 = vsub.f32 %v2667, %v3367
    %v3591 = vsub.f32 %v2670, %v3367
    %v3592 = vsub.f32 %v2673, %v3378
    %v3593 = vsub.f32 %v2676, %v3378
    %v3594 = vsub.f32 %v2679, %v3378
    %v3595 = vsub.f32 %v2682, %v3389
    %v3596 = vsub.f32 %v2685, %v3389
    %v3597 = vsub.f32 %v2688, %v3389
    %v3598 = vsub.f32 %v2691, %v3400
    %v3599 = vsub.f32 %v2694, %v3400
    %v3600 = vsub.f32 %v2697, %v3400
    %v3601 = vsub.f32 %v2700, %v3411
    %v3602 = vsub.f32 %v2703, %v3411
    %v3603 = vsub.f32 %v2706, %v3411
    %v3604 = vmul.f32 %v3412, 1.442695
    %v3605 = vpow.pop %v3604
    %v3606 = vmul.f32 %v3413, 1.442695
    %v3607 = vpow.pop %v3606
    %v3608 = vmul.f32 %v3414, 1.442695
    %v3609 = vpow.pop %v3608
    %v3610 = vmul.f32 %v3415, 1.442695
    %v3611 = vpow.pop %v3610
    %v3612 = vmul.f32 %v3416, 1.442695
    %v3613 = vpow.pop %v3612
    %v3614 = vmul.f32 %v3417, 1.442695
    %v3615 = vpow.pop %v3614
    %v3616 = vmul.f32 %v3418, 1.442695
    %v3617 = vpow.pop %v3616
    %v3618 = vmul.f32 %v3419, 1.442695
    %v3619 = vpow.pop %v3618
    %v3620 = vmul.f32 %v3420, 1.442695
    %v3621 = vpow.pop %v3620
    %v3622 = vmul.f32 %v3421, 1.442695
    %v3623 = vpow.pop %v3622
    %v3624 = vmul.f32 %v3422, 1.442695
    %v3625 = vpow.pop %v3624
    %v3626 = vmul.f32 %v3423, 1.442695
    %v3627 = vpow.pop %v3626
    %v3628 = vmul.f32 %v3424, 1.442695
    %v3629 = vpow.pop %v3628
    %v3630 = vmul.f32 %v3425, 1.442695
    %v3631 = vpow.pop %v3630
    %v3632 = vmul.f32 %v3426, 1.442695
    %v3633 = vpow.pop %v3632
    %v3634 = vmul.f32 %v3427, 1.442695
    %v3635 = vpow.pop %v3634
    %v3636 = vmul.f32 %v3428, 1.442695
    %v3637 = vpow.pop %v3636
    %v3638 = vmul.f32 %v3429, 1.442695
    %v3639 = vpow.pop %v3638
    %v3640 = vmul.f32 %v3430, 1.442695
    %v3641 = vpow.pop %v3640
    %v3642 = vmul.f32 %v3431, 1.442695
    %v3643 = vpow.pop %v3642
    %v3644 = vmul.f32 %v3432, 1.442695
    %v3645 = vpow.pop %v3644
    %v3646 = vmul.f32 %v3433, 1.442695
    %v3647 = vpow.pop %v3646
    %v3648 = vmul.f32 %v3434, 1.442695
    %v3649 = vpow.pop %v3648
    %v3650 = vmul.f32 %v3435, 1.442695
    %v3651 = vpow.pop %v3650
    %v3652 = vmul.f32 %v3436, 1.442695
    %v3653 = vpow.pop %v3652
    %v3654 = vmul.f32 %v3437, 1.442695
    %v3655 = vpow.pop %v3654
    %v3656 = vmul.f32 %v3438, 1.442695
    %v3657 = vpow.pop %v3656
    %v3658 = vmul.f32 %v3439, 1.442695
    %v3659 = vpow.pop %v3658
    %v3660 = vmul.f32 %v3440, 1.442695
    %v3661 = vpow.pop %v3660
    %v3662 = vmul.f32 %v3441, 1.442695
    %v3663 = vpow.pop %v3662
    %v3664 = vmul.f32 %v3442, 1.442695
    %v3665 = vpow.pop %v3664
    %v3666 = vmul.f32 %v3443, 1.442695
    %v3667 = vpow.pop %v3666
    %v3668 = vmul.f32 %v3444, 1.442695
    %v3669 = vpow.pop %v3668
    %v3670 = vmul.f32 %v3445, 1.442695
    %v3671 = vpow.pop %v3670
    %v3672 = vmul.f32 %v3446, 1.442695
    %v3673 = vpow.pop %v3672
    %v3674 = vmul.f32 %v3447, 1.442695
    %v3675 = vpow.pop %v3674
    %v3676 = vmul.f32 %v3448, 1.442695
    %v3677 = vpow.pop %v3676
    %v3678 = vmul.f32 %v3449, 1.442695
    %v3679 = vpow.pop %v3678
    %v3680 = vmul.f32 %v3450, 1.442695
    %v3681 = vpow.pop %v3680
    %v3682 = vmul.f32 %v3451, 1.442695
    %v3683 = vpow.pop %v3682
    %v3684 = vmul.f32 %v3452, 1.442695
    %v3685 = vpow.pop %v3684
    %v3686 = vmul.f32 %v3453, 1.442695
    %v3687 = vpow.pop %v3686
    %v3688 = vmul.f32 %v3454, 1.442695
    %v3689 = vpow.pop %v3688
    %v3690 = vmul.f32 %v3455, 1.442695
    %v3691 = vpow.pop %v3690
    %v3692 = vmul.f32 %v3456, 1.442695
    %v3693 = vpow.pop %v3692
    %v3694 = vmul.f32 %v3457, 1.442695
    %v3695 = vpow.pop %v3694
    %v3696 = vmul.f32 %v3458, 1.442695
    %v3697 = vpow.pop %v3696
    %v3698 = vmul.f32 %v3459, 1.442695
    %v3699 = vpow.pop %v3698
    %v3700 = vmul.f32 %v3460, 1.442695
    %v3701 = vpow.pop %v3700
    %v3702 = vmul.f32 %v3461, 1.442695
    %v3703 = vpow.pop %v3702
    %v3704 = vmul.f32 %v3462, 1.442695
    %v3705 = vpow.pop %v3704
    %v3706 = vmul.f32 %v3463, 1.442695
    %v3707 = vpow.pop %v3706
    %v3708 = vmul.f32 %v3464, 1.442695
    %v3709 = vpow.pop %v3708
    %v3710 = vmul.f32 %v3465, 1.442695
    %v3711 = vpow.pop %v3710
    %v3712 = vmul.f32 %v3466, 1.442695
    %v3713 = vpow.pop %v3712
    %v3714 = vmul.f32 %v3467, 1.442695
    %v3715 = vpow.pop %v3714
    %v3716 = vmul.f32 %v3468, 1.442695
    %v3717 = vpow.pop %v3716
    %v3718 = vmul.f32 %v3469, 1.442695
    %v3719 = vpow.pop %v3718
    %v3720 = vmul.f32 %v3470, 1.442695
    %v3721 = vpow.pop %v3720
    %v3722 = vmul.f32 %v3471, 1.442695
    %v3723 = vpow.pop %v3722
    %v3724 = vmul.f32 %v3472, 1.442695
    %v3725 = vpow.pop %v3724
    %v3726 = vmul.f32 %v3473, 1.442695
    %v3727 = vpow.pop %v3726
    %v3728 = vmul.f32 %v3474, 1.442695
    %v3729 = vpow.pop %v3728
    %v3730 = vmul.f32 %v3475, 1.442695
    %v3731 = vpow.pop %v3730
    %v3732 = vmul.f32 %v3476, 1.442695
    %v3733 = vpow.pop %v3732
    %v3734 = vmul.f32 %v3477, 1.442695
    %v3735 = vpow.pop %v3734
    %v3736 = vmul.f32 %v3478, 1.442695
    %v3737 = vpow.pop %v3736
    %v3738 = vmul.f32 %v3479, 1.442695
    %v3739 = vpow.pop %v3738
    %v3740 = vmul.f32 %v3480, 1.442695
    %v3741 = vpow.pop %v3740
    %v3742 = vmul.f32 %v3481, 1.442695
    %v3743 = vpow.pop %v3742
    %v3744 = vmul.f32 %v3482, 1.442695
    %v3745 = vpow.pop %v3744
    %v3746 = vmul.f32 %v3483, 1.442695
    %v3747 = vpow.pop %v3746
    %v3748 = vmul.f32 %v3484, 1.442695
    %v3749 = vpow.pop %v3748
    %v3750 = vmul.f32 %v3485, 1.442695
    %v3751 = vpow.pop %v3750
    %v3752 = vmul.f32 %v3486, 1.442695
    %v3753 = vpow.pop %v3752
    %v3754 = vmul.f32 %v3487, 1.442695
    %v3755 = vpow.pop %v3754
    %v3756 = vmul.f32 %v3488, 1.442695
    %v3757 = vpow.pop %v3756
    %v3758 = vmul.f32 %v3489, 1.442695
    %v3759 = vpow.pop %v3758
    %v3760 = vmul.f32 %v3490, 1.442695
    %v3761 = vpow.pop %v3760
    %v3762 = vmul.f32 %v3491, 1.442695
    %v3763 = vpow.pop %v3762
    %v3764 = vmul.f32 %v3492, 1.442695
    %v3765 = vpow.pop %v3764
    %v3766 = vmul.f32 %v3493, 1.442695
    %v3767 = vpow.pop %v3766
    %v3768 = vmul.f32 %v3494, 1.442695
    %v3769 = vpow.pop %v3768
    %v3770 = vmul.f32 %v3495, 1.442695
    %v3771 = vpow.pop %v3770
    %v3772 = vmul.f32 %v3496, 1.442695
    %v3773 = vpow.pop %v3772
    %v3774 = vmul.f32 %v3497, 1.442695
    %v3775 = vpow.pop %v3774
    %v3776 = vmul.f32 %v3498, 1.442695
    %v3777 = vpow.pop %v3776
    %v3778 = vmul.f32 %v3499, 1.442695
    %v3779 = vpow.pop %v3778
    %v3780 = vmul.f32 %v3500, 1.442695
    %v3781 = vpow.pop %v3780
    %v3782 = vmul.f32 %v3501, 1.442695
    %v3783 = vpow.pop %v3782
    %v3784 = vmul.f32 %v3502, 1.442695
    %v3785 = vpow.pop %v3784
    %v3786 = vmul.f32 %v3503, 1.442695
    %v3787 = vpow.pop %v3786
    %v3788 = vmul.f32 %v3504, 1.442695
    %v3789 = vpow.pop %v3788
    %v3790 = vmul.f32 %v3505, 1.442695
    %v3791 = vpow.pop %v3790
    %v3792 = vmul.f32 %v3506, 1.442695
    %v3793 = vpow.pop %v3792
    %v3794 = vmul.f32 %v3507, 1.442695
    %v3795 = vpow.pop %v3794
    %v3796 = vmul.f32 %v3508, 1.442695
    %v3797 = vpow.pop %v3796
    %v3798 = vmul.f32 %v3509, 1.442695
    %v3799 = vpow.pop %v3798
    %v3800 = vmul.f32 %v3510, 1.442695
    %v3801 = vpow.pop %v3800
    %v3802 = vmul.f32 %v3511, 1.442695
    %v3803 = vpow.pop %v3802
    %v3804 = vmul.f32 %v3512, 1.442695
    %v3805 = vpow.pop %v3804
    %v3806 = vmul.f32 %v3513, 1.442695
    %v3807 = vpow.pop %v3806
    %v3808 = vmul.f32 %v3514, 1.442695
    %v3809 = vpow.pop %v3808
    %v3810 = vmul.f32 %v3515, 1.442695
    %v3811 = vpow.pop %v3810
    %v3812 = vmul.f32 %v3516, 1.442695
    %v3813 = vpow.pop %v3812
    %v3814 = vmul.f32 %v3517, 1.442695
    %v3815 = vpow.pop %v3814
    %v3816 = vmul.f32 %v3518, 1.442695
    %v3817 = vpow.pop %v3816
    %v3818 = vmul.f32 %v3519, 1.442695
    %v3819 = vpow.pop %v3818
    %v3820 = vmul.f32 %v3520, 1.442695
    %v3821 = vpow.pop %v3820
    %v3822 = vmul.f32 %v3521, 1.442695
    %v3823 = vpow.pop %v3822
    %v3824 = vmul.f32 %v3522, 1.442695
    %v3825 = vpow.pop %v3824
    %v3826 = vmul.f32 %v3523, 1.442695
    %v3827 = vpow.pop %v3826
    %v3828 = vmul.f32 %v3524, 1.442695
    %v3829 = vpow.pop %v3828
    %v3830 = vmul.f32 %v3525, 1.442695
    %v3831 = vpow.pop %v3830
    %v3832 = vmul.f32 %v3526, 1.442695
    %v3833 = vpow.pop %v3832
    %v3834 = vmul.f32 %v3527, 1.442695
    %v3835 = vpow.pop %v3834
    %v3836 = vmul.f32 %v3528, 1.442695
    %v3837 = vpow.pop %v3836
    %v3838 = vmul.f32 %v3529, 1.442695
    %v3839 = vpow.pop %v3838
    %v3840 = vmul.f32 %v3530, 1.442695
    %v3841 = vpow.pop %v3840
    %v3842 = vmul.f32 %v3531, 1.442695
    %v3843 = vpow.pop %v3842
    %v3844 = vmul.f32 %v3532, 1.442695
    %v3845 = vpow.pop %v3844
    %v3846 = vmul.f32 %v3533, 1.442695
    %v3847 = vpow.pop %v3846
    %v3848 = vmul.f32 %v3534, 1.442695
    %v3849 = vpow.pop %v3848
    %v3850 = vmul.f32 %v3535, 1.442695
    %v3851 = vpow.pop %v3850
    %v3852 = vmul.f32 %v3536, 1.442695
    %v3853 = vpow.pop %v3852
    %v3854 = vmul.f32 %v3537, 1.442695
    %v3855 = vpow.pop %v3854
    %v3856 = vmul.f32 %v3538, 1.442695
    %v3857 = vpow.pop %v3856
    %v3858 = vmul.f32 %v3539, 1.442695
    %v3859 = vpow.pop %v3858
    %v3860 = vmul.f32 %v3540, 1.442695
    %v3861 = vpow.pop %v3860
    %v3862 = vmul.f32 %v3541, 1.442695
    %v3863 = vpow.pop %v3862
    %v3864 = vmul.f32 %v3542, 1.442695
    %v3865 = vpow.pop %v3864
    %v3866 = vmul.f32 %v3543, 1.442695
    %v3867 = vpow.pop %v3866
    %v3868 = vmul.f32 %v3544, 1.442695
    %v3869 = vpow.pop %v3868
    %v3870 = vmul.f32 %v3545, 1.442695
    %v3871 = vpow.pop %v3870
    %v3872 = vmul.f32 %v3546, 1.442695
    %v3873 = vpow.pop %v3872
    %v3874 = vmul.f32 %v3547, 1.442695
    %v3875 = vpow.pop %v3874
    %v3876 = vmul.f32 %v3548, 1.442695
    %v3877 = vpow.pop %v3876
    %v3878 = vmul.f32 %v3549, 1.442695
    %v3879 = vpow.pop %v3878
    %v3880 = vmul.f32 %v3550, 1.442695
    %v3881 = vpow.pop %v3880
    %v3882 = vmul.f32 %v3551, 1.442695
    %v3883 = vpow.pop %v3882
    %v3884 = vmul.f32 %v3552, 1.442695
    %v3885 = vpow.pop %v3884
    %v3886 = vmul.f32 %v3553, 1.442695
    %v3887 = vpow.pop %v3886
    %v3888 = vmul.f32 %v3554, 1.442695
    %v3889 = vpow.pop %v3888
    %v3890 = vmul.f32 %v3555, 1.442695
    %v3891 = vpow.pop %v3890
    %v3892 = vmul.f32 %v3556, 1.442695
    %v3893 = vpow.pop %v3892
    %v3894 = vmul.f32 %v3557, 1.442695
    %v3895 = vpow.pop %v3894
    %v3896 = vmul.f32 %v3558, 1.442695
    %v3897 = vpow.pop %v3896
    %v3898 = vmul.f32 %v3559, 1.442695
    %v3899 = vpow.pop %v3898
    %v3900 = vmul.f32 %v3560, 1.442695
    %v3901 = vpow.pop %v3900
    %v3902 = vmul.f32 %v3561, 1.442695
    %v3903 = vpow.pop %v3902
    %v3904 = vmul.f32 %v3562, 1.442695
    %v3905 = vpow.pop %v3904
    %v3906 = vmul.f32 %v3563, 1.442695
    %v3907 = vpow.pop %v3906
    %v3908 = vmul.f32 %v3564, 1.442695
    %v3909 = vpow.pop %v3908
    %v3910 = vmul.f32 %v3565, 1.442695
    %v3911 = vpow.pop %v3910
    %v3912 = vmul.f32 %v3566, 1.442695
    %v3913 = vpow.pop %v3912
    %v3914 = vmul.f32 %v3567, 1.442695
    %v3915 = vpow.pop %v3914
    %v3916 = vmul.f32 %v3568, 1.442695
    %v3917 = vpow.pop %v3916
    %v3918 = vmul.f32 %v3569, 1.442695
    %v3919 = vpow.pop %v3918
    %v3920 = vmul.f32 %v3570, 1.442695
    %v3921 = vpow.pop %v3920
    %v3922 = vmul.f32 %v3571, 1.442695
    %v3923 = vpow.pop %v3922
    %v3924 = vmul.f32 %v3572, 1.442695
    %v3925 = vpow.pop %v3924
    %v3926 = vmul.f32 %v3573, 1.442695
    %v3927 = vpow.pop %v3926
    %v3928 = vmul.f32 %v3574, 1.442695
    %v3929 = vpow.pop %v3928
    %v3930 = vmul.f32 %v3575, 1.442695
    %v3931 = vpow.pop %v3930
    %v3932 = vmul.f32 %v3576, 1.442695
    %v3933 = vpow.pop %v3932
    %v3934 = vmul.f32 %v3577, 1.442695
    %v3935 = vpow.pop %v3934
    %v3936 = vmul.f32 %v3578, 1.442695
    %v3937 = vpow.pop %v3936
    %v3938 = vmul.f32 %v3579, 1.442695
    %v3939 = vpow.pop %v3938
    %v3940 = vmul.f32 %v3580, 1.442695
    %v3941 = vpow.pop %v3940
    %v3942 = vmul.f32 %v3581, 1.442695
    %v3943 = vpow.pop %v3942
    %v3944 = vmul.f32 %v3582, 1.442695
    %v3945 = vpow.pop %v3944
    %v3946 = vmul.f32 %v3583, 1.442695
    %v3947 = vpow.pop %v3946
    %v3948 = vmul.f32 %v3584, 1.442695
    %v3949 = vpow.pop %v3948
    %v3950 = vmul.f32 %v3585, 1.442695
    %v3951 = vpow.pop %v3950
    %v3952 = vmul.f32 %v3586, 1.442695
    %v3953 = vpow.pop %v3952
    %v3954 = vmul.f32 %v3587, 1.442695
    %v3955 = vpow.pop %v3954
    %v3956 = vmul.f32 %v3588, 1.442695
    %v3957 = vpow.pop %v3956
    %v3958 = vmul.f32 %v3589, 1.442695
    %v3959 = vpow.pop %v3958
    %v3960 = vmul.f32 %v3590, 1.442695
    %v3961 = vpow.pop %v3960
    %v3962 = vmul.f32 %v3591, 1.442695
    %v3963 = vpow.pop %v3962
    %v3964 = vmul.f32 %v3592, 1.442695
    %v3965 = vpow.pop %v3964
    %v3966 = vmul.f32 %v3593, 1.442695
    %v3967 = vpow.pop %v3966
    %v3968 = vmul.f32 %v3594, 1.442695
    %v3969 = vpow.pop %v3968
    %v3970 = vmul.f32 %v3595, 1.442695
    %v3971 = vpow.pop %v3970
    %v3972 = vmul.f32 %v3596, 1.442695
    %v3973 = vpow.pop %v3972
    %v3974 = vmul.f32 %v3597, 1.442695
    %v3975 = vpow.pop %v3974
    %v3976 = vmul.f32 %v3598, 1.442695
    %v3977 = vpow.pop %v3976
    %v3978 = vmul.f32 %v3599, 1.442695
    %v3979 = vpow.pop %v3978
    %v3980 = vmul.f32 %v3600, 1.442695
    %v3981 = vpow.pop %v3980
    %v3982 = vmul.f32 %v3601, 1.442695
    %v3983 = vpow.pop %v3982
    %v3984 = vmul.f32 %v3602, 1.442695
    %v3985 = vpow.pop %v3984
    %v3986 = vmul.f32 %v3603, 1.442695
    %v3987 = vpow.pop %v3986
    %v3988 = vsel %vm59, %v3605, 0.0
    %v3989 = vsel %vm59, %v3607, 0.0
    %v3990 = vadd.f32 %v3988, %v3989
    %v3991 = vsel %vm59, %v3609, 0.0
    %v3992 = vadd.f32 %v3990, %v3991
    %v3993 = vrot.slane %v3992, 4
    %v3994 = vadd.f32 %v3992, %v3993
    %v3995 = vrot.slane %v3994, 2
    %v3996 = vadd.f32 %v3994, %v3995
    %v3997 = vrot.slane %v3996, 1
    %v3998 = vadd.f32 %v3996, %v3997
    %v3999 = vsel %vm59, %v3611, 0.0
    %v4000 = vsel %vm59, %v3613, 0.0
    %v4001 = vadd.f32 %v3999, %v4000
    %v4002 = vsel %vm59, %v3615, 0.0
    %v4003 = vadd.f32 %v4001, %v4002
    %v4004 = vrot.slane %v4003, 4
    %v4005 = vadd.f32 %v4003, %v4004
    %v4006 = vrot.slane %v4005, 2
    %v4007 = vadd.f32 %v4005, %v4006
    %v4008 = vrot.slane %v4007, 1
    %v4009 = vadd.f32 %v4007, %v4008
    %v4010 = vsel %vm59, %v3617, 0.0
    %v4011 = vsel %vm59, %v3619, 0.0
    %v4012 = vadd.f32 %v4010, %v4011
    %v4013 = vsel %vm59, %v3621, 0.0
    %v4014 = vadd.f32 %v4012, %v4013
    %v4015 = vrot.slane %v4014, 4
    %v4016 = vadd.f32 %v4014, %v4015
    %v4017 = vrot.slane %v4016, 2
    %v4018 = vadd.f32 %v4016, %v4017
    %v4019 = vrot.slane %v4018, 1
    %v4020 = vadd.f32 %v4018, %v4019
    %v4021 = vsel %vm59, %v3623, 0.0
    %v4022 = vsel %vm59, %v3625, 0.0
    %v4023 = vadd.f32 %v4021, %v4022
    %v4024 = vsel %vm59, %v3627, 0.0
    %v4025 = vadd.f32 %v4023, %v4024
    %v4026 = vrot.slane %v4025, 4
    %v4027 = vadd.f32 %v4025, %v4026
    %v4028 = vrot.slane %v4027, 2
    %v4029 = vadd.f32 %v4027, %v4028
    %v4030 = vrot.slane %v4029, 1
    %v4031 = vadd.f32 %v4029, %v4030
    %v4032 = vsel %vm59, %v3629, 0.0
    %v4033 = vsel %vm59, %v3631, 0.0
    %v4034 = vadd.f32 %v4032, %v4033
    %v4035 = vsel %vm59, %v3633, 0.0
    %v4036 = vadd.f32 %v4034, %v4035
    %v4037 = vrot.slane %v4036, 4
    %v4038 = vadd.f32 %v4036, %v4037
    %v4039 = vrot.slane %v4038, 2
    %v4040 = vadd.f32 %v4038, %v4039
    %v4041 = vrot.slane %v4040, 1
    %v4042 = vadd.f32 %v4040, %v4041
    %v4043 = vsel %vm59, %v3635, 0.0
    %v4044 = vsel %vm59, %v3637, 0.0
    %v4045 = vadd.f32 %v4043, %v4044
    %v4046 = vsel %vm59, %v3639, 0.0
    %v4047 = vadd.f32 %v4045, %v4046
    %v4048 = vrot.slane %v4047, 4
    %v4049 = vadd.f32 %v4047, %v4048
    %v4050 = vrot.slane %v4049, 2
    %v4051 = vadd.f32 %v4049, %v4050
    %v4052 = vrot.slane %v4051, 1
    %v4053 = vadd.f32 %v4051, %v4052
    %v4054 = vsel %vm59, %v3641, 0.0
    %v4055 = vsel %vm59, %v3643, 0.0
    %v4056 = vadd.f32 %v4054, %v4055
    %v4057 = vsel %vm59, %v3645, 0.0
    %v4058 = vadd.f32 %v4056, %v4057
    %v4059 = vrot.slane %v4058, 4
    %v4060 = vadd.f32 %v4058, %v4059
    %v4061 = vrot.slane %v4060, 2
    %v4062 = vadd.f32 %v4060, %v4061
    %v4063 = vrot.slane %v4062, 1
    %v4064 = vadd.f32 %v4062, %v4063
    %v4065 = vsel %vm59, %v3647, 0.0
    %v4066 = vsel %vm59, %v3649, 0.0
    %v4067 = vadd.f32 %v4065, %v4066
    %v4068 = vsel %vm59, %v3651, 0.0
    %v4069 = vadd.f32 %v4067, %v4068
    %v4070 = vrot.slane %v4069, 4
    %v4071 = vadd.f32 %v4069, %v4070
    %v4072 = vrot.slane %v4071, 2
    %v4073 = vadd.f32 %v4071, %v4072
    %v4074 = vrot.slane %v4073, 1
    %v4075 = vadd.f32 %v4073, %v4074
    %v4076 = vsel %vm59, %v3653, 0.0
    %v4077 = vsel %vm59, %v3655, 0.0
    %v4078 = vadd.f32 %v4076, %v4077
    %v4079 = vsel %vm59, %v3657, 0.0
    %v4080 = vadd.f32 %v4078, %v4079
    %v4081 = vrot.slane %v4080, 4
    %v4082 = vadd.f32 %v4080, %v4081
    %v4083 = vrot.slane %v4082, 2
    %v4084 = vadd.f32 %v4082, %v4083
    %v4085 = vrot.slane %v4084, 1
    %v4086 = vadd.f32 %v4084, %v4085
    %v4087 = vsel %vm59, %v3659, 0.0
    %v4088 = vsel %vm59, %v3661, 0.0
    %v4089 = vadd.f32 %v4087, %v4088
    %v4090 = vsel %vm59, %v3663, 0.0
    %v4091 = vadd.f32 %v4089, %v4090
    %v4092 = vrot.slane %v4091, 4
    %v4093 = vadd.f32 %v4091, %v4092
    %v4094 = vrot.slane %v4093, 2
    %v4095 = vadd.f32 %v4093, %v4094
    %v4096 = vrot.slane %v4095, 1
    %v4097 = vadd.f32 %v4095, %v4096
    %v4098 = vsel %vm59, %v3665, 0.0
    %v4099 = vsel %vm59, %v3667, 0.0
    %v4100 = vadd.f32 %v4098, %v4099
    %v4101 = vsel %vm59, %v3669, 0.0
    %v4102 = vadd.f32 %v4100, %v4101
    %v4103 = vrot.slane %v4102, 4
    %v4104 = vadd.f32 %v4102, %v4103
    %v4105 = vrot.slane %v4104, 2
    %v4106 = vadd.f32 %v4104, %v4105
    %v4107 = vrot.slane %v4106, 1
    %v4108 = vadd.f32 %v4106, %v4107
    %v4109 = vsel %vm59, %v3671, 0.0
    %v4110 = vsel %vm59, %v3673, 0.0
    %v4111 = vadd.f32 %v4109, %v4110
    %v4112 = vsel %vm59, %v3675, 0.0
    %v4113 = vadd.f32 %v4111, %v4112
    %v4114 = vrot.slane %v4113, 4
    %v4115 = vadd.f32 %v4113, %v4114
    %v4116 = vrot.slane %v4115, 2
    %v4117 = vadd.f32 %v4115, %v4116
    %v4118 = vrot.slane %v4117, 1
    %v4119 = vadd.f32 %v4117, %v4118
    %v4120 = vsel %vm59, %v3677, 0.0
    %v4121 = vsel %vm59, %v3679, 0.0
    %v4122 = vadd.f32 %v4120, %v4121
    %v4123 = vsel %vm59, %v3681, 0.0
    %v4124 = vadd.f32 %v4122, %v4123
    %v4125 = vrot.slane %v4124, 4
    %v4126 = vadd.f32 %v4124, %v4125
    %v4127 = vrot.slane %v4126, 2
    %v4128 = vadd.f32 %v4126, %v4127
    %v4129 = vrot.slane %v4128, 1
    %v4130 = vadd.f32 %v4128, %v4129
    %v4131 = vsel %vm59, %v3683, 0.0
    %v4132 = vsel %vm59, %v3685, 0.0
    %v4133 = vadd.f32 %v4131, %v4132
    %v4134 = vsel %vm59, %v3687, 0.0
    %v4135 = vadd.f32 %v4133, %v4134
    %v4136 = vrot.slane %v4135, 4
    %v4137 = vadd.f32 %v4135, %v4136
    %v4138 = vrot.slane %v4137, 2
    %v4139 = vadd.f32 %v4137, %v4138
    %v4140 = vrot.slane %v4139, 1
    %v4141 = vadd.f32 %v4139, %v4140
    %v4142 = vsel %vm59, %v3689, 0.0
    %v4143 = vsel %vm59, %v3691, 0.0
    %v4144 = vadd.f32 %v4142, %v4143
    %v4145 = vsel %vm59, %v3693, 0.0
    %v4146 = vadd.f32 %v4144, %v4145
    %v4147 = vrot.slane %v4146, 4
    %v4148 = vadd.f32 %v4146, %v4147
    %v4149 = vrot.slane %v4148, 2
    %v4150 = vadd.f32 %v4148, %v4149
    %v4151 = vrot.slane %v4150, 1
    %v4152 = vadd.f32 %v4150, %v4151
    %v4153 = vsel %vm59, %v3695, 0.0
    %v4154 = vsel %vm59, %v3697, 0.0
    %v4155 = vadd.f32 %v4153, %v4154
    %v4156 = vsel %vm59, %v3699, 0.0
    %v4157 = vadd.f32 %v4155, %v4156
    %v4158 = vrot.slane %v4157, 4
    %v4159 = vadd.f32 %v4157, %v4158
    %v4160 = vrot.slane %v4159, 2
    %v4161 = vadd.f32 %v4159, %v4160
    %v4162 = vrot.slane %v4161, 1
    %v4163 = vadd.f32 %v4161, %v4162
    %v4164 = vsel %vm59, %v3701, 0.0
    %v4165 = vsel %vm59, %v3703, 0.0
    %v4166 = vadd.f32 %v4164, %v4165
    %v4167 = vsel %vm59, %v3705, 0.0
    %v4168 = vadd.f32 %v4166, %v4167
    %v4169 = vrot.slane %v4168, 4
    %v4170 = vadd.f32 %v4168, %v4169
    %v4171 = vrot.slane %v4170, 2
    %v4172 = vadd.f32 %v4170, %v4171
    %v4173 = vrot.slane %v4172, 1
    %v4174 = vadd.f32 %v4172, %v4173
    %v4175 = vsel %vm59, %v3707, 0.0
    %v4176 = vsel %vm59, %v3709, 0.0
    %v4177 = vadd.f32 %v4175, %v4176
    %v4178 = vsel %vm59, %v3711, 0.0
    %v4179 = vadd.f32 %v4177, %v4178
    %v4180 = vrot.slane %v4179, 4
    %v4181 = vadd.f32 %v4179, %v4180
    %v4182 = vrot.slane %v4181, 2
    %v4183 = vadd.f32 %v4181, %v4182
    %v4184 = vrot.slane %v4183, 1
    %v4185 = vadd.f32 %v4183, %v4184
    %v4186 = vsel %vm59, %v3713, 0.0
    %v4187 = vsel %vm59, %v3715, 0.0
    %v4188 = vadd.f32 %v4186, %v4187
    %v4189 = vsel %vm59, %v3717, 0.0
    %v4190 = vadd.f32 %v4188, %v4189
    %v4191 = vrot.slane %v4190, 4
    %v4192 = vadd.f32 %v4190, %v4191
    %v4193 = vrot.slane %v4192, 2
    %v4194 = vadd.f32 %v4192, %v4193
    %v4195 = vrot.slane %v4194, 1
    %v4196 = vadd.f32 %v4194, %v4195
    %v4197 = vsel %vm59, %v3719, 0.0
    %v4198 = vsel %vm59, %v3721, 0.0
    %v4199 = vadd.f32 %v4197, %v4198
    %v4200 = vsel %vm59, %v3723, 0.0
    %v4201 = vadd.f32 %v4199, %v4200
    %v4202 = vrot.slane %v4201, 4
    %v4203 = vadd.f32 %v4201, %v4202
    %v4204 = vrot.slane %v4203, 2
    %v4205 = vadd.f32 %v4203, %v4204
    %v4206 = vrot.slane %v4205, 1
    %v4207 = vadd.f32 %v4205, %v4206
    %v4208 = vsel %vm59, %v3725, 0.0
    %v4209 = vsel %vm59, %v3727, 0.0
    %v4210 = vadd.f32 %v4208, %v4209
    %v4211 = vsel %vm59, %v3729, 0.0
    %v4212 = vadd.f32 %v4210, %v4211
    %v4213 = vrot.slane %v4212, 4
    %v4214 = vadd.f32 %v4212, %v4213
    %v4215 = vrot.slane %v4214, 2
    %v4216 = vadd.f32 %v4214, %v4215
    %v4217 = vrot.slane %v4216, 1
    %v4218 = vadd.f32 %v4216, %v4217
    %v4219 = vsel %vm59, %v3731, 0.0
    %v4220 = vsel %vm59, %v3733, 0.0
    %v4221 = vadd.f32 %v4219, %v4220
    %v4222 = vsel %vm59, %v3735, 0.0
    %v4223 = vadd.f32 %v4221, %v4222
    %v4224 = vrot.slane %v4223, 4
    %v4225 = vadd.f32 %v4223, %v4224
    %v4226 = vrot.slane %v4225, 2
    %v4227 = vadd.f32 %v4225, %v4226
    %v4228 = vrot.slane %v4227, 1
    %v4229 = vadd.f32 %v4227, %v4228
    %v4230 = vsel %vm59, %v3737, 0.0
    %v4231 = vsel %vm59, %v3739, 0.0
    %v4232 = vadd.f32 %v4230, %v4231
    %v4233 = vsel %vm59, %v3741, 0.0
    %v4234 = vadd.f32 %v4232, %v4233
    %v4235 = vrot.slane %v4234, 4
    %v4236 = vadd.f32 %v4234, %v4235
    %v4237 = vrot.slane %v4236, 2
    %v4238 = vadd.f32 %v4236, %v4237
    %v4239 = vrot.slane %v4238, 1
    %v4240 = vadd.f32 %v4238, %v4239
    %v4241 = vsel %vm59, %v3743, 0.0
    %v4242 = vsel %vm59, %v3745, 0.0
    %v4243 = vadd.f32 %v4241, %v4242
    %v4244 = vsel %vm59, %v3747, 0.0
    %v4245 = vadd.f32 %v4243, %v4244
    %v4246 = vrot.slane %v4245, 4
    %v4247 = vadd.f32 %v4245, %v4246
    %v4248 = vrot.slane %v4247, 2
    %v4249 = vadd.f32 %v4247, %v4248
    %v4250 = vrot.slane %v4249, 1
    %v4251 = vadd.f32 %v4249, %v4250
    %v4252 = vsel %vm59, %v3749, 0.0
    %v4253 = vsel %vm59, %v3751, 0.0
    %v4254 = vadd.f32 %v4252, %v4253
    %v4255 = vsel %vm59, %v3753, 0.0
    %v4256 = vadd.f32 %v4254, %v4255
    %v4257 = vrot.slane %v4256, 4
    %v4258 = vadd.f32 %v4256, %v4257
    %v4259 = vrot.slane %v4258, 2
    %v4260 = vadd.f32 %v4258, %v4259
    %v4261 = vrot.slane %v4260, 1
    %v4262 = vadd.f32 %v4260, %v4261
    %v4263 = vsel %vm59, %v3755, 0.0
    %v4264 = vsel %vm59, %v3757, 0.0
    %v4265 = vadd.f32 %v4263, %v4264
    %v4266 = vsel %vm59, %v3759, 0.0
    %v4267 = vadd.f32 %v4265, %v4266
    %v4268 = vrot.slane %v4267, 4
    %v4269 = vadd.f32 %v4267, %v4268
    %v4270 = vrot.slane %v4269, 2
    %v4271 = vadd.f32 %v4269, %v4270
    %v4272 = vrot.slane %v4271, 1
    %v4273 = vadd.f32 %v4271, %v4272
    %v4274 = vsel %vm59, %v3761, 0.0
    %v4275 = vsel %vm59, %v3763, 0.0
    %v4276 = vadd.f32 %v4274, %v4275
    %v4277 = vsel %vm59, %v3765, 0.0
    %v4278 = vadd.f32 %v4276, %v4277
    %v4279 = vrot.slane %v4278, 4
    %v4280 = vadd.f32 %v4278, %v4279
    %v4281 = vrot.slane %v4280, 2
    %v4282 = vadd.f32 %v4280, %v4281
    %v4283 = vrot.slane %v4282, 1
    %v4284 = vadd.f32 %v4282, %v4283
    %v4285 = vsel %vm59, %v3767, 0.0
    %v4286 = vsel %vm59, %v3769, 0.0
    %v4287 = vadd.f32 %v4285, %v4286
    %v4288 = vsel %vm59, %v3771, 0.0
    %v4289 = vadd.f32 %v4287, %v4288
    %v4290 = vrot.slane %v4289, 4
    %v4291 = vadd.f32 %v4289, %v4290
    %v4292 = vrot.slane %v4291, 2
    %v4293 = vadd.f32 %v4291, %v4292
    %v4294 = vrot.slane %v4293, 1
    %v4295 = vadd.f32 %v4293, %v4294
    %v4296 = vsel %vm59, %v3773, 0.0
    %v4297 = vsel %vm59, %v3775, 0.0
    %v4298 = vadd.f32 %v4296, %v4297
    %v4299 = vsel %vm59, %v3777, 0.0
    %v4300 = vadd.f32 %v4298, %v4299
    %v4301 = vrot.slane %v4300, 4
    %v4302 = vadd.f32 %v4300, %v4301
    %v4303 = vrot.slane %v4302, 2
    %v4304 = vadd.f32 %v4302, %v4303
    %v4305 = vrot.slane %v4304, 1
    %v4306 = vadd.f32 %v4304, %v4305
    %v4307 = vsel %vm59, %v3779, 0.0
    %v4308 = vsel %vm59, %v3781, 0.0
    %v4309 = vadd.f32 %v4307, %v4308
    %v4310 = vsel %vm59, %v3783, 0.0
    %v4311 = vadd.f32 %v4309, %v4310
    %v4312 = vrot.slane %v4311, 4
    %v4313 = vadd.f32 %v4311, %v4312
    %v4314 = vrot.slane %v4313, 2
    %v4315 = vadd.f32 %v4313, %v4314
    %v4316 = vrot.slane %v4315, 1
    %v4317 = vadd.f32 %v4315, %v4316
    %v4318 = vsel %vm59, %v3785, 0.0
    %v4319 = vsel %vm59, %v3787, 0.0
    %v4320 = vadd.f32 %v4318, %v4319
    %v4321 = vsel %vm59, %v3789, 0.0
    %v4322 = vadd.f32 %v4320, %v4321
    %v4323 = vrot.slane %v4322, 4
    %v4324 = vadd.f32 %v4322, %v4323
    %v4325 = vrot.slane %v4324, 2
    %v4326 = vadd.f32 %v4324, %v4325
    %v4327 = vrot.slane %v4326, 1
    %v4328 = vadd.f32 %v4326, %v4327
    %v4329 = vsel %vm59, %v3791, 0.0
    %v4330 = vsel %vm59, %v3793, 0.0
    %v4331 = vadd.f32 %v4329, %v4330
    %v4332 = vsel %vm59, %v3795, 0.0
    %v4333 = vadd.f32 %v4331, %v4332
    %v4334 = vrot.slane %v4333, 4
    %v4335 = vadd.f32 %v4333, %v4334
    %v4336 = vrot.slane %v4335, 2
    %v4337 = vadd.f32 %v4335, %v4336
    %v4338 = vrot.slane %v4337, 1
    %v4339 = vadd.f32 %v4337, %v4338
    %v4340 = vsel %vm59, %v3797, 0.0
    %v4341 = vsel %vm59, %v3799, 0.0
    %v4342 = vadd.f32 %v4340, %v4341
    %v4343 = vsel %vm59, %v3801, 0.0
    %v4344 = vadd.f32 %v4342, %v4343
    %v4345 = vrot.slane %v4344, 4
    %v4346 = vadd.f32 %v4344, %v4345
    %v4347 = vrot.slane %v4346, 2
    %v4348 = vadd.f32 %v4346, %v4347
    %v4349 = vrot.slane %v4348, 1
    %v4350 = vadd.f32 %v4348, %v4349
    %v4351 = vsel %vm59, %v3803, 0.0
    %v4352 = vsel %vm59, %v3805, 0.0
    %v4353 = vadd.f32 %v4351, %v4352
    %v4354 = vsel %vm59, %v3807, 0.0
    %v4355 = vadd.f32 %v4353, %v4354
    %v4356 = vrot.slane %v4355, 4
    %v4357 = vadd.f32 %v4355, %v4356
    %v4358 = vrot.slane %v4357, 2
    %v4359 = vadd.f32 %v4357, %v4358
    %v4360 = vrot.slane %v4359, 1
    %v4361 = vadd.f32 %v4359, %v4360
    %v4362 = vsel %vm59, %v3809, 0.0
    %v4363 = vsel %vm59, %v3811, 0.0
    %v4364 = vadd.f32 %v4362, %v4363
    %v4365 = vsel %vm59, %v3813, 0.0
    %v4366 = vadd.f32 %v4364, %v4365
    %v4367 = vrot.slane %v4366, 4
    %v4368 = vadd.f32 %v4366, %v4367
    %v4369 = vrot.slane %v4368, 2
    %v4370 = vadd.f32 %v4368, %v4369
    %v4371 = vrot.slane %v4370, 1
    %v4372 = vadd.f32 %v4370, %v4371
    %v4373 = vsel %vm59, %v3815, 0.0
    %v4374 = vsel %vm59, %v3817, 0.0
    %v4375 = vadd.f32 %v4373, %v4374
    %v4376 = vsel %vm59, %v3819, 0.0
    %v4377 = vadd.f32 %v4375, %v4376
    %v4378 = vrot.slane %v4377, 4
    %v4379 = vadd.f32 %v4377, %v4378
    %v4380 = vrot.slane %v4379, 2
    %v4381 = vadd.f32 %v4379, %v4380
    %v4382 = vrot.slane %v4381, 1
    %v4383 = vadd.f32 %v4381, %v4382
    %v4384 = vsel %vm59, %v3821, 0.0
    %v4385 = vsel %vm59, %v3823, 0.0
    %v4386 = vadd.f32 %v4384, %v4385
    %v4387 = vsel %vm59, %v3825, 0.0
    %v4388 = vadd.f32 %v4386, %v4387
    %v4389 = vrot.slane %v4388, 4
    %v4390 = vadd.f32 %v4388, %v4389
    %v4391 = vrot.slane %v4390, 2
    %v4392 = vadd.f32 %v4390, %v4391
    %v4393 = vrot.slane %v4392, 1
    %v4394 = vadd.f32 %v4392, %v4393
    %v4395 = vsel %vm59, %v3827, 0.0
    %v4396 = vsel %vm59, %v3829, 0.0
    %v4397 = vadd.f32 %v4395, %v4396
    %v4398 = vsel %vm59, %v3831, 0.0
    %v4399 = vadd.f32 %v4397, %v4398
    %v4400 = vrot.slane %v4399, 4
    %v4401 = vadd.f32 %v4399, %v4400
    %v4402 = vrot.slane %v4401, 2
    %v4403 = vadd.f32 %v4401, %v4402
    %v4404 = vrot.slane %v4403, 1
    %v4405 = vadd.f32 %v4403, %v4404
    %v4406 = vsel %vm59, %v3833, 0.0
    %v4407 = vsel %vm59, %v3835, 0.0
    %v4408 = vadd.f32 %v4406, %v4407
    %v4409 = vsel %vm59, %v3837, 0.0
    %v4410 = vadd.f32 %v4408, %v4409
    %v4411 = vrot.slane %v4410, 4
    %v4412 = vadd.f32 %v4410, %v4411
    %v4413 = vrot.slane %v4412, 2
    %v4414 = vadd.f32 %v4412, %v4413
    %v4415 = vrot.slane %v4414, 1
    %v4416 = vadd.f32 %v4414, %v4415
    %v4417 = vsel %vm59, %v3839, 0.0
    %v4418 = vsel %vm59, %v3841, 0.0
    %v4419 = vadd.f32 %v4417, %v4418
    %v4420 = vsel %vm59, %v3843, 0.0
    %v4421 = vadd.f32 %v4419, %v4420
    %v4422 = vrot.slane %v4421, 4
    %v4423 = vadd.f32 %v4421, %v4422
    %v4424 = vrot.slane %v4423, 2
    %v4425 = vadd.f32 %v4423, %v4424
    %v4426 = vrot.slane %v4425, 1
    %v4427 = vadd.f32 %v4425, %v4426
    %v4428 = vsel %vm59, %v3845, 0.0
    %v4429 = vsel %vm59, %v3847, 0.0
    %v4430 = vadd.f32 %v4428, %v4429
    %v4431 = vsel %vm59, %v3849, 0.0
    %v4432 = vadd.f32 %v4430, %v4431
    %v4433 = vrot.slane %v4432, 4
    %v4434 = vadd.f32 %v4432, %v4433
    %v4435 = vrot.slane %v4434, 2
    %v4436 = vadd.f32 %v4434, %v4435
    %v4437 = vrot.slane %v4436, 1
    %v4438 = vadd.f32 %v4436, %v4437
    %v4439 = vsel %vm59, %v3851, 0.0
    %v4440 = vsel %vm59, %v3853, 0.0
    %v4441 = vadd.f32 %v4439, %v4440
    %v4442 = vsel %vm59, %v3855, 0.0
    %v4443 = vadd.f32 %v4441, %v4442
    %v4444 = vrot.slane %v4443, 4
    %v4445 = vadd.f32 %v4443, %v4444
    %v4446 = vrot.slane %v4445, 2
    %v4447 = vadd.f32 %v4445, %v4446
    %v4448 = vrot.slane %v4447, 1
    %v4449 = vadd.f32 %v4447, %v4448
    %v4450 = vsel %vm59, %v3857, 0.0
    %v4451 = vsel %vm59, %v3859, 0.0
    %v4452 = vadd.f32 %v4450, %v4451
    %v4453 = vsel %vm59, %v3861, 0.0
    %v4454 = vadd.f32 %v4452, %v4453
    %v4455 = vrot.slane %v4454, 4
    %v4456 = vadd.f32 %v4454, %v4455
    %v4457 = vrot.slane %v4456, 2
    %v4458 = vadd.f32 %v4456, %v4457
    %v4459 = vrot.slane %v4458, 1
    %v4460 = vadd.f32 %v4458, %v4459
    %v4461 = vsel %vm59, %v3863, 0.0
    %v4462 = vsel %vm59, %v3865, 0.0
    %v4463 = vadd.f32 %v4461, %v4462
    %v4464 = vsel %vm59, %v3867, 0.0
    %v4465 = vadd.f32 %v4463, %v4464
    %v4466 = vrot.slane %v4465, 4
    %v4467 = vadd.f32 %v4465, %v4466
    %v4468 = vrot.slane %v4467, 2
    %v4469 = vadd.f32 %v4467, %v4468
    %v4470 = vrot.slane %v4469, 1
    %v4471 = vadd.f32 %v4469, %v4470
    %v4472 = vsel %vm59, %v3869, 0.0
    %v4473 = vsel %vm59, %v3871, 0.0
    %v4474 = vadd.f32 %v4472, %v4473
    %v4475 = vsel %vm59, %v3873, 0.0
    %v4476 = vadd.f32 %v4474, %v4475
    %v4477 = vrot.slane %v4476, 4
    %v4478 = vadd.f32 %v4476, %v4477
    %v4479 = vrot.slane %v4478, 2
    %v4480 = vadd.f32 %v4478, %v4479
    %v4481 = vrot.slane %v4480, 1
    %v4482 = vadd.f32 %v4480, %v4481
    %v4483 = vsel %vm59, %v3875, 0.0
    %v4484 = vsel %vm59, %v3877, 0.0
    %v4485 = vadd.f32 %v4483, %v4484
    %v4486 = vsel %vm59, %v3879, 0.0
    %v4487 = vadd.f32 %v4485, %v4486
    %v4488 = vrot.slane %v4487, 4
    %v4489 = vadd.f32 %v4487, %v4488
    %v4490 = vrot.slane %v4489, 2
    %v4491 = vadd.f32 %v4489, %v4490
    %v4492 = vrot.slane %v4491, 1
    %v4493 = vadd.f32 %v4491, %v4492
    %v4494 = vsel %vm59, %v3881, 0.0
    %v4495 = vsel %vm59, %v3883, 0.0
    %v4496 = vadd.f32 %v4494, %v4495
    %v4497 = vsel %vm59, %v3885, 0.0
    %v4498 = vadd.f32 %v4496, %v4497
    %v4499 = vrot.slane %v4498, 4
    %v4500 = vadd.f32 %v4498, %v4499
    %v4501 = vrot.slane %v4500, 2
    %v4502 = vadd.f32 %v4500, %v4501
    %v4503 = vrot.slane %v4502, 1
    %v4504 = vadd.f32 %v4502, %v4503
    %v4505 = vsel %vm59, %v3887, 0.0
    %v4506 = vsel %vm59, %v3889, 0.0
    %v4507 = vadd.f32 %v4505, %v4506
    %v4508 = vsel %vm59, %v3891, 0.0
    %v4509 = vadd.f32 %v4507, %v4508
    %v4510 = vrot.slane %v4509, 4
    %v4511 = vadd.f32 %v4509, %v4510
    %v4512 = vrot.slane %v4511, 2
    %v4513 = vadd.f32 %v4511, %v4512
    %v4514 = vrot.slane %v4513, 1
    %v4515 = vadd.f32 %v4513, %v4514
    %v4516 = vsel %vm59, %v3893, 0.0
    %v4517 = vsel %vm59, %v3895, 0.0
    %v4518 = vadd.f32 %v4516, %v4517
    %v4519 = vsel %vm59, %v3897, 0.0
    %v4520 = vadd.f32 %v4518, %v4519
    %v4521 = vrot.slane %v4520, 4
    %v4522 = vadd.f32 %v4520, %v4521
    %v4523 = vrot.slane %v4522, 2
    %v4524 = vadd.f32 %v4522, %v4523
    %v4525 = vrot.slane %v4524, 1
    %v4526 = vadd.f32 %v4524, %v4525
    %v4527 = vsel %vm59, %v3899, 0.0
    %v4528 = vsel %vm59, %v3901, 0.0
    %v4529 = vadd.f32 %v4527, %v4528
    %v4530 = vsel %vm59, %v3903, 0.0
    %v4531 = vadd.f32 %v4529, %v4530
    %v4532 = vrot.slane %v4531, 4
    %v4533 = vadd.f32 %v4531, %v4532
    %v4534 = vrot.slane %v4533, 2
    %v4535 = vadd.f32 %v4533, %v4534
    %v4536 = vrot.slane %v4535, 1
    %v4537 = vadd.f32 %v4535, %v4536
    %v4538 = vsel %vm59, %v3905, 0.0
    %v4539 = vsel %vm59, %v3907, 0.0
    %v4540 = vadd.f32 %v4538, %v4539
    %v4541 = vsel %vm59, %v3909, 0.0
    %v4542 = vadd.f32 %v4540, %v4541
    %v4543 = vrot.slane %v4542, 4
    %v4544 = vadd.f32 %v4542, %v4543
    %v4545 = vrot.slane %v4544, 2
    %v4546 = vadd.f32 %v4544, %v4545
    %v4547 = vrot.slane %v4546, 1
    %v4548 = vadd.f32 %v4546, %v4547
    %v4549 = vsel %vm59, %v3911, 0.0
    %v4550 = vsel %vm59, %v3913, 0.0
    %v4551 = vadd.f32 %v4549, %v4550
    %v4552 = vsel %vm59, %v3915, 0.0
    %v4553 = vadd.f32 %v4551, %v4552
    %v4554 = vrot.slane %v4553, 4
    %v4555 = vadd.f32 %v4553, %v4554
    %v4556 = vrot.slane %v4555, 2
    %v4557 = vadd.f32 %v4555, %v4556
    %v4558 = vrot.slane %v4557, 1
    %v4559 = vadd.f32 %v4557, %v4558
    %v4560 = vsel %vm59, %v3917, 0.0
    %v4561 = vsel %vm59, %v3919, 0.0
    %v4562 = vadd.f32 %v4560, %v4561
    %v4563 = vsel %vm59, %v3921, 0.0
    %v4564 = vadd.f32 %v4562, %v4563
    %v4565 = vrot.slane %v4564, 4
    %v4566 = vadd.f32 %v4564, %v4565
    %v4567 = vrot.slane %v4566, 2
    %v4568 = vadd.f32 %v4566, %v4567
    %v4569 = vrot.slane %v4568, 1
    %v4570 = vadd.f32 %v4568, %v4569
    %v4571 = vsel %vm59, %v3923, 0.0
    %v4572 = vsel %vm59, %v3925, 0.0
    %v4573 = vadd.f32 %v4571, %v4572
    %v4574 = vsel %vm59, %v3927, 0.0
    %v4575 = vadd.f32 %v4573, %v4574
    %v4576 = vrot.slane %v4575, 4
    %v4577 = vadd.f32 %v4575, %v4576
    %v4578 = vrot.slane %v4577, 2
    %v4579 = vadd.f32 %v4577, %v4578
    %v4580 = vrot.slane %v4579, 1
    %v4581 = vadd.f32 %v4579, %v4580
    %v4582 = vsel %vm59, %v3929, 0.0
    %v4583 = vsel %vm59, %v3931, 0.0
    %v4584 = vadd.f32 %v4582, %v4583
    %v4585 = vsel %vm59, %v3933, 0.0
    %v4586 = vadd.f32 %v4584, %v4585
    %v4587 = vrot.slane %v4586, 4
    %v4588 = vadd.f32 %v4586, %v4587
    %v4589 = vrot.slane %v4588, 2
    %v4590 = vadd.f32 %v4588, %v4589
    %v4591 = vrot.slane %v4590, 1
    %v4592 = vadd.f32 %v4590, %v4591
    %v4593 = vsel %vm59, %v3935, 0.0
    %v4594 = vsel %vm59, %v3937, 0.0
    %v4595 = vadd.f32 %v4593, %v4594
    %v4596 = vsel %vm59, %v3939, 0.0
    %v4597 = vadd.f32 %v4595, %v4596
    %v4598 = vrot.slane %v4597, 4
    %v4599 = vadd.f32 %v4597, %v4598
    %v4600 = vrot.slane %v4599, 2
    %v4601 = vadd.f32 %v4599, %v4600
    %v4602 = vrot.slane %v4601, 1
    %v4603 = vadd.f32 %v4601, %v4602
    %v4604 = vsel %vm59, %v3941, 0.0
    %v4605 = vsel %vm59, %v3943, 0.0
    %v4606 = vadd.f32 %v4604, %v4605
    %v4607 = vsel %vm59, %v3945, 0.0
    %v4608 = vadd.f32 %v4606, %v4607
    %v4609 = vrot.slane %v4608, 4
    %v4610 = vadd.f32 %v4608, %v4609
    %v4611 = vrot.slane %v4610, 2
    %v4612 = vadd.f32 %v4610, %v4611
    %v4613 = vrot.slane %v4612, 1
    %v4614 = vadd.f32 %v4612, %v4613
    %v4615 = vsel %vm59, %v3947, 0.0
    %v4616 = vsel %vm59, %v3949, 0.0
    %v4617 = vadd.f32 %v4615, %v4616
    %v4618 = vsel %vm59, %v3951, 0.0
    %v4619 = vadd.f32 %v4617, %v4618
    %v4620 = vrot.slane %v4619, 4
    %v4621 = vadd.f32 %v4619, %v4620
    %v4622 = vrot.slane %v4621, 2
    %v4623 = vadd.f32 %v4621, %v4622
    %v4624 = vrot.slane %v4623, 1
    %v4625 = vadd.f32 %v4623, %v4624
    %v4626 = vsel %vm59, %v3953, 0.0
    %v4627 = vsel %vm59, %v3955, 0.0
    %v4628 = vadd.f32 %v4626, %v4627
    %v4629 = vsel %vm59, %v3957, 0.0
    %v4630 = vadd.f32 %v4628, %v4629
    %v4631 = vrot.slane %v4630, 4
    %v4632 = vadd.f32 %v4630, %v4631
    %v4633 = vrot.slane %v4632, 2
    %v4634 = vadd.f32 %v4632, %v4633
    %v4635 = vrot.slane %v4634, 1
    %v4636 = vadd.f32 %v4634, %v4635
    %v4637 = vsel %vm59, %v3959, 0.0
    %v4638 = vsel %vm59, %v3961, 0.0
    %v4639 = vadd.f32 %v4637, %v4638
    %v4640 = vsel %vm59, %v3963, 0.0
    %v4641 = vadd.f32 %v4639, %v4640
    %v4642 = vrot.slane %v4641, 4
    %v4643 = vadd.f32 %v4641, %v4642
    %v4644 = vrot.slane %v4643, 2
    %v4645 = vadd.f32 %v4643, %v4644
    %v4646 = vrot.slane %v4645, 1
    %v4647 = vadd.f32 %v4645, %v4646
    %v4648 = vsel %vm59, %v3965, 0.0
    %v4649 = vsel %vm59, %v3967, 0.0
    %v4650 = vadd.f32 %v4648, %v4649
    %v4651 = vsel %vm59, %v3969, 0.0
    %v4652 = vadd.f32 %v4650, %v4651
    %v4653 = vrot.slane %v4652, 4
    %v4654 = vadd.f32 %v4652, %v4653
    %v4655 = vrot.slane %v4654, 2
    %v4656 = vadd.f32 %v4654, %v4655
    %v4657 = vrot.slane %v4656, 1
    %v4658 = vadd.f32 %v4656, %v4657
    %v4659 = vsel %vm59, %v3971, 0.0
    %v4660 = vsel %vm59, %v3973, 0.0
    %v4661 = vadd.f32 %v4659, %v4660
    %v4662 = vsel %vm59, %v3975, 0.0
    %v4663 = vadd.f32 %v4661, %v4662
    %v4664 = vrot.slane %v4663, 4
    %v4665 = vadd.f32 %v4663, %v4664
    %v4666 = vrot.slane %v4665, 2
    %v4667 = vadd.f32 %v4665, %v4666
    %v4668 = vrot.slane %v4667, 1
    %v4669 = vadd.f32 %v4667, %v4668
    %v4670 = vsel %vm59, %v3977, 0.0
    %v4671 = vsel %vm59, %v3979, 0.0
    %v4672 = vadd.f32 %v4670, %v4671
    %v4673 = vsel %vm59, %v3981, 0.0
    %v4674 = vadd.f32 %v4672, %v4673
    %v4675 = vrot.slane %v4674, 4
    %v4676 = vadd.f32 %v4674, %v4675
    %v4677 = vrot.slane %v4676, 2
    %v4678 = vadd.f32 %v4676, %v4677
    %v4679 = vrot.slane %v4678, 1
    %v4680 = vadd.f32 %v4678, %v4679
    %v4681 = vsel %vm59, %v3983, 0.0
    %v4682 = vsel %vm59, %v3985, 0.0
    %v4683 = vadd.f32 %v4681, %v4682
    %v4684 = vsel %vm59, %v3987, 0.0
    %v4685 = vadd.f32 %v4683, %v4684
    %v4686 = vrot.slane %v4685, 4
    %v4687 = vadd.f32 %v4685, %v4686
    %v4688 = vrot.slane %v4687, 2
    %v4689 = vadd.f32 %v4687, %v4688
    %v4690 = vrot.slane %v4689, 1
    %v4691 = vadd.f32 %v4689, %v4690
    %v4692 = vlog2.pop %v3998
    %v4693 = vmul.f32 %v4692, 0.6931472
    %v4694 = vlog2.pop %v4009
    %v4695 = vmul.f32 %v4694, 0.6931472
    %v4696 = vlog2.pop %v4020
    %v4697 = vmul.f32 %v4696, 0.6931472
    %v4698 = vlog2.pop %v4031
    %v4699 = vmul.f32 %v4698, 0.6931472
    %v4700 = vlog2.pop %v4042
    %v4701 = vmul.f32 %v4700, 0.6931472
    %v4702 = vlog2.pop %v4053
    %v4703 = vmul.f32 %v4702, 0.6931472
    %v4704 = vlog2.pop %v4064
    %v4705 = vmul.f32 %v4704, 0.6931472
    %v4706 = vlog2.pop %v4075
    %v4707 = vmul.f32 %v4706, 0.6931472
    %v4708 = vlog2.pop %v4086
    %v4709 = vmul.f32 %v4708, 0.6931472
    %v4710 = vlog2.pop %v4097
    %v4711 = vmul.f32 %v4710, 0.6931472
    %v4712 = vlog2.pop %v4108
    %v4713 = vmul.f32 %v4712, 0.6931472
    %v4714 = vlog2.pop %v4119
    %v4715 = vmul.f32 %v4714, 0.6931472
    %v4716 = vlog2.pop %v4130
    %v4717 = vmul.f32 %v4716, 0.6931472
    %v4718 = vlog2.pop %v4141
    %v4719 = vmul.f32 %v4718, 0.6931472
    %v4720 = vlog2.pop %v4152
    %v4721 = vmul.f32 %v4720, 0.6931472
    %v4722 = vlog2.pop %v4163
    %v4723 = vmul.f32 %v4722, 0.6931472
    %v4724 = vlog2.pop %v4174
    %v4725 = vmul.f32 %v4724, 0.6931472
    %v4726 = vlog2.pop %v4185
    %v4727 = vmul.f32 %v4726, 0.6931472
    %v4728 = vlog2.pop %v4196
    %v4729 = vmul.f32 %v4728, 0.6931472
    %v4730 = vlog2.pop %v4207
    %v4731 = vmul.f32 %v4730, 0.6931472
    %v4732 = vlog2.pop %v4218
    %v4733 = vmul.f32 %v4732, 0.6931472
    %v4734 = vlog2.pop %v4229
    %v4735 = vmul.f32 %v4734, 0.6931472
    %v4736 = vlog2.pop %v4240
    %v4737 = vmul.f32 %v4736, 0.6931472
    %v4738 = vlog2.pop %v4251
    %v4739 = vmul.f32 %v4738, 0.6931472
    %v4740 = vlog2.pop %v4262
    %v4741 = vmul.f32 %v4740, 0.6931472
    %v4742 = vlog2.pop %v4273
    %v4743 = vmul.f32 %v4742, 0.6931472
    %v4744 = vlog2.pop %v4284
    %v4745 = vmul.f32 %v4744, 0.6931472
    %v4746 = vlog2.pop %v4295
    %v4747 = vmul.f32 %v4746, 0.6931472
    %v4748 = vlog2.pop %v4306
    %v4749 = vmul.f32 %v4748, 0.6931472
    %v4750 = vlog2.pop %v4317
    %v4751 = vmul.f32 %v4750, 0.6931472
    %v4752 = vlog2.pop %v4328
    %v4753 = vmul.f32 %v4752, 0.6931472
    %v4754 = vlog2.pop %v4339
    %v4755 = vmul.f32 %v4754, 0.6931472
    %v4756 = vlog2.pop %v4350
    %v4757 = vmul.f32 %v4756, 0.6931472
    %v4758 = vlog2.pop %v4361
    %v4759 = vmul.f32 %v4758, 0.6931472
    %v4760 = vlog2.pop %v4372
    %v4761 = vmul.f32 %v4760, 0.6931472
    %v4762 = vlog2.pop %v4383
    %v4763 = vmul.f32 %v4762, 0.6931472
    %v4764 = vlog2.pop %v4394
    %v4765 = vmul.f32 %v4764, 0.6931472
    %v4766 = vlog2.pop %v4405
    %v4767 = vmul.f32 %v4766, 0.6931472
    %v4768 = vlog2.pop %v4416
    %v4769 = vmul.f32 %v4768, 0.6931472
    %v4770 = vlog2.pop %v4427
    %v4771 = vmul.f32 %v4770, 0.6931472
    %v4772 = vlog2.pop %v4438
    %v4773 = vmul.f32 %v4772, 0.6931472
    %v4774 = vlog2.pop %v4449
    %v4775 = vmul.f32 %v4774, 0.6931472
    %v4776 = vlog2.pop %v4460
    %v4777 = vmul.f32 %v4776, 0.6931472
    %v4778 = vlog2.pop %v4471
    %v4779 = vmul.f32 %v4778, 0.6931472
    %v4780 = vlog2.pop %v4482
    %v4781 = vmul.f32 %v4780, 0.6931472
    %v4782 = vlog2.pop %v4493
    %v4783 = vmul.f32 %v4782, 0.6931472
    %v4784 = vlog2.pop %v4504
    %v4785 = vmul.f32 %v4784, 0.6931472
    %v4786 = vlog2.pop %v4515
    %v4787 = vmul.f32 %v4786, 0.6931472
    %v4788 = vlog2.pop %v4526
    %v4789 = vmul.f32 %v4788, 0.6931472
    %v4790 = vlog2.pop %v4537
    %v4791 = vmul.f32 %v4790, 0.6931472
    %v4792 = vlog2.pop %v4548
    %v4793 = vmul.f32 %v4792, 0.6931472
    %v4794 = vlog2.pop %v4559
    %v4795 = vmul.f32 %v4794, 0.6931472
    %v4796 = vlog2.pop %v4570
    %v4797 = vmul.f32 %v4796, 0.6931472
    %v4798 = vlog2.pop %v4581
    %v4799 = vmul.f32 %v4798, 0.6931472
    %v4800 = vlog2.pop %v4592
    %v4801 = vmul.f32 %v4800, 0.6931472
    %v4802 = vlog2.pop %v4603
    %v4803 = vmul.f32 %v4802, 0.6931472
    %v4804 = vlog2.pop %v4614
    %v4805 = vmul.f32 %v4804, 0.6931472
    %v4806 = vlog2.pop %v4625
    %v4807 = vmul.f32 %v4806, 0.6931472
    %v4808 = vlog2.pop %v4636
    %v4809 = vmul.f32 %v4808, 0.6931472
    %v4810 = vlog2.pop %v4647
    %v4811 = vmul.f32 %v4810, 0.6931472
    %v4812 = vlog2.pop %v4658
    %v4813 = vmul.f32 %v4812, 0.6931472
    %v4814 = vlog2.pop %v4669
    %v4815 = vmul.f32 %v4814, 0.6931472
    %v4816 = vlog2.pop %v4680
    %v4817 = vmul.f32 %v4816, 0.6931472
    %v4818 = vlog2.pop %v4691
    %v4819 = vmul.f32 %v4818, 0.6931472
    %v4820 = vlaneseq
    %v4821 = vshrl.u32 %v4820, 7
    %v4822 = vadd.s32 %v4821, 8
    %v4823 = vadd.s32 %v4821, 16
    %v4824 = vld [vmem:[%s0] sm:$0x1]
    %v4825 = vld [vmem:[%s0 + $0x1] sm:$0x1]
    %v4826 = vld [vmem:[%s0 + $0x2] sm:$0x1]
    %v4827 = vld [vmem:[%s0 + $0x3] sm:$0x1]
    %v4828 = vld [vmem:[%s0 + $0x4] sm:$0x1]
    %v4829 = vld [vmem:[%s0 + $0x5] sm:$0x1]
    %v4830 = vld [vmem:[%s0 + $0x6] sm:$0x1]
    %v4831 = vld [vmem:[%s0 + $0x7] sm:$0x1]
    %v4832 = vld [vmem:[%s0 + $0x8] sm:$0x1]
    %v4833 = vld [vmem:[%s0 + $0x9] sm:$0x1]
    %v4834 = vld [vmem:[%s0 + $0xa] sm:$0x1]
    %v4835 = vld [vmem:[%s0 + $0xb] sm:$0x1]
    %v4836 = vld [vmem:[%s0 + $0xc] sm:$0x1]
    %v4837 = vld [vmem:[%s0 + $0xd] sm:$0x1]
    %v4838 = vld [vmem:[%s0 + $0xe] sm:$0x1]
    %v4839 = vld [vmem:[%s0 + $0xf] sm:$0x1]
    %v4840 = vld [vmem:[%s0 + $0x10] sm:$0x1]
    %v4841 = vld [vmem:[%s0 + $0x11] sm:$0x1]
    %v4842 = vld [vmem:[%s0 + $0x12] sm:$0x1]
    %v4843 = vld [vmem:[%s0 + $0x13] sm:$0x1]
    %v4844 = vld [vmem:[%s0 + $0x14] sm:$0x1]
    %v4845 = vld [vmem:[%s0 + $0x15] sm:$0x1]
    %v4846 = vld [vmem:[%s0 + $0x16] sm:$0x1]
    %v4847 = vld [vmem:[%s0 + $0x17] sm:$0x1]
    %v4848 = vld [vmem:[%s0 + $0x18] sm:$0x1]
    %v4849 = vld [vmem:[%s0 + $0x19] sm:$0x1]
    %v4850 = vld [vmem:[%s0 + $0x1a] sm:$0x1]
    %v4851 = vld [vmem:[%s0 + $0x1b] sm:$0x1]
    %v4852 = vld [vmem:[%s0 + $0x1c] sm:$0x1]
    %v4853 = vld [vmem:[%s0 + $0x1d] sm:$0x1]
    %v4854 = vld [vmem:[%s0 + $0x1e] sm:$0x1]
    %v4855 = vld [vmem:[%s0 + $0x1f] sm:$0x1]
    %v4856 = vld [vmem:[%s0 + $0x20] sm:$0x1]
    %v4857 = vld [vmem:[%s0 + $0x21] sm:$0x1]
    %v4858 = vld [vmem:[%s0 + $0x22] sm:$0x1]
    %v4859 = vld [vmem:[%s0 + $0x23] sm:$0x1]
    %v4860 = vld [vmem:[%s0 + $0x24] sm:$0x1]
    %v4861 = vld [vmem:[%s0 + $0x25] sm:$0x1]
    %v4862 = vld [vmem:[%s0 + $0x26] sm:$0x1]
    %v4863 = vld [vmem:[%s0 + $0x27] sm:$0x1]
    %v4864 = vld [vmem:[%s0 + $0x28] sm:$0x1]
    %v4865 = vld [vmem:[%s0 + $0x29] sm:$0x1]
    %v4866 = vld [vmem:[%s0 + $0x2a] sm:$0x1]
    %v4867 = vld [vmem:[%s0 + $0x2b] sm:$0x1]
    %v4868 = vld [vmem:[%s0 + $0x2c] sm:$0x1]
    %v4869 = vld [vmem:[%s0 + $0x2d] sm:$0x1]
    %v4870 = vld [vmem:[%s0 + $0x2e] sm:$0x1]
    %v4871 = vld [vmem:[%s0 + $0x2f] sm:$0x1]
    %v4872 = vld [vmem:[%s0 + $0x30] sm:$0x1]
    %v4873 = vld [vmem:[%s0 + $0x31] sm:$0x1]
    %v4874 = vld [vmem:[%s0 + $0x32] sm:$0x1]
    %v4875 = vld [vmem:[%s0 + $0x33] sm:$0x1]
    %v4876 = vld [vmem:[%s0 + $0x34] sm:$0x1]
    %v4877 = vld [vmem:[%s0 + $0x35] sm:$0x1]
    %v4878 = vld [vmem:[%s0 + $0x36] sm:$0x1]
    %v4879 = vld [vmem:[%s0 + $0x37] sm:$0x1]
    %v4880 = vld [vmem:[%s0 + $0x38] sm:$0x1]
    %v4881 = vld [vmem:[%s0 + $0x39] sm:$0x1]
    %v4882 = vld [vmem:[%s0 + $0x3a] sm:$0x1]
    %v4883 = vld [vmem:[%s0 + $0x3b] sm:$0x1]
    %v4884 = vld [vmem:[%s0 + $0x3c] sm:$0x1]
    %v4885 = vld [vmem:[%s0 + $0x3d] sm:$0x1]
    %v4886 = vld [vmem:[%s0 + $0x3e] sm:$0x1]
    %v4887 = vld [vmem:[%s0 + $0x3f] sm:$0x1]
    %v4888 = vperm.slane %v4824, 0
    %v4889 = vperm.slane %v4825, 0
    %v4890 = vperm.slane %v4826, 0
    %v4891 = vperm.slane %v4827, 0
    %v4892 = vperm.slane %v4828, 0
    %v4893 = vperm.slane %v4829, 0
    %v4894 = vperm.slane %v4830, 0
    %v4895 = vperm.slane %v4831, 0
    %v4896 = vperm.slane %v4832, 0
    %v4897 = vperm.slane %v4833, 0
    %v4898 = vperm.slane %v4834, 0
    %v4899 = vperm.slane %v4835, 0
    %v4900 = vperm.slane %v4836, 0
    %v4901 = vperm.slane %v4837, 0
    %v4902 = vperm.slane %v4838, 0
    %v4903 = vperm.slane %v4839, 0
    %v4904 = vperm.slane %v4840, 0
    %v4905 = vperm.slane %v4841, 0
    %v4906 = vperm.slane %v4842, 0
    %v4907 = vperm.slane %v4843, 0
    %v4908 = vperm.slane %v4844, 0
    %v4909 = vperm.slane %v4845, 0
    %v4910 = vperm.slane %v4846, 0
    %v4911 = vperm.slane %v4847, 0
    %v4912 = vperm.slane %v4848, 0
    %v4913 = vperm.slane %v4849, 0
    %v4914 = vperm.slane %v4850, 0
    %v4915 = vperm.slane %v4851, 0
    %v4916 = vperm.slane %v4852, 0
    %v4917 = vperm.slane %v4853, 0
    %v4918 = vperm.slane %v4854, 0
    %v4919 = vperm.slane %v4855, 0
    %v4920 = vperm.slane %v4856, 0
    %v4921 = vperm.slane %v4857, 0
    %v4922 = vperm.slane %v4858, 0
    %v4923 = vperm.slane %v4859, 0
    %v4924 = vperm.slane %v4860, 0
    %v4925 = vperm.slane %v4861, 0
    %v4926 = vperm.slane %v4862, 0
    %v4927 = vperm.slane %v4863, 0
    %v4928 = vperm.slane %v4864, 0
    %v4929 = vperm.slane %v4865, 0
    %v4930 = vperm.slane %v4866, 0
    %v4931 = vperm.slane %v4867, 0
    %v4932 = vperm.slane %v4868, 0
    %v4933 = vperm.slane %v4869, 0
    %v4934 = vperm.slane %v4870, 0
    %v4935 = vperm.slane %v4871, 0
    %v4936 = vperm.slane %v4872, 0
    %v4937 = vperm.slane %v4873, 0
    %v4938 = vperm.slane %v4874, 0
    %v4939 = vperm.slane %v4875, 0
    %v4940 = vperm.slane %v4876, 0
    %v4941 = vperm.slane %v4877, 0
    %v4942 = vperm.slane %v4878, 0
    %v4943 = vperm.slane %v4879, 0
    %v4944 = vperm.slane %v4880, 0
    %v4945 = vperm.slane %v4881, 0
    %v4946 = vperm.slane %v4882, 0
    %v4947 = vperm.slane %v4883, 0
    %v4948 = vperm.slane %v4884, 0
    %v4949 = vperm.slane %v4885, 0
    %v4950 = vperm.slane %v4886, 0
    %v4951 = vperm.slane %v4887, 0
    %vm4952 = vcmp.eq.s32.totalorder %v4821, %v4888
    %vm4953 = vcmp.eq.s32.totalorder %v4822, %v4888
    %vm4954 = vcmp.eq.s32.totalorder %v4823, %v4888
    %vm4955 = vcmp.eq.s32.totalorder %v4821, %v4889
    %vm4956 = vcmp.eq.s32.totalorder %v4822, %v4889
    %vm4957 = vcmp.eq.s32.totalorder %v4823, %v4889
    %vm4958 = vcmp.eq.s32.totalorder %v4821, %v4890
    %vm4959 = vcmp.eq.s32.totalorder %v4822, %v4890
    %vm4960 = vcmp.eq.s32.totalorder %v4823, %v4890
    %vm4961 = vcmp.eq.s32.totalorder %v4821, %v4891
    %vm4962 = vcmp.eq.s32.totalorder %v4822, %v4891
    %vm4963 = vcmp.eq.s32.totalorder %v4823, %v4891
    %vm4964 = vcmp.eq.s32.totalorder %v4821, %v4892
    %vm4965 = vcmp.eq.s32.totalorder %v4822, %v4892
    %vm4966 = vcmp.eq.s32.totalorder %v4823, %v4892
    %vm4967 = vcmp.eq.s32.totalorder %v4821, %v4893
    %vm4968 = vcmp.eq.s32.totalorder %v4822, %v4893
    %vm4969 = vcmp.eq.s32.totalorder %v4823, %v4893
    %vm4970 = vcmp.eq.s32.totalorder %v4821, %v4894
    %vm4971 = vcmp.eq.s32.totalorder %v4822, %v4894
    %vm4972 = vcmp.eq.s32.totalorder %v4823, %v4894
    %vm4973 = vcmp.eq.s32.totalorder %v4821, %v4895
    %vm4974 = vcmp.eq.s32.totalorder %v4822, %v4895
    %vm4975 = vcmp.eq.s32.totalorder %v4823, %v4895
    %vm4976 = vcmp.eq.s32.totalorder %v4821, %v4896
    %vm4977 = vcmp.eq.s32.totalorder %v4822, %v4896
    %vm4978 = vcmp.eq.s32.totalorder %v4823, %v4896
    %vm4979 = vcmp.eq.s32.totalorder %v4821, %v4897
    %vm4980 = vcmp.eq.s32.totalorder %v4822, %v4897
    %vm4981 = vcmp.eq.s32.totalorder %v4823, %v4897
    %vm4982 = vcmp.eq.s32.totalorder %v4821, %v4898
    %vm4983 = vcmp.eq.s32.totalorder %v4822, %v4898
    %vm4984 = vcmp.eq.s32.totalorder %v4823, %v4898
    %vm4985 = vcmp.eq.s32.totalorder %v4821, %v4899
    %vm4986 = vcmp.eq.s32.totalorder %v4822, %v4899
    %vm4987 = vcmp.eq.s32.totalorder %v4823, %v4899
    %vm4988 = vcmp.eq.s32.totalorder %v4821, %v4900
    %vm4989 = vcmp.eq.s32.totalorder %v4822, %v4900
    %vm4990 = vcmp.eq.s32.totalorder %v4823, %v4900
    %vm4991 = vcmp.eq.s32.totalorder %v4821, %v4901
    %vm4992 = vcmp.eq.s32.totalorder %v4822, %v4901
    %vm4993 = vcmp.eq.s32.totalorder %v4823, %v4901
    %vm4994 = vcmp.eq.s32.totalorder %v4821, %v4902
    %vm4995 = vcmp.eq.s32.totalorder %v4822, %v4902
    %vm4996 = vcmp.eq.s32.totalorder %v4823, %v4902
    %vm4997 = vcmp.eq.s32.totalorder %v4821, %v4903
    %vm4998 = vcmp.eq.s32.totalorder %v4822, %v4903
    %vm4999 = vcmp.eq.s32.totalorder %v4823, %v4903
    %vm5000 = vcmp.eq.s32.totalorder %v4821, %v4904
    %vm5001 = vcmp.eq.s32.totalorder %v4822, %v4904
    %vm5002 = vcmp.eq.s32.totalorder %v4823, %v4904
    %vm5003 = vcmp.eq.s32.totalorder %v4821, %v4905
    %vm5004 = vcmp.eq.s32.totalorder %v4822, %v4905
    %vm5005 = vcmp.eq.s32.totalorder %v4823, %v4905
    %vm5006 = vcmp.eq.s32.totalorder %v4821, %v4906
    %vm5007 = vcmp.eq.s32.totalorder %v4822, %v4906
    %vm5008 = vcmp.eq.s32.totalorder %v4823, %v4906
    %vm5009 = vcmp.eq.s32.totalorder %v4821, %v4907
    %vm5010 = vcmp.eq.s32.totalorder %v4822, %v4907
    %vm5011 = vcmp.eq.s32.totalorder %v4823, %v4907
    %vm5012 = vcmp.eq.s32.totalorder %v4821, %v4908
    %vm5013 = vcmp.eq.s32.totalorder %v4822, %v4908
    %vm5014 = vcmp.eq.s32.totalorder %v4823, %v4908
    %vm5015 = vcmp.eq.s32.totalorder %v4821, %v4909
    %vm5016 = vcmp.eq.s32.totalorder %v4822, %v4909
    %vm5017 = vcmp.eq.s32.totalorder %v4823, %v4909
    %vm5018 = vcmp.eq.s32.totalorder %v4821, %v4910
    %vm5019 = vcmp.eq.s32.totalorder %v4822, %v4910
    %vm5020 = vcmp.eq.s32.totalorder %v4823, %v4910
    %vm5021 = vcmp.eq.s32.totalorder %v4821, %v4911
    %vm5022 = vcmp.eq.s32.totalorder %v4822, %v4911
    %vm5023 = vcmp.eq.s32.totalorder %v4823, %v4911
    %vm5024 = vcmp.eq.s32.totalorder %v4821, %v4912
    %vm5025 = vcmp.eq.s32.totalorder %v4822, %v4912
    %vm5026 = vcmp.eq.s32.totalorder %v4823, %v4912
    %vm5027 = vcmp.eq.s32.totalorder %v4821, %v4913
    %vm5028 = vcmp.eq.s32.totalorder %v4822, %v4913
    %vm5029 = vcmp.eq.s32.totalorder %v4823, %v4913
    %vm5030 = vcmp.eq.s32.totalorder %v4821, %v4914
    %vm5031 = vcmp.eq.s32.totalorder %v4822, %v4914
    %vm5032 = vcmp.eq.s32.totalorder %v4823, %v4914
    %vm5033 = vcmp.eq.s32.totalorder %v4821, %v4915
    %vm5034 = vcmp.eq.s32.totalorder %v4822, %v4915
    %vm5035 = vcmp.eq.s32.totalorder %v4823, %v4915
    %vm5036 = vcmp.eq.s32.totalorder %v4821, %v4916
    %vm5037 = vcmp.eq.s32.totalorder %v4822, %v4916
    %vm5038 = vcmp.eq.s32.totalorder %v4823, %v4916
    %vm5039 = vcmp.eq.s32.totalorder %v4821, %v4917
    %vm5040 = vcmp.eq.s32.totalorder %v4822, %v4917
    %vm5041 = vcmp.eq.s32.totalorder %v4823, %v4917
    %vm5042 = vcmp.eq.s32.totalorder %v4821, %v4918
    %vm5043 = vcmp.eq.s32.totalorder %v4822, %v4918
    %vm5044 = vcmp.eq.s32.totalorder %v4823, %v4918
    %vm5045 = vcmp.eq.s32.totalorder %v4821, %v4919
    %vm5046 = vcmp.eq.s32.totalorder %v4822, %v4919
    %vm5047 = vcmp.eq.s32.totalorder %v4823, %v4919
    %vm5048 = vcmp.eq.s32.totalorder %v4821, %v4920
    %vm5049 = vcmp.eq.s32.totalorder %v4822, %v4920
    %vm5050 = vcmp.eq.s32.totalorder %v4823, %v4920
    %vm5051 = vcmp.eq.s32.totalorder %v4821, %v4921
    %vm5052 = vcmp.eq.s32.totalorder %v4822, %v4921
    %vm5053 = vcmp.eq.s32.totalorder %v4823, %v4921
    %vm5054 = vcmp.eq.s32.totalorder %v4821, %v4922
    %vm5055 = vcmp.eq.s32.totalorder %v4822, %v4922
    %vm5056 = vcmp.eq.s32.totalorder %v4823, %v4922
    %vm5057 = vcmp.eq.s32.totalorder %v4821, %v4923
    %vm5058 = vcmp.eq.s32.totalorder %v4822, %v4923
    %vm5059 = vcmp.eq.s32.totalorder %v4823, %v4923
    %vm5060 = vcmp.eq.s32.totalorder %v4821, %v4924
    %vm5061 = vcmp.eq.s32.totalorder %v4822, %v4924
    %vm5062 = vcmp.eq.s32.totalorder %v4823, %v4924
    %vm5063 = vcmp.eq.s32.totalorder %v4821, %v4925
    %vm5064 = vcmp.eq.s32.totalorder %v4822, %v4925
    %vm5065 = vcmp.eq.s32.totalorder %v4823, %v4925
    %vm5066 = vcmp.eq.s32.totalorder %v4821, %v4926
    %vm5067 = vcmp.eq.s32.totalorder %v4822, %v4926
    %vm5068 = vcmp.eq.s32.totalorder %v4823, %v4926
    %vm5069 = vcmp.eq.s32.totalorder %v4821, %v4927
    %vm5070 = vcmp.eq.s32.totalorder %v4822, %v4927
    %vm5071 = vcmp.eq.s32.totalorder %v4823, %v4927
    %vm5072 = vcmp.eq.s32.totalorder %v4821, %v4928
    %vm5073 = vcmp.eq.s32.totalorder %v4822, %v4928
    %vm5074 = vcmp.eq.s32.totalorder %v4823, %v4928
    %vm5075 = vcmp.eq.s32.totalorder %v4821, %v4929
    %vm5076 = vcmp.eq.s32.totalorder %v4822, %v4929
    %vm5077 = vcmp.eq.s32.totalorder %v4823, %v4929
    %vm5078 = vcmp.eq.s32.totalorder %v4821, %v4930
    %vm5079 = vcmp.eq.s32.totalorder %v4822, %v4930
    %vm5080 = vcmp.eq.s32.totalorder %v4823, %v4930
    %vm5081 = vcmp.eq.s32.totalorder %v4821, %v4931
    %vm5082 = vcmp.eq.s32.totalorder %v4822, %v4931
    %vm5083 = vcmp.eq.s32.totalorder %v4823, %v4931
    %vm5084 = vcmp.eq.s32.totalorder %v4821, %v4932
    %vm5085 = vcmp.eq.s32.totalorder %v4822, %v4932
    %vm5086 = vcmp.eq.s32.totalorder %v4823, %v4932
    %vm5087 = vcmp.eq.s32.totalorder %v4821, %v4933
    %vm5088 = vcmp.eq.s32.totalorder %v4822, %v4933
    %vm5089 = vcmp.eq.s32.totalorder %v4823, %v4933
    %vm5090 = vcmp.eq.s32.totalorder %v4821, %v4934
    %vm5091 = vcmp.eq.s32.totalorder %v4822, %v4934
    %vm5092 = vcmp.eq.s32.totalorder %v4823, %v4934
    %vm5093 = vcmp.eq.s32.totalorder %v4821, %v4935
    %vm5094 = vcmp.eq.s32.totalorder %v4822, %v4935
    %vm5095 = vcmp.eq.s32.totalorder %v4823, %v4935
    %vm5096 = vcmp.eq.s32.totalorder %v4821, %v4936
    %vm5097 = vcmp.eq.s32.totalorder %v4822, %v4936
    %vm5098 = vcmp.eq.s32.totalorder %v4823, %v4936
    %vm5099 = vcmp.eq.s32.totalorder %v4821, %v4937
    %vm5100 = vcmp.eq.s32.totalorder %v4822, %v4937
    %vm5101 = vcmp.eq.s32.totalorder %v4823, %v4937
    %vm5102 = vcmp.eq.s32.totalorder %v4821, %v4938
    %vm5103 = vcmp.eq.s32.totalorder %v4822, %v4938
    %vm5104 = vcmp.eq.s32.totalorder %v4823, %v4938
    %vm5105 = vcmp.eq.s32.totalorder %v4821, %v4939
    %vm5106 = vcmp.eq.s32.totalorder %v4822, %v4939
    %vm5107 = vcmp.eq.s32.totalorder %v4823, %v4939
    %vm5108 = vcmp.eq.s32.totalorder %v4821, %v4940
    %vm5109 = vcmp.eq.s32.totalorder %v4822, %v4940
    %vm5110 = vcmp.eq.s32.totalorder %v4823, %v4940
    %vm5111 = vcmp.eq.s32.totalorder %v4821, %v4941
    %vm5112 = vcmp.eq.s32.totalorder %v4822, %v4941
    %vm5113 = vcmp.eq.s32.totalorder %v4823, %v4941
    %vm5114 = vcmp.eq.s32.totalorder %v4821, %v4942
    %vm5115 = vcmp.eq.s32.totalorder %v4822, %v4942
    %vm5116 = vcmp.eq.s32.totalorder %v4823, %v4942
    %vm5117 = vcmp.eq.s32.totalorder %v4821, %v4943
    %vm5118 = vcmp.eq.s32.totalorder %v4822, %v4943
    %vm5119 = vcmp.eq.s32.totalorder %v4823, %v4943
    %vm5120 = vcmp.eq.s32.totalorder %v4821, %v4944
    %vm5121 = vcmp.eq.s32.totalorder %v4822, %v4944
    %vm5122 = vcmp.eq.s32.totalorder %v4823, %v4944
    %vm5123 = vcmp.eq.s32.totalorder %v4821, %v4945
    %vm5124 = vcmp.eq.s32.totalorder %v4822, %v4945
    %vm5125 = vcmp.eq.s32.totalorder %v4823, %v4945
    %vm5126 = vcmp.eq.s32.totalorder %v4821, %v4946
    %vm5127 = vcmp.eq.s32.totalorder %v4822, %v4946
    %vm5128 = vcmp.eq.s32.totalorder %v4823, %v4946
    %vm5129 = vcmp.eq.s32.totalorder %v4821, %v4947
    %vm5130 = vcmp.eq.s32.totalorder %v4822, %v4947
    %vm5131 = vcmp.eq.s32.totalorder %v4823, %v4947
    %vm5132 = vcmp.eq.s32.totalorder %v4821, %v4948
    %vm5133 = vcmp.eq.s32.totalorder %v4822, %v4948
    %vm5134 = vcmp.eq.s32.totalorder %v4823, %v4948
    %vm5135 = vcmp.eq.s32.totalorder %v4821, %v4949
    %vm5136 = vcmp.eq.s32.totalorder %v4822, %v4949
    %vm5137 = vcmp.eq.s32.totalorder %v4823, %v4949
    %vm5138 = vcmp.eq.s32.totalorder %v4821, %v4950
    %vm5139 = vcmp.eq.s32.totalorder %v4822, %v4950
    %vm5140 = vcmp.eq.s32.totalorder %v4823, %v4950
    %vm5141 = vcmp.eq.s32.totalorder %v4821, %v4951
    %vm5142 = vcmp.eq.s32.totalorder %v4822, %v4951
    %vm5143 = vcmp.eq.s32.totalorder %v4823, %v4951
    %v5144 = vsel %vm4952, %v3412, 0.0
    %v5145 = vsel %vm4953, %v3413, 0.0
    %v5146 = vsel %vm4954, %v3414, 0.0
    %v5147 = vsel %vm4955, %v3415, 0.0
    %v5148 = vsel %vm4956, %v3416, 0.0
    %v5149 = vsel %vm4957, %v3417, 0.0
    %v5150 = vsel %vm4958, %v3418, 0.0
    %v5151 = vsel %vm4959, %v3419, 0.0
    %v5152 = vsel %vm4960, %v3420, 0.0
    %v5153 = vsel %vm4961, %v3421, 0.0
    %v5154 = vsel %vm4962, %v3422, 0.0
    %v5155 = vsel %vm4963, %v3423, 0.0
    %v5156 = vsel %vm4964, %v3424, 0.0
    %v5157 = vsel %vm4965, %v3425, 0.0
    %v5158 = vsel %vm4966, %v3426, 0.0
    %v5159 = vsel %vm4967, %v3427, 0.0
    %v5160 = vsel %vm4968, %v3428, 0.0
    %v5161 = vsel %vm4969, %v3429, 0.0
    %v5162 = vsel %vm4970, %v3430, 0.0
    %v5163 = vsel %vm4971, %v3431, 0.0
    %v5164 = vsel %vm4972, %v3432, 0.0
    %v5165 = vsel %vm4973, %v3433, 0.0
    %v5166 = vsel %vm4974, %v3434, 0.0
    %v5167 = vsel %vm4975, %v3435, 0.0
    %v5168 = vsel %vm4976, %v3436, 0.0
    %v5169 = vsel %vm4977, %v3437, 0.0
    %v5170 = vsel %vm4978, %v3438, 0.0
    %v5171 = vsel %vm4979, %v3439, 0.0
    %v5172 = vsel %vm4980, %v3440, 0.0
    %v5173 = vsel %vm4981, %v3441, 0.0
    %v5174 = vsel %vm4982, %v3442, 0.0
    %v5175 = vsel %vm4983, %v3443, 0.0
    %v5176 = vsel %vm4984, %v3444, 0.0
    %v5177 = vsel %vm4985, %v3445, 0.0
    %v5178 = vsel %vm4986, %v3446, 0.0
    %v5179 = vsel %vm4987, %v3447, 0.0
    %v5180 = vsel %vm4988, %v3448, 0.0
    %v5181 = vsel %vm4989, %v3449, 0.0
    %v5182 = vsel %vm4990, %v3450, 0.0
    %v5183 = vsel %vm4991, %v3451, 0.0
    %v5184 = vsel %vm4992, %v3452, 0.0
    %v5185 = vsel %vm4993, %v3453, 0.0
    %v5186 = vsel %vm4994, %v3454, 0.0
    %v5187 = vsel %vm4995, %v3455, 0.0
    %v5188 = vsel %vm4996, %v3456, 0.0
    %v5189 = vsel %vm4997, %v3457, 0.0
    %v5190 = vsel %vm4998, %v3458, 0.0
    %v5191 = vsel %vm4999, %v3459, 0.0
    %v5192 = vsel %vm5000, %v3460, 0.0
    %v5193 = vsel %vm5001, %v3461, 0.0
    %v5194 = vsel %vm5002, %v3462, 0.0
    %v5195 = vsel %vm5003, %v3463, 0.0
    %v5196 = vsel %vm5004, %v3464, 0.0
    %v5197 = vsel %vm5005, %v3465, 0.0
    %v5198 = vsel %vm5006, %v3466, 0.0
    %v5199 = vsel %vm5007, %v3467, 0.0
    %v5200 = vsel %vm5008, %v3468, 0.0
    %v5201 = vsel %vm5009, %v3469, 0.0
    %v5202 = vsel %vm5010, %v3470, 0.0
    %v5203 = vsel %vm5011, %v3471, 0.0
    %v5204 = vsel %vm5012, %v3472, 0.0
    %v5205 = vsel %vm5013, %v3473, 0.0
    %v5206 = vsel %vm5014, %v3474, 0.0
    %v5207 = vsel %vm5015, %v3475, 0.0
    %v5208 = vsel %vm5016, %v3476, 0.0
    %v5209 = vsel %vm5017, %v3477, 0.0
    %v5210 = vsel %vm5018, %v3478, 0.0
    %v5211 = vsel %vm5019, %v3479, 0.0
    %v5212 = vsel %vm5020, %v3480, 0.0
    %v5213 = vsel %vm5021, %v3481, 0.0
    %v5214 = vsel %vm5022, %v3482, 0.0
    %v5215 = vsel %vm5023, %v3483, 0.0
    %v5216 = vsel %vm5024, %v3484, 0.0
    %v5217 = vsel %vm5025, %v3485, 0.0
    %v5218 = vsel %vm5026, %v3486, 0.0
    %v5219 = vsel %vm5027, %v3487, 0.0
    %v5220 = vsel %vm5028, %v3488, 0.0
    %v5221 = vsel %vm5029, %v3489, 0.0
    %v5222 = vsel %vm5030, %v3490, 0.0
    %v5223 = vsel %vm5031, %v3491, 0.0
    %v5224 = vsel %vm5032, %v3492, 0.0
    %v5225 = vsel %vm5033, %v3493, 0.0
    %v5226 = vsel %vm5034, %v3494, 0.0
    %v5227 = vsel %vm5035, %v3495, 0.0
    %v5228 = vsel %vm5036, %v3496, 0.0
    %v5229 = vsel %vm5037, %v3497, 0.0
    %v5230 = vsel %vm5038, %v3498, 0.0
    %v5231 = vsel %vm5039, %v3499, 0.0
    %v5232 = vsel %vm5040, %v3500, 0.0
    %v5233 = vsel %vm5041, %v3501, 0.0
    %v5234 = vsel %vm5042, %v3502, 0.0
    %v5235 = vsel %vm5043, %v3503, 0.0
    %v5236 = vsel %vm5044, %v3504, 0.0
    %v5237 = vsel %vm5045, %v3505, 0.0
    %v5238 = vsel %vm5046, %v3506, 0.0
    %v5239 = vsel %vm5047, %v3507, 0.0
    %v5240 = vsel %vm5048, %v3508, 0.0
    %v5241 = vsel %vm5049, %v3509, 0.0
    %v5242 = vsel %vm5050, %v3510, 0.0
    %v5243 = vsel %vm5051, %v3511, 0.0
    %v5244 = vsel %vm5052, %v3512, 0.0
    %v5245 = vsel %vm5053, %v3513, 0.0
    %v5246 = vsel %vm5054, %v3514, 0.0
    %v5247 = vsel %vm5055, %v3515, 0.0
    %v5248 = vsel %vm5056, %v3516, 0.0
    %v5249 = vsel %vm5057, %v3517, 0.0
    %v5250 = vsel %vm5058, %v3518, 0.0
    %v5251 = vsel %vm5059, %v3519, 0.0
    %v5252 = vsel %vm5060, %v3520, 0.0
    %v5253 = vsel %vm5061, %v3521, 0.0
    %v5254 = vsel %vm5062, %v3522, 0.0
    %v5255 = vsel %vm5063, %v3523, 0.0
    %v5256 = vsel %vm5064, %v3524, 0.0
    %v5257 = vsel %vm5065, %v3525, 0.0
    %v5258 = vsel %vm5066, %v3526, 0.0
    %v5259 = vsel %vm5067, %v3527, 0.0
    %v5260 = vsel %vm5068, %v3528, 0.0
    %v5261 = vsel %vm5069, %v3529, 0.0
    %v5262 = vsel %vm5070, %v3530, 0.0
    %v5263 = vsel %vm5071, %v3531, 0.0
    %v5264 = vsel %vm5072, %v3532, 0.0
    %v5265 = vsel %vm5073, %v3533, 0.0
    %v5266 = vsel %vm5074, %v3534, 0.0
    %v5267 = vsel %vm5075, %v3535, 0.0
    %v5268 = vsel %vm5076, %v3536, 0.0
    %v5269 = vsel %vm5077, %v3537, 0.0
    %v5270 = vsel %vm5078, %v3538, 0.0
    %v5271 = vsel %vm5079, %v3539, 0.0
    %v5272 = vsel %vm5080, %v3540, 0.0
    %v5273 = vsel %vm5081, %v3541, 0.0
    %v5274 = vsel %vm5082, %v3542, 0.0
    %v5275 = vsel %vm5083, %v3543, 0.0
    %v5276 = vsel %vm5084, %v3544, 0.0
    %v5277 = vsel %vm5085, %v3545, 0.0
    %v5278 = vsel %vm5086, %v3546, 0.0
    %v5279 = vsel %vm5087, %v3547, 0.0
    %v5280 = vsel %vm5088, %v3548, 0.0
    %v5281 = vsel %vm5089, %v3549, 0.0
    %v5282 = vsel %vm5090, %v3550, 0.0
    %v5283 = vsel %vm5091, %v3551, 0.0
    %v5284 = vsel %vm5092, %v3552, 0.0
    %v5285 = vsel %vm5093, %v3553, 0.0
    %v5286 = vsel %vm5094, %v3554, 0.0
    %v5287 = vsel %vm5095, %v3555, 0.0
    %v5288 = vsel %vm5096, %v3556, 0.0
    %v5289 = vsel %vm5097, %v3557, 0.0
    %v5290 = vsel %vm5098, %v3558, 0.0
    %v5291 = vsel %vm5099, %v3559, 0.0
    %v5292 = vsel %vm5100, %v3560, 0.0
    %v5293 = vsel %vm5101, %v3561, 0.0
    %v5294 = vsel %vm5102, %v3562, 0.0
    %v5295 = vsel %vm5103, %v3563, 0.0
    %v5296 = vsel %vm5104, %v3564, 0.0
    %v5297 = vsel %vm5105, %v3565, 0.0
    %v5298 = vsel %vm5106, %v3566, 0.0
    %v5299 = vsel %vm5107, %v3567, 0.0
    %v5300 = vsel %vm5108, %v3568, 0.0
    %v5301 = vsel %vm5109, %v3569, 0.0
    %v5302 = vsel %vm5110, %v3570, 0.0
    %v5303 = vsel %vm5111, %v3571, 0.0
    %v5304 = vsel %vm5112, %v3572, 0.0
    %v5305 = vsel %vm5113, %v3573, 0.0
    %v5306 = vsel %vm5114, %v3574, 0.0
    %v5307 = vsel %vm5115, %v3575, 0.0
    %v5308 = vsel %vm5116, %v3576, 0.0
    %v5309 = vsel %vm5117, %v3577, 0.0
    %v5310 = vsel %vm5118, %v3578, 0.0
    %v5311 = vsel %vm5119, %v3579, 0.0
    %v5312 = vsel %vm5120, %v3580, 0.0
    %v5313 = vsel %vm5121, %v3581, 0.0
    %v5314 = vsel %vm5122, %v3582, 0.0
    %v5315 = vsel %vm5123, %v3583, 0.0
    %v5316 = vsel %vm5124, %v3584, 0.0
    %v5317 = vsel %vm5125, %v3585, 0.0
    %v5318 = vsel %vm5126, %v3586, 0.0
    %v5319 = vsel %vm5127, %v3587, 0.0
    %v5320 = vsel %vm5128, %v3588, 0.0
    %v5321 = vsel %vm5129, %v3589, 0.0
    %v5322 = vsel %vm5130, %v3590, 0.0
    %v5323 = vsel %vm5131, %v3591, 0.0
    %v5324 = vsel %vm5132, %v3592, 0.0
    %v5325 = vsel %vm5133, %v3593, 0.0
    %v5326 = vsel %vm5134, %v3594, 0.0
    %v5327 = vsel %vm5135, %v3595, 0.0
    %v5328 = vsel %vm5136, %v3596, 0.0
    %v5329 = vsel %vm5137, %v3597, 0.0
    %v5330 = vsel %vm5138, %v3598, 0.0
    %v5331 = vsel %vm5139, %v3599, 0.0
    %v5332 = vsel %vm5140, %v3600, 0.0
    %v5333 = vsel %vm5141, %v3601, 0.0
    %v5334 = vsel %vm5142, %v3602, 0.0
    %v5335 = vsel %vm5143, %v3603, 0.0
    %v5336 = vsel %vm59, %v5144, 0.0
    %v5337 = vsel %vm59, %v5145, 0.0
    %v5338 = vadd.f32 %v5336, %v5337
    %v5339 = vsel %vm59, %v5146, 0.0
    %v5340 = vadd.f32 %v5338, %v5339
    %v5341 = vrot.slane %v5340, 4
    %v5342 = vadd.f32 %v5340, %v5341
    %v5343 = vrot.slane %v5342, 2
    %v5344 = vadd.f32 %v5342, %v5343
    %v5345 = vrot.slane %v5344, 1
    %v5346 = vadd.f32 %v5344, %v5345
    %v5347 = vsel %vm59, %v5147, 0.0
    %v5348 = vsel %vm59, %v5148, 0.0
    %v5349 = vadd.f32 %v5347, %v5348
    %v5350 = vsel %vm59, %v5149, 0.0
    %v5351 = vadd.f32 %v5349, %v5350
    %v5352 = vrot.slane %v5351, 4
    %v5353 = vadd.f32 %v5351, %v5352
    %v5354 = vrot.slane %v5353, 2
    %v5355 = vadd.f32 %v5353, %v5354
    %v5356 = vrot.slane %v5355, 1
    %v5357 = vadd.f32 %v5355, %v5356
    %v5358 = vsel %vm59, %v5150, 0.0
    %v5359 = vsel %vm59, %v5151, 0.0
    %v5360 = vadd.f32 %v5358, %v5359
    %v5361 = vsel %vm59, %v5152, 0.0
    %v5362 = vadd.f32 %v5360, %v5361
    %v5363 = vrot.slane %v5362, 4
    %v5364 = vadd.f32 %v5362, %v5363
    %v5365 = vrot.slane %v5364, 2
    %v5366 = vadd.f32 %v5364, %v5365
    %v5367 = vrot.slane %v5366, 1
    %v5368 = vadd.f32 %v5366, %v5367
    %v5369 = vsel %vm59, %v5153, 0.0
    %v5370 = vsel %vm59, %v5154, 0.0
    %v5371 = vadd.f32 %v5369, %v5370
    %v5372 = vsel %vm59, %v5155, 0.0
    %v5373 = vadd.f32 %v5371, %v5372
    %v5374 = vrot.slane %v5373, 4
    %v5375 = vadd.f32 %v5373, %v5374
    %v5376 = vrot.slane %v5375, 2
    %v5377 = vadd.f32 %v5375, %v5376
    %v5378 = vrot.slane %v5377, 1
    %v5379 = vadd.f32 %v5377, %v5378
    %v5380 = vsel %vm59, %v5156, 0.0
    %v5381 = vsel %vm59, %v5157, 0.0
    %v5382 = vadd.f32 %v5380, %v5381
    %v5383 = vsel %vm59, %v5158, 0.0
    %v5384 = vadd.f32 %v5382, %v5383
    %v5385 = vrot.slane %v5384, 4
    %v5386 = vadd.f32 %v5384, %v5385
    %v5387 = vrot.slane %v5386, 2
    %v5388 = vadd.f32 %v5386, %v5387
    %v5389 = vrot.slane %v5388, 1
    %v5390 = vadd.f32 %v5388, %v5389
    %v5391 = vsel %vm59, %v5159, 0.0
    %v5392 = vsel %vm59, %v5160, 0.0
    %v5393 = vadd.f32 %v5391, %v5392
    %v5394 = vsel %vm59, %v5161, 0.0
    %v5395 = vadd.f32 %v5393, %v5394
    %v5396 = vrot.slane %v5395, 4
    %v5397 = vadd.f32 %v5395, %v5396
    %v5398 = vrot.slane %v5397, 2
    %v5399 = vadd.f32 %v5397, %v5398
    %v5400 = vrot.slane %v5399, 1
    %v5401 = vadd.f32 %v5399, %v5400
    %v5402 = vsel %vm59, %v5162, 0.0
    %v5403 = vsel %vm59, %v5163, 0.0
    %v5404 = vadd.f32 %v5402, %v5403
    %v5405 = vsel %vm59, %v5164, 0.0
    %v5406 = vadd.f32 %v5404, %v5405
    %v5407 = vrot.slane %v5406, 4
    %v5408 = vadd.f32 %v5406, %v5407
    %v5409 = vrot.slane %v5408, 2
    %v5410 = vadd.f32 %v5408, %v5409
    %v5411 = vrot.slane %v5410, 1
    %v5412 = vadd.f32 %v5410, %v5411
    %v5413 = vsel %vm59, %v5165, 0.0
    %v5414 = vsel %vm59, %v5166, 0.0
    %v5415 = vadd.f32 %v5413, %v5414
    %v5416 = vsel %vm59, %v5167, 0.0
    %v5417 = vadd.f32 %v5415, %v5416
    %v5418 = vrot.slane %v5417, 4
    %v5419 = vadd.f32 %v5417, %v5418
    %v5420 = vrot.slane %v5419, 2
    %v5421 = vadd.f32 %v5419, %v5420
    %v5422 = vrot.slane %v5421, 1
    %v5423 = vadd.f32 %v5421, %v5422
    %v5424 = vsel %vm59, %v5168, 0.0
    %v5425 = vsel %vm59, %v5169, 0.0
    %v5426 = vadd.f32 %v5424, %v5425
    %v5427 = vsel %vm59, %v5170, 0.0
    %v5428 = vadd.f32 %v5426, %v5427
    %v5429 = vrot.slane %v5428, 4
    %v5430 = vadd.f32 %v5428, %v5429
    %v5431 = vrot.slane %v5430, 2
    %v5432 = vadd.f32 %v5430, %v5431
    %v5433 = vrot.slane %v5432, 1
    %v5434 = vadd.f32 %v5432, %v5433
    %v5435 = vsel %vm59, %v5171, 0.0
    %v5436 = vsel %vm59, %v5172, 0.0
    %v5437 = vadd.f32 %v5435, %v5436
    %v5438 = vsel %vm59, %v5173, 0.0
    %v5439 = vadd.f32 %v5437, %v5438
    %v5440 = vrot.slane %v5439, 4
    %v5441 = vadd.f32 %v5439, %v5440
    %v5442 = vrot.slane %v5441, 2
    %v5443 = vadd.f32 %v5441, %v5442
    %v5444 = vrot.slane %v5443, 1
    %v5445 = vadd.f32 %v5443, %v5444
    %v5446 = vsel %vm59, %v5174, 0.0
    %v5447 = vsel %vm59, %v5175, 0.0
    %v5448 = vadd.f32 %v5446, %v5447
    %v5449 = vsel %vm59, %v5176, 0.0
    %v5450 = vadd.f32 %v5448, %v5449
    %v5451 = vrot.slane %v5450, 4
    %v5452 = vadd.f32 %v5450, %v5451
    %v5453 = vrot.slane %v5452, 2
    %v5454 = vadd.f32 %v5452, %v5453
    %v5455 = vrot.slane %v5454, 1
    %v5456 = vadd.f32 %v5454, %v5455
    %v5457 = vsel %vm59, %v5177, 0.0
    %v5458 = vsel %vm59, %v5178, 0.0
    %v5459 = vadd.f32 %v5457, %v5458
    %v5460 = vsel %vm59, %v5179, 0.0
    %v5461 = vadd.f32 %v5459, %v5460
    %v5462 = vrot.slane %v5461, 4
    %v5463 = vadd.f32 %v5461, %v5462
    %v5464 = vrot.slane %v5463, 2
    %v5465 = vadd.f32 %v5463, %v5464
    %v5466 = vrot.slane %v5465, 1
    %v5467 = vadd.f32 %v5465, %v5466
    %v5468 = vsel %vm59, %v5180, 0.0
    %v5469 = vsel %vm59, %v5181, 0.0
    %v5470 = vadd.f32 %v5468, %v5469
    %v5471 = vsel %vm59, %v5182, 0.0
    %v5472 = vadd.f32 %v5470, %v5471
    %v5473 = vrot.slane %v5472, 4
    %v5474 = vadd.f32 %v5472, %v5473
    %v5475 = vrot.slane %v5474, 2
    %v5476 = vadd.f32 %v5474, %v5475
    %v5477 = vrot.slane %v5476, 1
    %v5478 = vadd.f32 %v5476, %v5477
    %v5479 = vsel %vm59, %v5183, 0.0
    %v5480 = vsel %vm59, %v5184, 0.0
    %v5481 = vadd.f32 %v5479, %v5480
    %v5482 = vsel %vm59, %v5185, 0.0
    %v5483 = vadd.f32 %v5481, %v5482
    %v5484 = vrot.slane %v5483, 4
    %v5485 = vadd.f32 %v5483, %v5484
    %v5486 = vrot.slane %v5485, 2
    %v5487 = vadd.f32 %v5485, %v5486
    %v5488 = vrot.slane %v5487, 1
    %v5489 = vadd.f32 %v5487, %v5488
    %v5490 = vsel %vm59, %v5186, 0.0
    %v5491 = vsel %vm59, %v5187, 0.0
    %v5492 = vadd.f32 %v5490, %v5491
    %v5493 = vsel %vm59, %v5188, 0.0
    %v5494 = vadd.f32 %v5492, %v5493
    %v5495 = vrot.slane %v5494, 4
    %v5496 = vadd.f32 %v5494, %v5495
    %v5497 = vrot.slane %v5496, 2
    %v5498 = vadd.f32 %v5496, %v5497
    %v5499 = vrot.slane %v5498, 1
    %v5500 = vadd.f32 %v5498, %v5499
    %v5501 = vsel %vm59, %v5189, 0.0
    %v5502 = vsel %vm59, %v5190, 0.0
    %v5503 = vadd.f32 %v5501, %v5502
    %v5504 = vsel %vm59, %v5191, 0.0
    %v5505 = vadd.f32 %v5503, %v5504
    %v5506 = vrot.slane %v5505, 4
    %v5507 = vadd.f32 %v5505, %v5506
    %v5508 = vrot.slane %v5507, 2
    %v5509 = vadd.f32 %v5507, %v5508
    %v5510 = vrot.slane %v5509, 1
    %v5511 = vadd.f32 %v5509, %v5510
    %v5512 = vsel %vm59, %v5192, 0.0
    %v5513 = vsel %vm59, %v5193, 0.0
    %v5514 = vadd.f32 %v5512, %v5513
    %v5515 = vsel %vm59, %v5194, 0.0
    %v5516 = vadd.f32 %v5514, %v5515
    %v5517 = vrot.slane %v5516, 4
    %v5518 = vadd.f32 %v5516, %v5517
    %v5519 = vrot.slane %v5518, 2
    %v5520 = vadd.f32 %v5518, %v5519
    %v5521 = vrot.slane %v5520, 1
    %v5522 = vadd.f32 %v5520, %v5521
    %v5523 = vsel %vm59, %v5195, 0.0
    %v5524 = vsel %vm59, %v5196, 0.0
    %v5525 = vadd.f32 %v5523, %v5524
    %v5526 = vsel %vm59, %v5197, 0.0
    %v5527 = vadd.f32 %v5525, %v5526
    %v5528 = vrot.slane %v5527, 4
    %v5529 = vadd.f32 %v5527, %v5528
    %v5530 = vrot.slane %v5529, 2
    %v5531 = vadd.f32 %v5529, %v5530
    %v5532 = vrot.slane %v5531, 1
    %v5533 = vadd.f32 %v5531, %v5532
    %v5534 = vsel %vm59, %v5198, 0.0
    %v5535 = vsel %vm59, %v5199, 0.0
    %v5536 = vadd.f32 %v5534, %v5535
    %v5537 = vsel %vm59, %v5200, 0.0
    %v5538 = vadd.f32 %v5536, %v5537
    %v5539 = vrot.slane %v5538, 4
    %v5540 = vadd.f32 %v5538, %v5539
    %v5541 = vrot.slane %v5540, 2
    %v5542 = vadd.f32 %v5540, %v5541
    %v5543 = vrot.slane %v5542, 1
    %v5544 = vadd.f32 %v5542, %v5543
    %v5545 = vsel %vm59, %v5201, 0.0
    %v5546 = vsel %vm59, %v5202, 0.0
    %v5547 = vadd.f32 %v5545, %v5546
    %v5548 = vsel %vm59, %v5203, 0.0
    %v5549 = vadd.f32 %v5547, %v5548
    %v5550 = vrot.slane %v5549, 4
    %v5551 = vadd.f32 %v5549, %v5550
    %v5552 = vrot.slane %v5551, 2
    %v5553 = vadd.f32 %v5551, %v5552
    %v5554 = vrot.slane %v5553, 1
    %v5555 = vadd.f32 %v5553, %v5554
    %v5556 = vsel %vm59, %v5204, 0.0
    %v5557 = vsel %vm59, %v5205, 0.0
    %v5558 = vadd.f32 %v5556, %v5557
    %v5559 = vsel %vm59, %v5206, 0.0
    %v5560 = vadd.f32 %v5558, %v5559
    %v5561 = vrot.slane %v5560, 4
    %v5562 = vadd.f32 %v5560, %v5561
    %v5563 = vrot.slane %v5562, 2
    %v5564 = vadd.f32 %v5562, %v5563
    %v5565 = vrot.slane %v5564, 1
    %v5566 = vadd.f32 %v5564, %v5565
    %v5567 = vsel %vm59, %v5207, 0.0
    %v5568 = vsel %vm59, %v5208, 0.0
    %v5569 = vadd.f32 %v5567, %v5568
    %v5570 = vsel %vm59, %v5209, 0.0
    %v5571 = vadd.f32 %v5569, %v5570
    %v5572 = vrot.slane %v5571, 4
    %v5573 = vadd.f32 %v5571, %v5572
    %v5574 = vrot.slane %v5573, 2
    %v5575 = vadd.f32 %v5573, %v5574
    %v5576 = vrot.slane %v5575, 1
    %v5577 = vadd.f32 %v5575, %v5576
    %v5578 = vsel %vm59, %v5210, 0.0
    %v5579 = vsel %vm59, %v5211, 0.0
    %v5580 = vadd.f32 %v5578, %v5579
    %v5581 = vsel %vm59, %v5212, 0.0
    %v5582 = vadd.f32 %v5580, %v5581
    %v5583 = vrot.slane %v5582, 4
    %v5584 = vadd.f32 %v5582, %v5583
    %v5585 = vrot.slane %v5584, 2
    %v5586 = vadd.f32 %v5584, %v5585
    %v5587 = vrot.slane %v5586, 1
    %v5588 = vadd.f32 %v5586, %v5587
    %v5589 = vsel %vm59, %v5213, 0.0
    %v5590 = vsel %vm59, %v5214, 0.0
    %v5591 = vadd.f32 %v5589, %v5590
    %v5592 = vsel %vm59, %v5215, 0.0
    %v5593 = vadd.f32 %v5591, %v5592
    %v5594 = vrot.slane %v5593, 4
    %v5595 = vadd.f32 %v5593, %v5594
    %v5596 = vrot.slane %v5595, 2
    %v5597 = vadd.f32 %v5595, %v5596
    %v5598 = vrot.slane %v5597, 1
    %v5599 = vadd.f32 %v5597, %v5598
    %v5600 = vsel %vm59, %v5216, 0.0
    %v5601 = vsel %vm59, %v5217, 0.0
    %v5602 = vadd.f32 %v5600, %v5601
    %v5603 = vsel %vm59, %v5218, 0.0
    %v5604 = vadd.f32 %v5602, %v5603
    %v5605 = vrot.slane %v5604, 4
    %v5606 = vadd.f32 %v5604, %v5605
    %v5607 = vrot.slane %v5606, 2
    %v5608 = vadd.f32 %v5606, %v5607
    %v5609 = vrot.slane %v5608, 1
    %v5610 = vadd.f32 %v5608, %v5609
    %v5611 = vsel %vm59, %v5219, 0.0
    %v5612 = vsel %vm59, %v5220, 0.0
    %v5613 = vadd.f32 %v5611, %v5612
    %v5614 = vsel %vm59, %v5221, 0.0
    %v5615 = vadd.f32 %v5613, %v5614
    %v5616 = vrot.slane %v5615, 4
    %v5617 = vadd.f32 %v5615, %v5616
    %v5618 = vrot.slane %v5617, 2
    %v5619 = vadd.f32 %v5617, %v5618
    %v5620 = vrot.slane %v5619, 1
    %v5621 = vadd.f32 %v5619, %v5620
    %v5622 = vsel %vm59, %v5222, 0.0
    %v5623 = vsel %vm59, %v5223, 0.0
    %v5624 = vadd.f32 %v5622, %v5623
    %v5625 = vsel %vm59, %v5224, 0.0
    %v5626 = vadd.f32 %v5624, %v5625
    %v5627 = vrot.slane %v5626, 4
    %v5628 = vadd.f32 %v5626, %v5627
    %v5629 = vrot.slane %v5628, 2
    %v5630 = vadd.f32 %v5628, %v5629
    %v5631 = vrot.slane %v5630, 1
    %v5632 = vadd.f32 %v5630, %v5631
    %v5633 = vsel %vm59, %v5225, 0.0
    %v5634 = vsel %vm59, %v5226, 0.0
    %v5635 = vadd.f32 %v5633, %v5634
    %v5636 = vsel %vm59, %v5227, 0.0
    %v5637 = vadd.f32 %v5635, %v5636
    %v5638 = vrot.slane %v5637, 4
    %v5639 = vadd.f32 %v5637, %v5638
    %v5640 = vrot.slane %v5639, 2
    %v5641 = vadd.f32 %v5639, %v5640
    %v5642 = vrot.slane %v5641, 1
    %v5643 = vadd.f32 %v5641, %v5642
    %v5644 = vsel %vm59, %v5228, 0.0
    %v5645 = vsel %vm59, %v5229, 0.0
    %v5646 = vadd.f32 %v5644, %v5645
    %v5647 = vsel %vm59, %v5230, 0.0
    %v5648 = vadd.f32 %v5646, %v5647
    %v5649 = vrot.slane %v5648, 4
    %v5650 = vadd.f32 %v5648, %v5649
    %v5651 = vrot.slane %v5650, 2
    %v5652 = vadd.f32 %v5650, %v5651
    %v5653 = vrot.slane %v5652, 1
    %v5654 = vadd.f32 %v5652, %v5653
    %v5655 = vsel %vm59, %v5231, 0.0
    %v5656 = vsel %vm59, %v5232, 0.0
    %v5657 = vadd.f32 %v5655, %v5656
    %v5658 = vsel %vm59, %v5233, 0.0
    %v5659 = vadd.f32 %v5657, %v5658
    %v5660 = vrot.slane %v5659, 4
    %v5661 = vadd.f32 %v5659, %v5660
    %v5662 = vrot.slane %v5661, 2
    %v5663 = vadd.f32 %v5661, %v5662
    %v5664 = vrot.slane %v5663, 1
    %v5665 = vadd.f32 %v5663, %v5664
    %v5666 = vsel %vm59, %v5234, 0.0
    %v5667 = vsel %vm59, %v5235, 0.0
    %v5668 = vadd.f32 %v5666, %v5667
    %v5669 = vsel %vm59, %v5236, 0.0
    %v5670 = vadd.f32 %v5668, %v5669
    %v5671 = vrot.slane %v5670, 4
    %v5672 = vadd.f32 %v5670, %v5671
    %v5673 = vrot.slane %v5672, 2
    %v5674 = vadd.f32 %v5672, %v5673
    %v5675 = vrot.slane %v5674, 1
    %v5676 = vadd.f32 %v5674, %v5675
    %v5677 = vsel %vm59, %v5237, 0.0
    %v5678 = vsel %vm59, %v5238, 0.0
    %v5679 = vadd.f32 %v5677, %v5678
    %v5680 = vsel %vm59, %v5239, 0.0
    %v5681 = vadd.f32 %v5679, %v5680
    %v5682 = vrot.slane %v5681, 4
    %v5683 = vadd.f32 %v5681, %v5682
    %v5684 = vrot.slane %v5683, 2
    %v5685 = vadd.f32 %v5683, %v5684
    %v5686 = vrot.slane %v5685, 1
    %v5687 = vadd.f32 %v5685, %v5686
    %v5688 = vsel %vm59, %v5240, 0.0
    %v5689 = vsel %vm59, %v5241, 0.0
    %v5690 = vadd.f32 %v5688, %v5689
    %v5691 = vsel %vm59, %v5242, 0.0
    %v5692 = vadd.f32 %v5690, %v5691
    %v5693 = vrot.slane %v5692, 4
    %v5694 = vadd.f32 %v5692, %v5693
    %v5695 = vrot.slane %v5694, 2
    %v5696 = vadd.f32 %v5694, %v5695
    %v5697 = vrot.slane %v5696, 1
    %v5698 = vadd.f32 %v5696, %v5697
    %v5699 = vsel %vm59, %v5243, 0.0
    %v5700 = vsel %vm59, %v5244, 0.0
    %v5701 = vadd.f32 %v5699, %v5700
    %v5702 = vsel %vm59, %v5245, 0.0
    %v5703 = vadd.f32 %v5701, %v5702
    %v5704 = vrot.slane %v5703, 4
    %v5705 = vadd.f32 %v5703, %v5704
    %v5706 = vrot.slane %v5705, 2
    %v5707 = vadd.f32 %v5705, %v5706
    %v5708 = vrot.slane %v5707, 1
    %v5709 = vadd.f32 %v5707, %v5708
    %v5710 = vsel %vm59, %v5246, 0.0
    %v5711 = vsel %vm59, %v5247, 0.0
    %v5712 = vadd.f32 %v5710, %v5711
    %v5713 = vsel %vm59, %v5248, 0.0
    %v5714 = vadd.f32 %v5712, %v5713
    %v5715 = vrot.slane %v5714, 4
    %v5716 = vadd.f32 %v5714, %v5715
    %v5717 = vrot.slane %v5716, 2
    %v5718 = vadd.f32 %v5716, %v5717
    %v5719 = vrot.slane %v5718, 1
    %v5720 = vadd.f32 %v5718, %v5719
    %v5721 = vsel %vm59, %v5249, 0.0
    %v5722 = vsel %vm59, %v5250, 0.0
    %v5723 = vadd.f32 %v5721, %v5722
    %v5724 = vsel %vm59, %v5251, 0.0
    %v5725 = vadd.f32 %v5723, %v5724
    %v5726 = vrot.slane %v5725, 4
    %v5727 = vadd.f32 %v5725, %v5726
    %v5728 = vrot.slane %v5727, 2
    %v5729 = vadd.f32 %v5727, %v5728
    %v5730 = vrot.slane %v5729, 1
    %v5731 = vadd.f32 %v5729, %v5730
    %v5732 = vsel %vm59, %v5252, 0.0
    %v5733 = vsel %vm59, %v5253, 0.0
    %v5734 = vadd.f32 %v5732, %v5733
    %v5735 = vsel %vm59, %v5254, 0.0
    %v5736 = vadd.f32 %v5734, %v5735
    %v5737 = vrot.slane %v5736, 4
    %v5738 = vadd.f32 %v5736, %v5737
    %v5739 = vrot.slane %v5738, 2
    %v5740 = vadd.f32 %v5738, %v5739
    %v5741 = vrot.slane %v5740, 1
    %v5742 = vadd.f32 %v5740, %v5741
    %v5743 = vsel %vm59, %v5255, 0.0
    %v5744 = vsel %vm59, %v5256, 0.0
    %v5745 = vadd.f32 %v5743, %v5744
    %v5746 = vsel %vm59, %v5257, 0.0
    %v5747 = vadd.f32 %v5745, %v5746
    %v5748 = vrot.slane %v5747, 4
    %v5749 = vadd.f32 %v5747, %v5748
    %v5750 = vrot.slane %v5749, 2
    %v5751 = vadd.f32 %v5749, %v5750
    %v5752 = vrot.slane %v5751, 1
    %v5753 = vadd.f32 %v5751, %v5752
    %v5754 = vsel %vm59, %v5258, 0.0
    %v5755 = vsel %vm59, %v5259, 0.0
    %v5756 = vadd.f32 %v5754, %v5755
    %v5757 = vsel %vm59, %v5260, 0.0
    %v5758 = vadd.f32 %v5756, %v5757
    %v5759 = vrot.slane %v5758, 4
    %v5760 = vadd.f32 %v5758, %v5759
    %v5761 = vrot.slane %v5760, 2
    %v5762 = vadd.f32 %v5760, %v5761
    %v5763 = vrot.slane %v5762, 1
    %v5764 = vadd.f32 %v5762, %v5763
    %v5765 = vsel %vm59, %v5261, 0.0
    %v5766 = vsel %vm59, %v5262, 0.0
    %v5767 = vadd.f32 %v5765, %v5766
    %v5768 = vsel %vm59, %v5263, 0.0
    %v5769 = vadd.f32 %v5767, %v5768
    %v5770 = vrot.slane %v5769, 4
    %v5771 = vadd.f32 %v5769, %v5770
    %v5772 = vrot.slane %v5771, 2
    %v5773 = vadd.f32 %v5771, %v5772
    %v5774 = vrot.slane %v5773, 1
    %v5775 = vadd.f32 %v5773, %v5774
    %v5776 = vsel %vm59, %v5264, 0.0
    %v5777 = vsel %vm59, %v5265, 0.0
    %v5778 = vadd.f32 %v5776, %v5777
    %v5779 = vsel %vm59, %v5266, 0.0
    %v5780 = vadd.f32 %v5778, %v5779
    %v5781 = vrot.slane %v5780, 4
    %v5782 = vadd.f32 %v5780, %v5781
    %v5783 = vrot.slane %v5782, 2
    %v5784 = vadd.f32 %v5782, %v5783
    %v5785 = vrot.slane %v5784, 1
    %v5786 = vadd.f32 %v5784, %v5785
    %v5787 = vsel %vm59, %v5267, 0.0
    %v5788 = vsel %vm59, %v5268, 0.0
    %v5789 = vadd.f32 %v5787, %v5788
    %v5790 = vsel %vm59, %v5269, 0.0
    %v5791 = vadd.f32 %v5789, %v5790
    %v5792 = vrot.slane %v5791, 4
    %v5793 = vadd.f32 %v5791, %v5792
    %v5794 = vrot.slane %v5793, 2
    %v5795 = vadd.f32 %v5793, %v5794
    %v5796 = vrot.slane %v5795, 1
    %v5797 = vadd.f32 %v5795, %v5796
    %v5798 = vsel %vm59, %v5270, 0.0
    %v5799 = vsel %vm59, %v5271, 0.0
    %v5800 = vadd.f32 %v5798, %v5799
    %v5801 = vsel %vm59, %v5272, 0.0
    %v5802 = vadd.f32 %v5800, %v5801
    %v5803 = vrot.slane %v5802, 4
    %v5804 = vadd.f32 %v5802, %v5803
    %v5805 = vrot.slane %v5804, 2
    %v5806 = vadd.f32 %v5804, %v5805
    %v5807 = vrot.slane %v5806, 1
    %v5808 = vadd.f32 %v5806, %v5807
    %v5809 = vsel %vm59, %v5273, 0.0
    %v5810 = vsel %vm59, %v5274, 0.0
    %v5811 = vadd.f32 %v5809, %v5810
    %v5812 = vsel %vm59, %v5275, 0.0
    %v5813 = vadd.f32 %v5811, %v5812
    %v5814 = vrot.slane %v5813, 4
    %v5815 = vadd.f32 %v5813, %v5814
    %v5816 = vrot.slane %v5815, 2
    %v5817 = vadd.f32 %v5815, %v5816
    %v5818 = vrot.slane %v5817, 1
    %v5819 = vadd.f32 %v5817, %v5818
    %v5820 = vsel %vm59, %v5276, 0.0
    %v5821 = vsel %vm59, %v5277, 0.0
    %v5822 = vadd.f32 %v5820, %v5821
    %v5823 = vsel %vm59, %v5278, 0.0
    %v5824 = vadd.f32 %v5822, %v5823
    %v5825 = vrot.slane %v5824, 4
    %v5826 = vadd.f32 %v5824, %v5825
    %v5827 = vrot.slane %v5826, 2
    %v5828 = vadd.f32 %v5826, %v5827
    %v5829 = vrot.slane %v5828, 1
    %v5830 = vadd.f32 %v5828, %v5829
    %v5831 = vsel %vm59, %v5279, 0.0
    %v5832 = vsel %vm59, %v5280, 0.0
    %v5833 = vadd.f32 %v5831, %v5832
    %v5834 = vsel %vm59, %v5281, 0.0
    %v5835 = vadd.f32 %v5833, %v5834
    %v5836 = vrot.slane %v5835, 4
    %v5837 = vadd.f32 %v5835, %v5836
    %v5838 = vrot.slane %v5837, 2
    %v5839 = vadd.f32 %v5837, %v5838
    %v5840 = vrot.slane %v5839, 1
    %v5841 = vadd.f32 %v5839, %v5840
    %v5842 = vsel %vm59, %v5282, 0.0
    %v5843 = vsel %vm59, %v5283, 0.0
    %v5844 = vadd.f32 %v5842, %v5843
    %v5845 = vsel %vm59, %v5284, 0.0
    %v5846 = vadd.f32 %v5844, %v5845
    %v5847 = vrot.slane %v5846, 4
    %v5848 = vadd.f32 %v5846, %v5847
    %v5849 = vrot.slane %v5848, 2
    %v5850 = vadd.f32 %v5848, %v5849
    %v5851 = vrot.slane %v5850, 1
    %v5852 = vadd.f32 %v5850, %v5851
    %v5853 = vsel %vm59, %v5285, 0.0
    %v5854 = vsel %vm59, %v5286, 0.0
    %v5855 = vadd.f32 %v5853, %v5854
    %v5856 = vsel %vm59, %v5287, 0.0
    %v5857 = vadd.f32 %v5855, %v5856
    %v5858 = vrot.slane %v5857, 4
    %v5859 = vadd.f32 %v5857, %v5858
    %v5860 = vrot.slane %v5859, 2
    %v5861 = vadd.f32 %v5859, %v5860
    %v5862 = vrot.slane %v5861, 1
    %v5863 = vadd.f32 %v5861, %v5862
    %v5864 = vsel %vm59, %v5288, 0.0
    %v5865 = vsel %vm59, %v5289, 0.0
    %v5866 = vadd.f32 %v5864, %v5865
    %v5867 = vsel %vm59, %v5290, 0.0
    %v5868 = vadd.f32 %v5866, %v5867
    %v5869 = vrot.slane %v5868, 4
    %v5870 = vadd.f32 %v5868, %v5869
    %v5871 = vrot.slane %v5870, 2
    %v5872 = vadd.f32 %v5870, %v5871
    %v5873 = vrot.slane %v5872, 1
    %v5874 = vadd.f32 %v5872, %v5873
    %v5875 = vsel %vm59, %v5291, 0.0
    %v5876 = vsel %vm59, %v5292, 0.0
    %v5877 = vadd.f32 %v5875, %v5876
    %v5878 = vsel %vm59, %v5293, 0.0
    %v5879 = vadd.f32 %v5877, %v5878
    %v5880 = vrot.slane %v5879, 4
    %v5881 = vadd.f32 %v5879, %v5880
    %v5882 = vrot.slane %v5881, 2
    %v5883 = vadd.f32 %v5881, %v5882
    %v5884 = vrot.slane %v5883, 1
    %v5885 = vadd.f32 %v5883, %v5884
    %v5886 = vsel %vm59, %v5294, 0.0
    %v5887 = vsel %vm59, %v5295, 0.0
    %v5888 = vadd.f32 %v5886, %v5887
    %v5889 = vsel %vm59, %v5296, 0.0
    %v5890 = vadd.f32 %v5888, %v5889
    %v5891 = vrot.slane %v5890, 4
    %v5892 = vadd.f32 %v5890, %v5891
    %v5893 = vrot.slane %v5892, 2
    %v5894 = vadd.f32 %v5892, %v5893
    %v5895 = vrot.slane %v5894, 1
    %v5896 = vadd.f32 %v5894, %v5895
    %v5897 = vsel %vm59, %v5297, 0.0
    %v5898 = vsel %vm59, %v5298, 0.0
    %v5899 = vadd.f32 %v5897, %v5898
    %v5900 = vsel %vm59, %v5299, 0.0
    %v5901 = vadd.f32 %v5899, %v5900
    %v5902 = vrot.slane %v5901, 4
    %v5903 = vadd.f32 %v5901, %v5902
    %v5904 = vrot.slane %v5903, 2
    %v5905 = vadd.f32 %v5903, %v5904
    %v5906 = vrot.slane %v5905, 1
    %v5907 = vadd.f32 %v5905, %v5906
    %v5908 = vsel %vm59, %v5300, 0.0
    %v5909 = vsel %vm59, %v5301, 0.0
    %v5910 = vadd.f32 %v5908, %v5909
    %v5911 = vsel %vm59, %v5302, 0.0
    %v5912 = vadd.f32 %v5910, %v5911
    %v5913 = vrot.slane %v5912, 4
    %v5914 = vadd.f32 %v5912, %v5913
    %v5915 = vrot.slane %v5914, 2
    %v5916 = vadd.f32 %v5914, %v5915
    %v5917 = vrot.slane %v5916, 1
    %v5918 = vadd.f32 %v5916, %v5917
    %v5919 = vsel %vm59, %v5303, 0.0
    %v5920 = vsel %vm59, %v5304, 0.0
    %v5921 = vadd.f32 %v5919, %v5920
    %v5922 = vsel %vm59, %v5305, 0.0
    %v5923 = vadd.f32 %v5921, %v5922
    %v5924 = vrot.slane %v5923, 4
    %v5925 = vadd.f32 %v5923, %v5924
    %v5926 = vrot.slane %v5925, 2
    %v5927 = vadd.f32 %v5925, %v5926
    %v5928 = vrot.slane %v5927, 1
    %v5929 = vadd.f32 %v5927, %v5928
    %v5930 = vsel %vm59, %v5306, 0.0
    %v5931 = vsel %vm59, %v5307, 0.0
    %v5932 = vadd.f32 %v5930, %v5931
    %v5933 = vsel %vm59, %v5308, 0.0
    %v5934 = vadd.f32 %v5932, %v5933
    %v5935 = vrot.slane %v5934, 4
    %v5936 = vadd.f32 %v5934, %v5935
    %v5937 = vrot.slane %v5936, 2
    %v5938 = vadd.f32 %v5936, %v5937
    %v5939 = vrot.slane %v5938, 1
    %v5940 = vadd.f32 %v5938, %v5939
    %v5941 = vsel %vm59, %v5309, 0.0
    %v5942 = vsel %vm59, %v5310, 0.0
    %v5943 = vadd.f32 %v5941, %v5942
    %v5944 = vsel %vm59, %v5311, 0.0
    %v5945 = vadd.f32 %v5943, %v5944
    %v5946 = vrot.slane %v5945, 4
    %v5947 = vadd.f32 %v5945, %v5946
    %v5948 = vrot.slane %v5947, 2
    %v5949 = vadd.f32 %v5947, %v5948
    %v5950 = vrot.slane %v5949, 1
    %v5951 = vadd.f32 %v5949, %v5950
    %v5952 = vsel %vm59, %v5312, 0.0
    %v5953 = vsel %vm59, %v5313, 0.0
    %v5954 = vadd.f32 %v5952, %v5953
    %v5955 = vsel %vm59, %v5314, 0.0
    %v5956 = vadd.f32 %v5954, %v5955
    %v5957 = vrot.slane %v5956, 4
    %v5958 = vadd.f32 %v5956, %v5957
    %v5959 = vrot.slane %v5958, 2
    %v5960 = vadd.f32 %v5958, %v5959
    %v5961 = vrot.slane %v5960, 1
    %v5962 = vadd.f32 %v5960, %v5961
    %v5963 = vsel %vm59, %v5315, 0.0
    %v5964 = vsel %vm59, %v5316, 0.0
    %v5965 = vadd.f32 %v5963, %v5964
    %v5966 = vsel %vm59, %v5317, 0.0
    %v5967 = vadd.f32 %v5965, %v5966
    %v5968 = vrot.slane %v5967, 4
    %v5969 = vadd.f32 %v5967, %v5968
    %v5970 = vrot.slane %v5969, 2
    %v5971 = vadd.f32 %v5969, %v5970
    %v5972 = vrot.slane %v5971, 1
    %v5973 = vadd.f32 %v5971, %v5972
    %v5974 = vsel %vm59, %v5318, 0.0
    %v5975 = vsel %vm59, %v5319, 0.0
    %v5976 = vadd.f32 %v5974, %v5975
    %v5977 = vsel %vm59, %v5320, 0.0
    %v5978 = vadd.f32 %v5976, %v5977
    %v5979 = vrot.slane %v5978, 4
    %v5980 = vadd.f32 %v5978, %v5979
    %v5981 = vrot.slane %v5980, 2
    %v5982 = vadd.f32 %v5980, %v5981
    %v5983 = vrot.slane %v5982, 1
    %v5984 = vadd.f32 %v5982, %v5983
    %v5985 = vsel %vm59, %v5321, 0.0
    %v5986 = vsel %vm59, %v5322, 0.0
    %v5987 = vadd.f32 %v5985, %v5986
    %v5988 = vsel %vm59, %v5323, 0.0
    %v5989 = vadd.f32 %v5987, %v5988
    %v5990 = vrot.slane %v5989, 4
    %v5991 = vadd.f32 %v5989, %v5990
    %v5992 = vrot.slane %v5991, 2
    %v5993 = vadd.f32 %v5991, %v5992
    %v5994 = vrot.slane %v5993, 1
    %v5995 = vadd.f32 %v5993, %v5994
    %v5996 = vsel %vm59, %v5324, 0.0
    %v5997 = vsel %vm59, %v5325, 0.0
    %v5998 = vadd.f32 %v5996, %v5997
    %v5999 = vsel %vm59, %v5326, 0.0
    %v6000 = vadd.f32 %v5998, %v5999
    %v6001 = vrot.slane %v6000, 4
    %v6002 = vadd.f32 %v6000, %v6001
    %v6003 = vrot.slane %v6002, 2
    %v6004 = vadd.f32 %v6002, %v6003
    %v6005 = vrot.slane %v6004, 1
    %v6006 = vadd.f32 %v6004, %v6005
    %v6007 = vsel %vm59, %v5327, 0.0
    %v6008 = vsel %vm59, %v5328, 0.0
    %v6009 = vadd.f32 %v6007, %v6008
    %v6010 = vsel %vm59, %v5329, 0.0
    %v6011 = vadd.f32 %v6009, %v6010
    %v6012 = vrot.slane %v6011, 4
    %v6013 = vadd.f32 %v6011, %v6012
    %v6014 = vrot.slane %v6013, 2
    %v6015 = vadd.f32 %v6013, %v6014
    %v6016 = vrot.slane %v6015, 1
    %v6017 = vadd.f32 %v6015, %v6016
    %v6018 = vsel %vm59, %v5330, 0.0
    %v6019 = vsel %vm59, %v5331, 0.0
    %v6020 = vadd.f32 %v6018, %v6019
    %v6021 = vsel %vm59, %v5332, 0.0
    %v6022 = vadd.f32 %v6020, %v6021
    %v6023 = vrot.slane %v6022, 4
    %v6024 = vadd.f32 %v6022, %v6023
    %v6025 = vrot.slane %v6024, 2
    %v6026 = vadd.f32 %v6024, %v6025
    %v6027 = vrot.slane %v6026, 1
    %v6028 = vadd.f32 %v6026, %v6027
    %v6029 = vsel %vm59, %v5333, 0.0
    %v6030 = vsel %vm59, %v5334, 0.0
    %v6031 = vadd.f32 %v6029, %v6030
    %v6032 = vsel %vm59, %v5335, 0.0
    %v6033 = vadd.f32 %v6031, %v6032
    %v6034 = vrot.slane %v6033, 4
    %v6035 = vadd.f32 %v6033, %v6034
    %v6036 = vrot.slane %v6035, 2
    %v6037 = vadd.f32 %v6035, %v6036
    %v6038 = vrot.slane %v6037, 1
    %v6039 = vadd.f32 %v6037, %v6038
    %v6040 = vsub.f32 %v5346, %v4693
    %v6041 = vsub.f32 %v5357, %v4695
    %v6042 = vsub.f32 %v5368, %v4697
    %v6043 = vsub.f32 %v5379, %v4699
    %v6044 = vsub.f32 %v5390, %v4701
    %v6045 = vsub.f32 %v5401, %v4703
    %v6046 = vsub.f32 %v5412, %v4705
    %v6047 = vsub.f32 %v5423, %v4707
    %v6048 = vsub.f32 %v5434, %v4709
    %v6049 = vsub.f32 %v5445, %v4711
    %v6050 = vsub.f32 %v5456, %v4713
    %v6051 = vsub.f32 %v5467, %v4715
    %v6052 = vsub.f32 %v5478, %v4717
    %v6053 = vsub.f32 %v5489, %v4719
    %v6054 = vsub.f32 %v5500, %v4721
    %v6055 = vsub.f32 %v5511, %v4723
    %v6056 = vsub.f32 %v5522, %v4725
    %v6057 = vsub.f32 %v5533, %v4727
    %v6058 = vsub.f32 %v5544, %v4729
    %v6059 = vsub.f32 %v5555, %v4731
    %v6060 = vsub.f32 %v5566, %v4733
    %v6061 = vsub.f32 %v5577, %v4735
    %v6062 = vsub.f32 %v5588, %v4737
    %v6063 = vsub.f32 %v5599, %v4739
    %v6064 = vsub.f32 %v5610, %v4741
    %v6065 = vsub.f32 %v5621, %v4743
    %v6066 = vsub.f32 %v5632, %v4745
    %v6067 = vsub.f32 %v5643, %v4747
    %v6068 = vsub.f32 %v5654, %v4749
    %v6069 = vsub.f32 %v5665, %v4751
    %v6070 = vsub.f32 %v5676, %v4753
    %v6071 = vsub.f32 %v5687, %v4755
    %v6072 = vsub.f32 %v5698, %v4757
    %v6073 = vsub.f32 %v5709, %v4759
    %v6074 = vsub.f32 %v5720, %v4761
    %v6075 = vsub.f32 %v5731, %v4763
    %v6076 = vsub.f32 %v5742, %v4765
    %v6077 = vsub.f32 %v5753, %v4767
    %v6078 = vsub.f32 %v5764, %v4769
    %v6079 = vsub.f32 %v5775, %v4771
    %v6080 = vsub.f32 %v5786, %v4773
    %v6081 = vsub.f32 %v5797, %v4775
    %v6082 = vsub.f32 %v5808, %v4777
    %v6083 = vsub.f32 %v5819, %v4779
    %v6084 = vsub.f32 %v5830, %v4781
    %v6085 = vsub.f32 %v5841, %v4783
    %v6086 = vsub.f32 %v5852, %v4785
    %v6087 = vsub.f32 %v5863, %v4787
    %v6088 = vsub.f32 %v5874, %v4789
    %v6089 = vsub.f32 %v5885, %v4791
    %v6090 = vsub.f32 %v5896, %v4793
    %v6091 = vsub.f32 %v5907, %v4795
    %v6092 = vsub.f32 %v5918, %v4797
    %v6093 = vsub.f32 %v5929, %v4799
    %v6094 = vsub.f32 %v5940, %v4801
    %v6095 = vsub.f32 %v5951, %v4803
    %v6096 = vsub.f32 %v5962, %v4805
    %v6097 = vsub.f32 %v5973, %v4807
    %v6098 = vsub.f32 %v5984, %v4809
    %v6099 = vsub.f32 %v5995, %v4811
    %v6100 = vsub.f32 %v6006, %v4813
    %v6101 = vsub.f32 %v6017, %v4815
    %v6102 = vsub.f32 %v6028, %v4817
    %v6103 = vsub.f32 %v6039, %v4819
    %v6104 = vmax.f32 %v6040, -27.631021
    %v6105 = vmax.f32 %v6041, -27.631021
    %v6106 = vmax.f32 %v6042, -27.631021
    %v6107 = vmax.f32 %v6043, -27.631021
    %v6108 = vmax.f32 %v6044, -27.631021
    %v6109 = vmax.f32 %v6045, -27.631021
    %v6110 = vmax.f32 %v6046, -27.631021
    %v6111 = vmax.f32 %v6047, -27.631021
    %v6112 = vmax.f32 %v6048, -27.631021
    %v6113 = vmax.f32 %v6049, -27.631021
    %v6114 = vmax.f32 %v6050, -27.631021
    %v6115 = vmax.f32 %v6051, -27.631021
    %v6116 = vmax.f32 %v6052, -27.631021
    %v6117 = vmax.f32 %v6053, -27.631021
    %v6118 = vmax.f32 %v6054, -27.631021
    %v6119 = vmax.f32 %v6055, -27.631021
    %v6120 = vmax.f32 %v6056, -27.631021
    %v6121 = vmax.f32 %v6057, -27.631021
    %v6122 = vmax.f32 %v6058, -27.631021
    %v6123 = vmax.f32 %v6059, -27.631021
    %v6124 = vmax.f32 %v6060, -27.631021
    %v6125 = vmax.f32 %v6061, -27.631021
    %v6126 = vmax.f32 %v6062, -27.631021
    %v6127 = vmax.f32 %v6063, -27.631021
    %v6128 = vmax.f32 %v6064, -27.631021
    %v6129 = vmax.f32 %v6065, -27.631021
    %v6130 = vmax.f32 %v6066, -27.631021
    %v6131 = vmax.f32 %v6067, -27.631021
    %v6132 = vmax.f32 %v6068, -27.631021
    %v6133 = vmax.f32 %v6069, -27.631021
    %v6134 = vmax.f32 %v6070, -27.631021
    %v6135 = vmax.f32 %v6071, -27.631021
    %v6136 = vmax.f32 %v6072, -27.631021
    %v6137 = vmax.f32 %v6073, -27.631021
    %v6138 = vmax.f32 %v6074, -27.631021
    %v6139 = vmax.f32 %v6075, -27.631021
    %v6140 = vmax.f32 %v6076, -27.631021
    %v6141 = vmax.f32 %v6077, -27.631021
    %v6142 = vmax.f32 %v6078, -27.631021
    %v6143 = vmax.f32 %v6079, -27.631021
    %v6144 = vmax.f32 %v6080, -27.631021
    %v6145 = vmax.f32 %v6081, -27.631021
    %v6146 = vmax.f32 %v6082, -27.631021
    %v6147 = vmax.f32 %v6083, -27.631021
    %v6148 = vmax.f32 %v6084, -27.631021
    %v6149 = vmax.f32 %v6085, -27.631021
    %v6150 = vmax.f32 %v6086, -27.631021
    %v6151 = vmax.f32 %v6087, -27.631021
    %v6152 = vmax.f32 %v6088, -27.631021
    %v6153 = vmax.f32 %v6089, -27.631021
    %v6154 = vmax.f32 %v6090, -27.631021
    %v6155 = vmax.f32 %v6091, -27.631021
    %v6156 = vmax.f32 %v6092, -27.631021
    %v6157 = vmax.f32 %v6093, -27.631021
    %v6158 = vmax.f32 %v6094, -27.631021
    %v6159 = vmax.f32 %v6095, -27.631021
    %v6160 = vmax.f32 %v6096, -27.631021
    %v6161 = vmax.f32 %v6097, -27.631021
    %v6162 = vmax.f32 %v6098, -27.631021
    %v6163 = vmax.f32 %v6099, -27.631021
    %v6164 = vmax.f32 %v6100, -27.631021
    %v6165 = vmax.f32 %v6101, -27.631021
    %v6166 = vmax.f32 %v6102, -27.631021
    %v6167 = vmax.f32 %v6103, -27.631021
    %v6168 = vmin.f32 %v6104, 0.0
    %v6169 = vmin.f32 %v6105, 0.0
    %v6170 = vmin.f32 %v6106, 0.0
    %v6171 = vmin.f32 %v6107, 0.0
    %v6172 = vmin.f32 %v6108, 0.0
    %v6173 = vmin.f32 %v6109, 0.0
    %v6174 = vmin.f32 %v6110, 0.0
    %v6175 = vmin.f32 %v6111, 0.0
    %v6176 = vmin.f32 %v6112, 0.0
    %v6177 = vmin.f32 %v6113, 0.0
    %v6178 = vmin.f32 %v6114, 0.0
    %v6179 = vmin.f32 %v6115, 0.0
    %v6180 = vmin.f32 %v6116, 0.0
    %v6181 = vmin.f32 %v6117, 0.0
    %v6182 = vmin.f32 %v6118, 0.0
    %v6183 = vmin.f32 %v6119, 0.0
    %v6184 = vmin.f32 %v6120, 0.0
    %v6185 = vmin.f32 %v6121, 0.0
    %v6186 = vmin.f32 %v6122, 0.0
    %v6187 = vmin.f32 %v6123, 0.0
    %v6188 = vmin.f32 %v6124, 0.0
    %v6189 = vmin.f32 %v6125, 0.0
    %v6190 = vmin.f32 %v6126, 0.0
    %v6191 = vmin.f32 %v6127, 0.0
    %v6192 = vmin.f32 %v6128, 0.0
    %v6193 = vmin.f32 %v6129, 0.0
    %v6194 = vmin.f32 %v6130, 0.0
    %v6195 = vmin.f32 %v6131, 0.0
    %v6196 = vmin.f32 %v6132, 0.0
    %v6197 = vmin.f32 %v6133, 0.0
    %v6198 = vmin.f32 %v6134, 0.0
    %v6199 = vmin.f32 %v6135, 0.0
    %v6200 = vmin.f32 %v6136, 0.0
    %v6201 = vmin.f32 %v6137, 0.0
    %v6202 = vmin.f32 %v6138, 0.0
    %v6203 = vmin.f32 %v6139, 0.0
    %v6204 = vmin.f32 %v6140, 0.0
    %v6205 = vmin.f32 %v6141, 0.0
    %v6206 = vmin.f32 %v6142, 0.0
    %v6207 = vmin.f32 %v6143, 0.0
    %v6208 = vmin.f32 %v6144, 0.0
    %v6209 = vmin.f32 %v6145, 0.0
    %v6210 = vmin.f32 %v6146, 0.0
    %v6211 = vmin.f32 %v6147, 0.0
    %v6212 = vmin.f32 %v6148, 0.0
    %v6213 = vmin.f32 %v6149, 0.0
    %v6214 = vmin.f32 %v6150, 0.0
    %v6215 = vmin.f32 %v6151, 0.0
    %v6216 = vmin.f32 %v6152, 0.0
    %v6217 = vmin.f32 %v6153, 0.0
    %v6218 = vmin.f32 %v6154, 0.0
    %v6219 = vmin.f32 %v6155, 0.0
    %v6220 = vmin.f32 %v6156, 0.0
    %v6221 = vmin.f32 %v6157, 0.0
    %v6222 = vmin.f32 %v6158, 0.0
    %v6223 = vmin.f32 %v6159, 0.0
    %v6224 = vmin.f32 %v6160, 0.0
    %v6225 = vmin.f32 %v6161, 0.0
    %v6226 = vmin.f32 %v6162, 0.0
    %v6227 = vmin.f32 %v6163, 0.0
    %v6228 = vmin.f32 %v6164, 0.0
    %v6229 = vmin.f32 %v6165, 0.0
    %v6230 = vmin.f32 %v6166, 0.0
    %v6231 = vmin.f32 %v6167, 0.0
    %v6232 = vsel %vm59, %v6168, 0.0
    %v6233 = vsel %vm59, %v6169, 0.0
    %v6234 = vadd.f32 %v6232, %v6233
    %v6235 = vsel %vm59, %v6170, 0.0
    %v6236 = vadd.f32 %v6234, %v6235
    %v6237 = vsel %vm59, %v6171, 0.0
    %v6238 = vadd.f32 %v6236, %v6237
    %v6239 = vsel %vm59, %v6172, 0.0
    %v6240 = vadd.f32 %v6238, %v6239
    %v6241 = vsel %vm59, %v6173, 0.0
    %v6242 = vadd.f32 %v6240, %v6241
    %v6243 = vsel %vm59, %v6174, 0.0
    %v6244 = vadd.f32 %v6242, %v6243
    %v6245 = vsel %vm59, %v6175, 0.0
    %v6246 = vadd.f32 %v6244, %v6245
    %v6247 = vsel %vm59, %v6176, 0.0
    %v6248 = vadd.f32 %v6246, %v6247
    %v6249 = vsel %vm59, %v6177, 0.0
    %v6250 = vadd.f32 %v6248, %v6249
    %v6251 = vsel %vm59, %v6178, 0.0
    %v6252 = vadd.f32 %v6250, %v6251
    %v6253 = vsel %vm59, %v6179, 0.0
    %v6254 = vadd.f32 %v6252, %v6253
    %v6255 = vsel %vm59, %v6180, 0.0
    %v6256 = vadd.f32 %v6254, %v6255
    %v6257 = vsel %vm59, %v6181, 0.0
    %v6258 = vadd.f32 %v6256, %v6257
    %v6259 = vsel %vm59, %v6182, 0.0
    %v6260 = vadd.f32 %v6258, %v6259
    %v6261 = vsel %vm59, %v6183, 0.0
    %v6262 = vadd.f32 %v6260, %v6261
    %v6263 = vsel %vm59, %v6184, 0.0
    %v6264 = vadd.f32 %v6262, %v6263
    %v6265 = vsel %vm59, %v6185, 0.0
    %v6266 = vadd.f32 %v6264, %v6265
    %v6267 = vsel %vm59, %v6186, 0.0
    %v6268 = vadd.f32 %v6266, %v6267
    %v6269 = vsel %vm59, %v6187, 0.0
    %v6270 = vadd.f32 %v6268, %v6269
    %v6271 = vsel %vm59, %v6188, 0.0
    %v6272 = vadd.f32 %v6270, %v6271
    %v6273 = vsel %vm59, %v6189, 0.0
    %v6274 = vadd.f32 %v6272, %v6273
    %v6275 = vsel %vm59, %v6190, 0.0
    %v6276 = vadd.f32 %v6274, %v6275
    %v6277 = vsel %vm59, %v6191, 0.0
    %v6278 = vadd.f32 %v6276, %v6277
    %v6279 = vsel %vm59, %v6192, 0.0
    %v6280 = vadd.f32 %v6278, %v6279
    %v6281 = vsel %vm59, %v6193, 0.0
    %v6282 = vadd.f32 %v6280, %v6281
    %v6283 = vsel %vm59, %v6194, 0.0
    %v6284 = vadd.f32 %v6282, %v6283
    %v6285 = vsel %vm59, %v6195, 0.0
    %v6286 = vadd.f32 %v6284, %v6285
    %v6287 = vsel %vm59, %v6196, 0.0
    %v6288 = vadd.f32 %v6286, %v6287
    %v6289 = vsel %vm59, %v6197, 0.0
    %v6290 = vadd.f32 %v6288, %v6289
    %v6291 = vsel %vm59, %v6198, 0.0
    %v6292 = vadd.f32 %v6290, %v6291
    %v6293 = vsel %vm59, %v6199, 0.0
    %v6294 = vadd.f32 %v6292, %v6293
    %v6295 = vsel %vm59, %v6200, 0.0
    %v6296 = vadd.f32 %v6294, %v6295
    %v6297 = vsel %vm59, %v6201, 0.0
    %v6298 = vadd.f32 %v6296, %v6297
    %v6299 = vsel %vm59, %v6202, 0.0
    %v6300 = vadd.f32 %v6298, %v6299
    %v6301 = vsel %vm59, %v6203, 0.0
    %v6302 = vadd.f32 %v6300, %v6301
    %v6303 = vsel %vm59, %v6204, 0.0
    %v6304 = vadd.f32 %v6302, %v6303
    %v6305 = vsel %vm59, %v6205, 0.0
    %v6306 = vadd.f32 %v6304, %v6305
    %v6307 = vsel %vm59, %v6206, 0.0
    %v6308 = vadd.f32 %v6306, %v6307
    %v6309 = vsel %vm59, %v6207, 0.0
    %v6310 = vadd.f32 %v6308, %v6309
    %v6311 = vsel %vm59, %v6208, 0.0
    %v6312 = vadd.f32 %v6310, %v6311
    %v6313 = vsel %vm59, %v6209, 0.0
    %v6314 = vadd.f32 %v6312, %v6313
    %v6315 = vsel %vm59, %v6210, 0.0
    %v6316 = vadd.f32 %v6314, %v6315
    %v6317 = vsel %vm59, %v6211, 0.0
    %v6318 = vadd.f32 %v6316, %v6317
    %v6319 = vsel %vm59, %v6212, 0.0
    %v6320 = vadd.f32 %v6318, %v6319
    %v6321 = vsel %vm59, %v6213, 0.0
    %v6322 = vadd.f32 %v6320, %v6321
    %v6323 = vsel %vm59, %v6214, 0.0
    %v6324 = vadd.f32 %v6322, %v6323
    %v6325 = vsel %vm59, %v6215, 0.0
    %v6326 = vadd.f32 %v6324, %v6325
    %v6327 = vsel %vm59, %v6216, 0.0
    %v6328 = vadd.f32 %v6326, %v6327
    %v6329 = vsel %vm59, %v6217, 0.0
    %v6330 = vadd.f32 %v6328, %v6329
    %v6331 = vsel %vm59, %v6218, 0.0
    %v6332 = vadd.f32 %v6330, %v6331
    %v6333 = vsel %vm59, %v6219, 0.0
    %v6334 = vadd.f32 %v6332, %v6333
    %v6335 = vsel %vm59, %v6220, 0.0
    %v6336 = vadd.f32 %v6334, %v6335
    %v6337 = vsel %vm59, %v6221, 0.0
    %v6338 = vadd.f32 %v6336, %v6337
    %v6339 = vsel %vm59, %v6222, 0.0
    %v6340 = vadd.f32 %v6338, %v6339
    %v6341 = vsel %vm59, %v6223, 0.0
    %v6342 = vadd.f32 %v6340, %v6341
    %v6343 = vsel %vm59, %v6224, 0.0
    %v6344 = vadd.f32 %v6342, %v6343
    %v6345 = vsel %vm59, %v6225, 0.0
    %v6346 = vadd.f32 %v6344, %v6345
    %v6347 = vsel %vm59, %v6226, 0.0
    %v6348 = vadd.f32 %v6346, %v6347
    %v6349 = vsel %vm59, %v6227, 0.0
    %v6350 = vadd.f32 %v6348, %v6349
    %v6351 = vsel %vm59, %v6228, 0.0
    %v6352 = vadd.f32 %v6350, %v6351
    %v6353 = vsel %vm59, %v6229, 0.0
    %v6354 = vadd.f32 %v6352, %v6353
    %v6355 = vsel %vm59, %v6230, 0.0
    %v6356 = vadd.f32 %v6354, %v6355
    %v6357 = vsel %vm59, %v6231, 0.0
    %v6358 = vadd.f32 %v6356, %v6357
    %v6359 = vadd.f32 %v6358, 0.0
    %vm6360 = vcmask 57344
    %6361 = vst.msk [vmem:[#allocation2] sm:$0x1] %vm6360, %v6359
    // Predicated region
    $region34: #{tpu_custom_call.1} parent=1 // pred_check
      _
    $region35: #{tpu_custom_call.1} parent=1 // pred_check_branch
      %6363 = sbr.rel (0) target = $region37
    $region36: #{tpu_custom_call.1} parent=1 // pred_region
      %6365 = vsyncadd [#allocation3], 0
      %s6367 = sshll.u32 [#allocation2], 4
      %s6368 = int_to_ptr.vmem [resolvable:$true] %s6367
      %s6369 = sshll.u32 %s8, 4
      %s6370 = int_to_ptr.hbm [resolvable:$true] %s6369
      %6372 = dma.vmem_to_hbm [thread:$0]  %s6368, 16, %s6370, [#allocation3]
    $region37: #{tpu_custom_call.1} parent=1 // pred_fallthru
      _
    // Predicated region
    $region38: #{tpu_custom_call.1} parent=1 // pred_check
      _
    $region39: #{tpu_custom_call.1} parent=1 // pred_check_branch
      %6374 = sbr.rel (0) target = $region41
    $region40: #{tpu_custom_call.1} parent=1 // pred_region
      %6376 = dma.done [#allocation3], 16
    $region41: #{tpu_custom_call.1} parent=1 // pred_fallthru
      _
    %6377 = vsyncpa [#allocation3], 1

</llo_original>
